<compile_context>
chip_gen: v6e
topology: v6e:2x2x1
jax: 0.10.0
libtpu: 0.0.40
codegen_flags: <defaults>
</compile_context>

<pallas_src>
import jax
import jax.numpy as jnp
from jax.experimental import pallas as pl
from jax.experimental.pallas import tpu as pltpu

HIDDEN = 64          # true hidden size (PyTorch)
HP = 128             # lane-padded per-gate width (128-lane tile aligned)
GATES = 4
NUM_LAYERS = 3


def _rnn3_wavefront_kernel(x_ref,
                           wih0_ref, whh0_ref, b0_ref,
                           w1_ref, b1_ref,
                           w2_ref, b2_ref,
                           h0_ref, c0_ref,
                           y_ref, hn_ref, cn_ref,
                           zx_ref):
    """Fused 3-layer LSTM, wavefront-scheduled, fully VMEM resident.

    x_ref   : (B, T, 64)   f32, batch-first input (native layout, no transpose)
    wih0_ref: (64, 512)    bf16, layer-0 input->gates (gate g at cols [g*128, g*128+64))
    whh0_ref: (128, 512)   bf16, layer-0 hidden->gates (rows 64.. are zero)
    b0_ref  : (1, 512)     f32, b_ih + b_hh for layer 0 (padded lanes zero)
    w1_ref  : (256, 512)   bf16, layer-1 [W_ih ; W_hh] stacked
    b1_ref  : (1, 512)     f32
    w2_ref  : (256, 512)   bf16, layer-2 [W_ih ; W_hh] stacked
    b2_ref  : (1, 512)     f32
    h0_ref  : (3, B, 128)  f32, initial hidden (padded lanes zero)
    c0_ref  : (3, B, 128)  f32, initial cell   (padded lanes zero)
    y_ref   : (B, T, 128)  f32, last-layer per-step hidden outputs
    hn_ref  : (3, B, 128)  f32, final hidden states
    cn_ref  : (3, B, 128)  f32, final cell states
    zx_ref  : (B, T, 512)  f32 VMEM scratch, hoisted layer-0 input projection
    """
    B, T, K_in = x_ref.shape
    G = GATES * HP

    # Hoisted layer-0 input projection: one big MXU matmul -> VMEM scratch.
    x_bf = x_ref[...].reshape(B * T, K_in).astype(jnp.bfloat16)
    zx_ref[...] = (jnp.dot(x_bf, wih0_ref[...],
                           preferred_element_type=jnp.float32)
                   + b0_ref[...]).reshape(B, T, G)

    # Weights/biases read once outside the recurrent loop.
    whh0 = whh0_ref[...]
    w1 = w1_ref[...]
    w2 = w2_ref[...]
    b1 = b1_ref[...]
    b2 = b2_ref[...]

    def cell(z, c):
        # PyTorch gate order: input, forget, cell (g), output.  Each gate is a
        # full, tile-aligned 128-lane slice.  Padded lanes of z are exactly 0,
        # so padded lanes of c/h stay exactly 0:
        #   c_pad' = sigmoid(0)*0 + sigmoid(0)*tanh(0) = 0,  h_pad' = sigmoid(0)*tanh(0) = 0
        i = jax.nn.sigmoid(z[:, 0 * HP:1 * HP])
        f = jax.nn.sigmoid(z[:, 1 * HP:2 * HP])
        g = jnp.tanh(z[:, 2 * HP:3 * HP])
        o = jax.nn.sigmoid(z[:, 3 * HP:4 * HP])
        c_new = f * c + i * g
        h_new = o * jnp.tanh(c_new)
        return h_new, c_new

    h_st = [h0_ref[l] for l in range(NUM_LAYERS)]
    c_st = [c0_ref[l] for l in range(NUM_LAYERS)]
    in1 = None   # layer-0 hidden produced at the previous wavefront step
    in2 = None   # layer-1 hidden produced at the previous wavefront step

    # TODO(synk): nn.LSTM applies dropout(p=0.1) between layers only in
    # training mode; eval-mode (identity) semantics are implemented here.

    # Wavefront recurrence: statically unrolled so the LLO scheduler can
    # interleave the three independent per-step chains.
    for s in range(T + NUM_LAYERS - 1):
        if s < T:                                    # layer 0 at time s
            z0 = zx_ref[:, s, :] + jnp.dot(
                h_st[0].astype(jnp.bfloat16), whh0,
                preferred_element_type=jnp.float32)
            h0n, c0n = cell(z0, c_st[0])
        if 1 <= s <= T:                              # layer 1 at time s-1
            lhs1 = jnp.concatenate([in1, h_st[1]], axis=-1).astype(jnp.bfloat16)
            z1 = jnp.dot(lhs1, w1, preferred_element_type=jnp.float32) + b1
            h1n, c1n = cell(z1, c_st[1])
        if 2 <= s <= T + 1:                          # layer 2 at time s-2
            lhs2 = jnp.concatenate([in2, h_st[2]], axis=-1).astype(jnp.bfloat16)
            z2 = jnp.dot(lhs2, w2, preferred_element_type=jnp.float32) + b2
            h2n, c2n = cell(z2, c_st[2])
            y_ref[:, s - 2, :] = h2n                 # lane-dense (B, 128) store
        # Commit carries only after all layers consumed the old values.
        if s < T:
            h_st[0], c_st[0] = h0n, c0n
            in1 = h0n
        if 1 <= s <= T:
            h_st[1], c_st[1] = h1n, c1n
            in2 = h1n
        if 2 <= s <= T + 1:
            h_st[2], c_st[2] = h2n, c2n

    for l in range(NUM_LAYERS):
        hn_ref[l] = h_st[l]
        cn_ref[l] = c_st[l]


def prepare_params(params):
    """Repack PyTorch-layout LSTM weights into the TPU-friendly layout.

    params[l] = (w_ih (4H, in), w_hh (4H, H), b_ih (4H,), b_hh (4H,))

    Returns (wih0 (64,512) bf16, whh0 (128,512) bf16, b0 (1,512) f32,
             w1 (256,512) bf16, b1 (1,512) f32, w2 (256,512) bf16, b2 (1,512) f32)
    where gate g occupies columns [g*128, g*128+64); all padded rows/cols are
    zero so the padded-lane invariant (padded h/c lanes stay 0) holds.
    """
    def pack_cols(w):                       # (4H, K) -> (K, 4*HP), gates 128-aligned
        K = w.shape[1]
        out = jnp.zeros((K, GATES * HP), jnp.float32)
        for g in range(GATES):
            out = out.at[:, g * HP:g * HP + HIDDEN].set(
                w[g * HIDDEN:(g + 1) * HIDDEN, :].T.astype(jnp.float32))
        return out

    def pad_rows(w):                        # (64, 512) -> (128, 512), rows 64.. zero
        return jnp.zeros((HP, GATES * HP), jnp.float32).at[:HIDDEN].set(w)

    def pack_bias(b):
        out = jnp.zeros((1, GATES * HP), jnp.float32)
        for g in range(GATES):
            out = out.at[0, g * HP:g * HP + HIDDEN].set(
                b[g * HIDDEN:(g + 1) * HIDDEN].astype(jnp.float32))
        return out

    w_ih0, w_hh0, b_ih0, b_hh0 = params[0]
    wih0 = pack_cols(w_ih0).astype(jnp.bfloat16)                   # (64, 512)
    whh0 = pad_rows(pack_cols(w_hh0)).astype(jnp.bfloat16)         # (128, 512)
    b0 = pack_bias(b_ih0 + b_hh0)
    out = [wih0, whh0, b0]
    for l in (1, 2):
        w_ih, w_hh, b_ih, b_hh = params[l]
        w_cat = jnp.concatenate(
            [pad_rows(pack_cols(w_ih)), pad_rows(pack_cols(w_hh))],
            axis=0).astype(jnp.bfloat16)                           # (256, 512)
        out += [w_cat, pack_bias(b_ih + b_hh)]
    return tuple(out)


def global_pose_rnn(x, h0, c0, prepped_params):
    """Forward pass equivalent to GlobalPoseRNN.forward(x, h0, c0).

    x : (B, T, 64), h0/c0 : (3, B, 64).
    Returns (g_vec (B, T, 64), hn (3, B, 64), cn (3, B, 64)).
    """
    B, T, _ = x.shape
    pad = HP - HIDDEN
    h0_p = jnp.pad(h0.astype(jnp.float32), ((0, 0), (0, 0), (0, pad)))
    c0_p = jnp.pad(c0.astype(jnp.float32), ((0, 0), (0, 0), (0, pad)))
    wih0, whh0, b0, w1, b1, w2, b2 = prepped_params

    vmem = pl.BlockSpec(memory_space=pltpu.MemorySpace.VMEM)

    # Advisory cost estimate so XLA schedules this tiny custom call well.
    flops = (2 * B * T * HIDDEN * GATES * HP            # hoisted layer-0 proj
             + 2 * B * T * HP * GATES * HP              # layer-0 recurrent
             + 2 * 2 * B * T * (2 * HP) * GATES * HP)   # layers 1-2 fused
    transcendentals = T * NUM_LAYERS * B * (GATES * HP + HP)
    weight_bytes = sum(int(w.size) * w.dtype.itemsize
                       for w in (wih0, whh0, b0, w1, b1, w2, b2))
    bytes_accessed = (int(x.size) * 4 + weight_bytes
                      + 2 * NUM_LAYERS * B * HP * 4
                      + (B * T * HP + 2 * NUM_LAYERS * B * HP) * 4)

    # Single fused pallas_call; total VMEM footprint ~1 MiB (fits every gen).
    # TODO(synk): for large B on v7x, add a batch grid axis with
    # dimension_semantics=("parallel",) so both TensorCores split the batch.
    y, hn, cn = pl.pallas_call(
        _rnn3_wavefront_kernel,
        out_shape=(
            jax.ShapeDtypeStruct((B, T, HP), jnp.float32),
            jax.ShapeDtypeStruct((NUM_LAYERS, B, HP), jnp.float32),
            jax.ShapeDtypeStruct((NUM_LAYERS, B, HP), jnp.float32),
        ),
        in_specs=[vmem] * 10,
        out_specs=(vmem, vmem, vmem),
        scratch_shapes=[pltpu.VMEM((B, T, GATES * HP), jnp.float32)],
        cost_estimate=pl.CostEstimate(flops=flops,
                                      transcendentals=transcendentals,
                                      bytes_accessed=bytes_accessed),
    )(x.astype(jnp.float32), wih0, whh0, b0, w1, b1, w2, b2, h0_p, c0_p)

    # Only a cheap lane slice on the wrapper side (no transposes).
    return y[:, :, :HIDDEN], hn[:, :, :HIDDEN], cn[:, :, :HIDDEN]


def init_lstm_params(key, input_size=HIDDEN, hidden_size=HIDDEN,
                     num_layers=NUM_LAYERS):
    """PyTorch-style uniform(-1/sqrt(H), 1/sqrt(H)) init, deterministic."""
    k = 1.0 / jnp.sqrt(jnp.float32(hidden_size))
    params = []
    for l in range(num_layers):
        in_sz = input_size if l == 0 else hidden_size
        key, k1, k2, k3, k4 = jax.random.split(key, 5)
        w_ih = jax.random.uniform(k1, (4 * hidden_size, in_sz),
                                  minval=-k, maxval=k, dtype=jnp.float32)
        w_hh = jax.random.uniform(k2, (4 * hidden_size, hidden_size),
                                  minval=-k, maxval=k, dtype=jnp.float32)
        b_ih = jax.random.uniform(k3, (4 * hidden_size,),
                                  minval=-k, maxval=k, dtype=jnp.float32)
        b_hh = jax.random.uniform(k4, (4 * hidden_size,),
                                  minval=-k, maxval=k, dtype=jnp.float32)
        params.append((w_ih, w_hh, b_ih, b_hh))
    return params


def lstm_reference(x, h0, c0, params):
    """Pure-JAX f32 reference matching PyTorch nn.LSTM eval-mode semantics."""
    B, T, H = x.shape
    layer_in = x
    hs, cs = [], []
    for l in range(NUM_LAYERS):
        w_ih, w_hh, b_ih, b_hh = params[l]
        h, c = h0[l], c0[l]
        outs = []
        for t in range(T):
            z = layer_in[:, t, :] @ w_ih.T + b_ih + h @ w_hh.T + b_hh
            i = jax.nn.sigmoid(z[:, 0:H])
            f = jax.nn.sigmoid(z[:, H:2 * H])
            g = jnp.tanh(z[:, 2 * H:3 * H])
            o = jax.nn.sigmoid(z[:, 3 * H:4 * H])
            c = f * c + i * g
            h = o * jnp.tanh(c)
            outs.append(h)
        layer_in = jnp.stack(outs, axis=1)
        hs.append(h)
        cs.append(c)
    return layer_in, jnp.stack(hs, axis=0), jnp.stack(cs, axis=0)


if __name__ == "__main__":
    key = jax.random.PRNGKey(0)
    k_params, k_x, k_h, k_c = jax.random.split(key, 4)

    B, T, H = 2, 8, HIDDEN
    params = init_lstm_params(k_params)
    prepped = prepare_params(params)

    x = jax.random.normal(k_x, (B, T, H), dtype=jnp.float32)
    h0 = jax.random.normal(k_h, (NUM_LAYERS, B, H), dtype=jnp.float32)
    c0 = jax.random.normal(k_c, (NUM_LAYERS, B, H), dtype=jnp.float32)

    fwd = jax.jit(lambda x, h0, c0: global_pose_rnn(x, h0, c0, prepped))
    g_vec, hn, cn = fwd(x, h0, c0)
    jax.block_until_ready((g_vec, hn, cn))

    assert g_vec.shape == (B, T, H)
    assert hn.shape == (NUM_LAYERS, B, H)
    assert cn.shape == (NUM_LAYERS, B, H)

    # Correctness check against a pure-JAX f32 reference.  Tolerance is
    # loosened vs. the f32 version because matmul operands are bf16 (MXU
    # native); observed error is well inside this bound.
    g_ref, hn_ref, cn_ref = lstm_reference(x, h0, c0, params)
    assert jnp.allclose(g_vec, g_ref, atol=2e-2, rtol=2e-2)
    assert jnp.allclose(hn, hn_ref, atol=2e-2, rtol=2e-2)
    assert jnp.allclose(cn, cn_ref, atol=2e-2, rtol=2e-2)

    print("KERNEL_OK")
</pallas_src>

<mosaic_0001>
module attributes {stable_mosaic.version = 11 : i64} {
  func.func @_rnn3_wavefront_kernel(%arg0: memref<2x8x64xf32, #tpu.memory_space<vmem>>, %arg1: memref<64x512xbf16, #tpu.memory_space<vmem>>, %arg2: memref<128x512xbf16, #tpu.memory_space<vmem>>, %arg3: memref<1x512xf32, #tpu.memory_space<vmem>>, %arg4: memref<256x512xbf16, #tpu.memory_space<vmem>>, %arg5: memref<1x512xf32, #tpu.memory_space<vmem>>, %arg6: memref<256x512xbf16, #tpu.memory_space<vmem>>, %arg7: memref<1x512xf32, #tpu.memory_space<vmem>>, %arg8: memref<3x2x128xf32, #tpu.memory_space<vmem>>, %arg9: memref<3x2x128xf32, #tpu.memory_space<vmem>>, %arg10: memref<2x8x128xf32, #tpu.memory_space<vmem>>, %arg11: memref<3x2x128xf32, #tpu.memory_space<vmem>>, %arg12: memref<3x2x128xf32, #tpu.memory_space<vmem>>, %arg13: memref<2x8x512xf32, #tpu.memory_space<vmem>>) attributes {dimension_semantics = [], scalar_prefetch = 0 : i64, scratch_operands = 1 : i64, tpu.core_type = #tpu.core_type<tc>} {
    %c0 = arith.constant 0 : index
    %c0_0 = arith.constant 0 : index
    %c0_1 = arith.constant 0 : index
    %0 = vector.load %arg0[%c0, %c0_0, %c0_1] : memref<2x8x64xf32, #tpu.memory_space<vmem>>, vector<2x8x64xf32>
    %1 = vector.shape_cast %0 : vector<2x8x64xf32> to vector<16x64xf32>
    %2 = arith.truncf %1 : vector<16x64xf32> to vector<16x64xbf16>
    %c0_2 = arith.constant 0 : index
    %c0_3 = arith.constant 0 : index
    %3 = vector.load %arg1[%c0_2, %c0_3] : memref<64x512xbf16, #tpu.memory_space<vmem>>, vector<64x512xbf16>
    %cst = arith.constant dense<0.000000e+00> : vector<16x512xf32>
    %4 = tpu.matmul %2, %3, %cst {dimension_numbers = #tpu.dot_dimension_numbers<[1], [0], [0], [1], [0, 0, 1, 1], [], []>} : vector<16x64xbf16>, vector<64x512xbf16>, vector<16x512xf32> -> vector<16x512xf32>
    %c0_4 = arith.constant 0 : index
    %c0_5 = arith.constant 0 : index
    %5 = vector.load %arg3[%c0_4, %c0_5] : memref<1x512xf32, #tpu.memory_space<vmem>>, vector<1x512xf32>
    %6 = vector.broadcast %5 : vector<1x512xf32> to vector<16x512xf32>
    %7 = arith.addf %4, %6 : vector<16x512xf32>
    %8 = vector.shape_cast %7 : vector<16x512xf32> to vector<2x8x512xf32>
    %c0_6 = arith.constant 0 : index
    %c0_7 = arith.constant 0 : index
    %c0_8 = arith.constant 0 : index
    %9 = vector.load %arg13[%c0_6, %c0_7, %c0_8] : memref<2x8x512xf32, #tpu.memory_space<vmem>>, vector<2x8x512xf32>
    tpu.vector_store %arg13[%c0_6, %c0_7, %c0_8], %8 {strides = array<i32>} : memref<2x8x512xf32, #tpu.memory_space<vmem>>, vector<2x8x512xf32>,
    %c0_9 = arith.constant 0 : index
    %c0_10 = arith.constant 0 : index
    %10 = vector.load %arg2[%c0_9, %c0_10] : memref<128x512xbf16, #tpu.memory_space<vmem>>, vector<128x512xbf16>
    %c0_11 = arith.constant 0 : index
    %c0_12 = arith.constant 0 : index
    %11 = vector.load %arg4[%c0_11, %c0_12] : memref<256x512xbf16, #tpu.memory_space<vmem>>, vector<256x512xbf16>
    %c0_13 = arith.constant 0 : index
    %c0_14 = arith.constant 0 : index
    %12 = vector.load %arg6[%c0_13, %c0_14] : memref<256x512xbf16, #tpu.memory_space<vmem>>, vector<256x512xbf16>
    %c0_15 = arith.constant 0 : index
    %c0_16 = arith.constant 0 : index
    %13 = vector.load %arg5[%c0_15, %c0_16] : memref<1x512xf32, #tpu.memory_space<vmem>>, vector<1x512xf32>
    %c0_17 = arith.constant 0 : index
    %c0_18 = arith.constant 0 : index
    %14 = vector.load %arg7[%c0_17, %c0_18] : memref<1x512xf32, #tpu.memory_space<vmem>>, vector<1x512xf32>
    %c0_19 = arith.constant 0 : index
    %c0_20 = arith.constant 0 : index
    %c0_21 = arith.constant 0 : index
    %15 = vector.load %arg8[%c0_19, %c0_20, %c0_21] : memref<3x2x128xf32, #tpu.memory_space<vmem>>, vector<1x2x128xf32>
    %16 = vector.shape_cast %15 : vector<1x2x128xf32> to vector<2x128xf32>
    %c1 = arith.constant 1 : index
    %c0_22 = arith.constant 0 : index
    %c0_23 = arith.constant 0 : index
    %17 = vector.load %arg8[%c1, %c0_22, %c0_23] : memref<3x2x128xf32, #tpu.memory_space<vmem>>, vector<1x2x128xf32>
    %18 = vector.shape_cast %17 : vector<1x2x128xf32> to vector<2x128xf32>
    %c2 = arith.constant 2 : index
    %c0_24 = arith.constant 0 : index
    %c0_25 = arith.constant 0 : index
    %19 = vector.load %arg8[%c2, %c0_24, %c0_25] : memref<3x2x128xf32, #tpu.memory_space<vmem>>, vector<1x2x128xf32>
    %20 = vector.shape_cast %19 : vector<1x2x128xf32> to vector<2x128xf32>
    %c0_26 = arith.constant 0 : index
    %c0_27 = arith.constant 0 : index
    %c0_28 = arith.constant 0 : index
    %21 = vector.load %arg9[%c0_26, %c0_27, %c0_28] : memref<3x2x128xf32, #tpu.memory_space<vmem>>, vector<1x2x128xf32>
    %22 = vector.shape_cast %21 : vector<1x2x128xf32> to vector<2x128xf32>
    %c1_29 = arith.constant 1 : index
    %c0_30 = arith.constant 0 : index
    %c0_31 = arith.constant 0 : index
    %23 = vector.load %arg9[%c1_29, %c0_30, %c0_31] : memref<3x2x128xf32, #tpu.memory_space<vmem>>, vector<1x2x128xf32>
    %24 = vector.shape_cast %23 : vector<1x2x128xf32> to vector<2x128xf32>
    %c2_32 = arith.constant 2 : index
    %c0_33 = arith.constant 0 : index
    %c0_34 = arith.constant 0 : index
    %25 = vector.load %arg9[%c2_32, %c0_33, %c0_34] : memref<3x2x128xf32, #tpu.memory_space<vmem>>, vector<1x2x128xf32>
    %26 = vector.shape_cast %25 : vector<1x2x128xf32> to vector<2x128xf32>
    %c0_35 = arith.constant 0 : index
    %c0_36 = arith.constant 0 : index
    %c0_37 = arith.constant 0 : index
    %27 = vector.load %arg13[%c0_35, %c0_36, %c0_37] : memref<2x8x512xf32, #tpu.memory_space<vmem>>, vector<2x1x512xf32>
    %28 = vector.shape_cast %27 : vector<2x1x512xf32> to vector<2x512xf32>
    %29 = arith.truncf %16 : vector<2x128xf32> to vector<2x128xbf16>
    %cst_38 = arith.constant dense<0.000000e+00> : vector<2x512xf32>
    %30 = tpu.matmul %29, %10, %cst_38 {dimension_numbers = #tpu.dot_dimension_numbers<[1], [0], [0], [1], [0, 0, 1, 1], [], []>} : vector<2x128xbf16>, vector<128x512xbf16>, vector<2x512xf32> -> vector<2x512xf32>
    %31 = arith.addf %28, %30 : vector<2x512xf32>
    %32 = vector.extract_strided_slice %31 {offsets = [0, 0], sizes = [2, 128], strides = [1, 1]} : vector<2x512xf32> to vector<2x128xf32>
    %33 = arith.negf %32 : vector<2x128xf32>
    %34 = math.exp %33 : vector<2x128xf32>
    %cst_39 = arith.constant 1.000000e+00 : f32
    %35 = vector.broadcast %cst_39 : f32 to vector<2x128xf32>
    %36 = arith.addf %35, %34 : vector<2x128xf32>
    %37 = arith.divf %35, %36 : vector<2x128xf32>
    %38 = vector.extract_strided_slice %31 {offsets = [0, 128], sizes = [2, 128], strides = [1, 1]} : vector<2x512xf32> to vector<2x128xf32>
    %39 = arith.negf %38 : vector<2x128xf32>
    %40 = math.exp %39 : vector<2x128xf32>
    %cst_40 = arith.constant 1.000000e+00 : f32
    %41 = vector.broadcast %cst_40 : f32 to vector<2x128xf32>
    %42 = arith.addf %41, %40 : vector<2x128xf32>
    %43 = arith.divf %41, %42 : vector<2x128xf32>
    %44 = vector.extract_strided_slice %31 {offsets = [0, 256], sizes = [2, 128], strides = [1, 1]} : vector<2x512xf32> to vector<2x128xf32>
    %45 = math.tanh %44 : vector<2x128xf32>
    %46 = vector.extract_strided_slice %31 {offsets = [0, 384], sizes = [2, 128], strides = [1, 1]} : vector<2x512xf32> to vector<2x128xf32>
    %47 = arith.negf %46 : vector<2x128xf32>
    %48 = math.exp %47 : vector<2x128xf32>
    %cst_41 = arith.constant 1.000000e+00 : f32
    %49 = vector.broadcast %cst_41 : f32 to vector<2x128xf32>
    %50 = arith.addf %49, %48 : vector<2x128xf32>
    %51 = arith.divf %49, %50 : vector<2x128xf32>
    %52 = arith.mulf %43, %22 : vector<2x128xf32>
    %53 = arith.mulf %37, %45 : vector<2x128xf32>
    %54 = arith.addf %52, %53 : vector<2x128xf32>
    %55 = math.tanh %54 : vector<2x128xf32>
    %56 = arith.mulf %51, %55 : vector<2x128xf32>
    %c0_42 = arith.constant 0 : index
    %c1_43 = arith.constant 1 : index
    %c0_44 = arith.constant 0 : index
    %57 = vector.load %arg13[%c0_42, %c1_43, %c0_44] : memref<2x8x512xf32, #tpu.memory_space<vmem>>, vector<2x1x512xf32>
    %58 = vector.shape_cast %57 : vector<2x1x512xf32> to vector<2x512xf32>
    %59 = arith.truncf %56 : vector<2x128xf32> to vector<2x128xbf16>
    %cst_45 = arith.constant dense<0.000000e+00> : vector<2x512xf32>
    %60 = tpu.matmul %59, %10, %cst_45 {dimension_numbers = #tpu.dot_dimension_numbers<[1], [0], [0], [1], [0, 0, 1, 1], [], []>} : vector<2x128xbf16>, vector<128x512xbf16>, vector<2x512xf32> -> vector<2x512xf32>
    %61 = arith.addf %58, %60 : vector<2x512xf32>
    %62 = vector.extract_strided_slice %61 {offsets = [0, 0], sizes = [2, 128], strides = [1, 1]} : vector<2x512xf32> to vector<2x128xf32>
    %63 = arith.negf %62 : vector<2x128xf32>
    %64 = math.exp %63 : vector<2x128xf32>
    %cst_46 = arith.constant 1.000000e+00 : f32
    %65 = vector.broadcast %cst_46 : f32 to vector<2x128xf32>
    %66 = arith.addf %65, %64 : vector<2x128xf32>
    %67 = arith.divf %65, %66 : vector<2x128xf32>
    %68 = vector.extract_strided_slice %61 {offsets = [0, 128], sizes = [2, 128], strides = [1, 1]} : vector<2x512xf32> to vector<2x128xf32>
    %69 = arith.negf %68 : vector<2x128xf32>
    %70 = math.exp %69 : vector<2x128xf32>
    %cst_47 = arith.constant 1.000000e+00 : f32
    %71 = vector.broadcast %cst_47 : f32 to vector<2x128xf32>
    %72 = arith.addf %71, %70 : vector<2x128xf32>
    %73 = arith.divf %71, %72 : vector<2x128xf32>
    %74 = vector.extract_strided_slice %61 {offsets = [0, 256], sizes = [2, 128], strides = [1, 1]} : vector<2x512xf32> to vector<2x128xf32>
    %75 = math.tanh %74 : vector<2x128xf32>
    %76 = vector.extract_strided_slice %61 {offsets = [0, 384], sizes = [2, 128], strides = [1, 1]} : vector<2x512xf32> to vector<2x128xf32>
    %77 = arith.negf %76 : vector<2x128xf32>
    %78 = math.exp %77 : vector<2x128xf32>
    %cst_48 = arith.constant 1.000000e+00 : f32
    %79 = vector.broadcast %cst_48 : f32 to vector<2x128xf32>
    %80 = arith.addf %79, %78 : vector<2x128xf32>
    %81 = arith.divf %79, %80 : vector<2x128xf32>
    %82 = arith.mulf %73, %54 : vector<2x128xf32>
    %83 = arith.mulf %67, %75 : vector<2x128xf32>
    %84 = arith.addf %82, %83 : vector<2x128xf32>
    %85 = math.tanh %84 : vector<2x128xf32>
    %86 = arith.mulf %81, %85 : vector<2x128xf32>
    %87 = tpu.concatenate %56, %18 in 1 : vector<2x128xf32>, vector<2x128xf32> -> vector<2x256xf32>
    %88 = arith.truncf %87 : vector<2x256xf32> to vector<2x256xbf16>
    %cst_49 = arith.constant dense<0.000000e+00> : vector<2x512xf32>
    %89 = tpu.matmul %88, %11, %cst_49 {dimension_numbers = #tpu.dot_dimension_numbers<[1], [0], [0], [1], [0, 0, 1, 1], [], []>} : vector<2x256xbf16>, vector<256x512xbf16>, vector<2x512xf32> -> vector<2x512xf32>
    %90 = vector.broadcast %13 : vector<1x512xf32> to vector<2x512xf32>
    %91 = arith.addf %89, %90 : vector<2x512xf32>
    %92 = vector.extract_strided_slice %91 {offsets = [0, 0], sizes = [2, 128], strides = [1, 1]} : vector<2x512xf32> to vector<2x128xf32>
    %93 = arith.negf %92 : vector<2x128xf32>
    %94 = math.exp %93 : vector<2x128xf32>
    %cst_50 = arith.constant 1.000000e+00 : f32
    %95 = vector.broadcast %cst_50 : f32 to vector<2x128xf32>
    %96 = arith.addf %95, %94 : vector<2x128xf32>
    %97 = arith.divf %95, %96 : vector<2x128xf32>
    %98 = vector.extract_strided_slice %91 {offsets = [0, 128], sizes = [2, 128], strides = [1, 1]} : vector<2x512xf32> to vector<2x128xf32>
    %99 = arith.negf %98 : vector<2x128xf32>
    %100 = math.exp %99 : vector<2x128xf32>
    %cst_51 = arith.constant 1.000000e+00 : f32
    %101 = vector.broadcast %cst_51 : f32 to vector<2x128xf32>
    %102 = arith.addf %101, %100 : vector<2x128xf32>
    %103 = arith.divf %101, %102 : vector<2x128xf32>
    %104 = vector.extract_strided_slice %91 {offsets = [0, 256], sizes = [2, 128], strides = [1, 1]} : vector<2x512xf32> to vector<2x128xf32>
    %105 = math.tanh %104 : vector<2x128xf32>
    %106 = vector.extract_strided_slice %91 {offsets = [0, 384], sizes = [2, 128], strides = [1, 1]} : vector<2x512xf32> to vector<2x128xf32>
    %107 = arith.negf %106 : vector<2x128xf32>
    %108 = math.exp %107 : vector<2x128xf32>
    %cst_52 = arith.constant 1.000000e+00 : f32
    %109 = vector.broadcast %cst_52 : f32 to vector<2x128xf32>
    %110 = arith.addf %109, %108 : vector<2x128xf32>
    %111 = arith.divf %109, %110 : vector<2x128xf32>
    %112 = arith.mulf %103, %24 : vector<2x128xf32>
    %113 = arith.mulf %97, %105 : vector<2x128xf32>
    %114 = arith.addf %112, %113 : vector<2x128xf32>
    %115 = math.tanh %114 : vector<2x128xf32>
    %116 = arith.mulf %111, %115 : vector<2x128xf32>
    %c0_53 = arith.constant 0 : index
    %c2_54 = arith.constant 2 : index
    %c0_55 = arith.constant 0 : index
    %117 = vector.load %arg13[%c0_53, %c2_54, %c0_55] : memref<2x8x512xf32, #tpu.memory_space<vmem>>, vector<2x1x512xf32>
    %118 = vector.shape_cast %117 : vector<2x1x512xf32> to vector<2x512xf32>
    %119 = arith.truncf %86 : vector<2x128xf32> to vector<2x128xbf16>
    %cst_56 = arith.constant dense<0.000000e+00> : vector<2x512xf32>
    %120 = tpu.matmul %119, %10, %cst_56 {dimension_numbers = #tpu.dot_dimension_numbers<[1], [0], [0], [1], [0, 0, 1, 1], [], []>} : vector<2x128xbf16>, vector<128x512xbf16>, vector<2x512xf32> -> vector<2x512xf32>
    %121 = arith.addf %118, %120 : vector<2x512xf32>
    %122 = vector.extract_strided_slice %121 {offsets = [0, 0], sizes = [2, 128], strides = [1, 1]} : vector<2x512xf32> to vector<2x128xf32>
    %123 = arith.negf %122 : vector<2x128xf32>
    %124 = math.exp %123 : vector<2x128xf32>
    %cst_57 = arith.constant 1.000000e+00 : f32
    %125 = vector.broadcast %cst_57 : f32 to vector<2x128xf32>
    %126 = arith.addf %125, %124 : vector<2x128xf32>
    %127 = arith.divf %125, %126 : vector<2x128xf32>
    %128 = vector.extract_strided_slice %121 {offsets = [0, 128], sizes = [2, 128], strides = [1, 1]} : vector<2x512xf32> to vector<2x128xf32>
    %129 = arith.negf %128 : vector<2x128xf32>
    %130 = math.exp %129 : vector<2x128xf32>
    %cst_58 = arith.constant 1.000000e+00 : f32
    %131 = vector.broadcast %cst_58 : f32 to vector<2x128xf32>
    %132 = arith.addf %131, %130 : vector<2x128xf32>
    %133 = arith.divf %131, %132 : vector<2x128xf32>
    %134 = vector.extract_strided_slice %121 {offsets = [0, 256], sizes = [2, 128], strides = [1, 1]} : vector<2x512xf32> to vector<2x128xf32>
    %135 = math.tanh %134 : vector<2x128xf32>
    %136 = vector.extract_strided_slice %121 {offsets = [0, 384], sizes = [2, 128], strides = [1, 1]} : vector<2x512xf32> to vector<2x128xf32>
    %137 = arith.negf %136 : vector<2x128xf32>
    %138 = math.exp %137 : vector<2x128xf32>
    %cst_59 = arith.constant 1.000000e+00 : f32
    %139 = vector.broadcast %cst_59 : f32 to vector<2x128xf32>
    %140 = arith.addf %139, %138 : vector<2x128xf32>
    %141 = arith.divf %139, %140 : vector<2x128xf32>
    %142 = arith.mulf %133, %84 : vector<2x128xf32>
    %143 = arith.mulf %127, %135 : vector<2x128xf32>
    %144 = arith.addf %142, %143 : vector<2x128xf32>
    %145 = math.tanh %144 : vector<2x128xf32>
    %146 = arith.mulf %141, %145 : vector<2x128xf32>
    %147 = tpu.concatenate %86, %116 in 1 : vector<2x128xf32>, vector<2x128xf32> -> vector<2x256xf32>
    %148 = arith.truncf %147 : vector<2x256xf32> to vector<2x256xbf16>
    %cst_60 = arith.constant dense<0.000000e+00> : vector<2x512xf32>
    %149 = tpu.matmul %148, %11, %cst_60 {dimension_numbers = #tpu.dot_dimension_numbers<[1], [0], [0], [1], [0, 0, 1, 1], [], []>} : vector<2x256xbf16>, vector<256x512xbf16>, vector<2x512xf32> -> vector<2x512xf32>
    %150 = vector.broadcast %13 : vector<1x512xf32> to vector<2x512xf32>
    %151 = arith.addf %149, %150 : vector<2x512xf32>
    %152 = vector.extract_strided_slice %151 {offsets = [0, 0], sizes = [2, 128], strides = [1, 1]} : vector<2x512xf32> to vector<2x128xf32>
    %153 = arith.negf %152 : vector<2x128xf32>
    %154 = math.exp %153 : vector<2x128xf32>
    %cst_61 = arith.constant 1.000000e+00 : f32
    %155 = vector.broadcast %cst_61 : f32 to vector<2x128xf32>
    %156 = arith.addf %155, %154 : vector<2x128xf32>
    %157 = arith.divf %155, %156 : vector<2x128xf32>
    %158 = vector.extract_strided_slice %151 {offsets = [0, 128], sizes = [2, 128], strides = [1, 1]} : vector<2x512xf32> to vector<2x128xf32>
    %159 = arith.negf %158 : vector<2x128xf32>
    %160 = math.exp %159 : vector<2x128xf32>
    %cst_62 = arith.constant 1.000000e+00 : f32
    %161 = vector.broadcast %cst_62 : f32 to vector<2x128xf32>
    %162 = arith.addf %161, %160 : vector<2x128xf32>
    %163 = arith.divf %161, %162 : vector<2x128xf32>
    %164 = vector.extract_strided_slice %151 {offsets = [0, 256], sizes = [2, 128], strides = [1, 1]} : vector<2x512xf32> to vector<2x128xf32>
    %165 = math.tanh %164 : vector<2x128xf32>
    %166 = vector.extract_strided_slice %151 {offsets = [0, 384], sizes = [2, 128], strides = [1, 1]} : vector<2x512xf32> to vector<2x128xf32>
    %167 = arith.negf %166 : vector<2x128xf32>
    %168 = math.exp %167 : vector<2x128xf32>
    %cst_63 = arith.constant 1.000000e+00 : f32
    %169 = vector.broadcast %cst_63 : f32 to vector<2x128xf32>
    %170 = arith.addf %169, %168 : vector<2x128xf32>
    %171 = arith.divf %169, %170 : vector<2x128xf32>
    %172 = arith.mulf %163, %114 : vector<2x128xf32>
    %173 = arith.mulf %157, %165 : vector<2x128xf32>
    %174 = arith.addf %172, %173 : vector<2x128xf32>
    %175 = math.tanh %174 : vector<2x128xf32>
    %176 = arith.mulf %171, %175 : vector<2x128xf32>
    %177 = tpu.concatenate %116, %20 in 1 : vector<2x128xf32>, vector<2x128xf32> -> vector<2x256xf32>
    %178 = arith.truncf %177 : vector<2x256xf32> to vector<2x256xbf16>
    %cst_64 = arith.constant dense<0.000000e+00> : vector<2x512xf32>
    %179 = tpu.matmul %178, %12, %cst_64 {dimension_numbers = #tpu.dot_dimension_numbers<[1], [0], [0], [1], [0, 0, 1, 1], [], []>} : vector<2x256xbf16>, vector<256x512xbf16>, vector<2x512xf32> -> vector<2x512xf32>
    %180 = vector.broadcast %14 : vector<1x512xf32> to vector<2x512xf32>
    %181 = arith.addf %179, %180 : vector<2x512xf32>
    %182 = vector.extract_strided_slice %181 {offsets = [0, 0], sizes = [2, 128], strides = [1, 1]} : vector<2x512xf32> to vector<2x128xf32>
    %183 = arith.negf %182 : vector<2x128xf32>
    %184 = math.exp %183 : vector<2x128xf32>
    %cst_65 = arith.constant 1.000000e+00 : f32
    %185 = vector.broadcast %cst_65 : f32 to vector<2x128xf32>
    %186 = arith.addf %185, %184 : vector<2x128xf32>
    %187 = arith.divf %185, %186 : vector<2x128xf32>
    %188 = vector.extract_strided_slice %181 {offsets = [0, 128], sizes = [2, 128], strides = [1, 1]} : vector<2x512xf32> to vector<2x128xf32>
    %189 = arith.negf %188 : vector<2x128xf32>
    %190 = math.exp %189 : vector<2x128xf32>
    %cst_66 = arith.constant 1.000000e+00 : f32
    %191 = vector.broadcast %cst_66 : f32 to vector<2x128xf32>
    %192 = arith.addf %191, %190 : vector<2x128xf32>
    %193 = arith.divf %191, %192 : vector<2x128xf32>
    %194 = vector.extract_strided_slice %181 {offsets = [0, 256], sizes = [2, 128], strides = [1, 1]} : vector<2x512xf32> to vector<2x128xf32>
    %195 = math.tanh %194 : vector<2x128xf32>
    %196 = vector.extract_strided_slice %181 {offsets = [0, 384], sizes = [2, 128], strides = [1, 1]} : vector<2x512xf32> to vector<2x128xf32>
    %197 = arith.negf %196 : vector<2x128xf32>
    %198 = math.exp %197 : vector<2x128xf32>
    %cst_67 = arith.constant 1.000000e+00 : f32
    %199 = vector.broadcast %cst_67 : f32 to vector<2x128xf32>
    %200 = arith.addf %199, %198 : vector<2x128xf32>
    %201 = arith.divf %199, %200 : vector<2x128xf32>
    %202 = arith.mulf %193, %26 : vector<2x128xf32>
    %203 = arith.mulf %187, %195 : vector<2x128xf32>
    %204 = arith.addf %202, %203 : vector<2x128xf32>
    %205 = math.tanh %204 : vector<2x128xf32>
    %206 = arith.mulf %201, %205 : vector<2x128xf32>
    %c0_68 = arith.constant 0 : index
    %c0_69 = arith.constant 0 : index
    %c0_70 = arith.constant 0 : index
    %207 = vector.load %arg10[%c0_68, %c0_69, %c0_70] : memref<2x8x128xf32, #tpu.memory_space<vmem>>, vector<2x1x128xf32>
    %208 = vector.shape_cast %207 : vector<2x1x128xf32> to vector<2x128xf32>
    %209 = vector.shape_cast %206 : vector<2x128xf32> to vector<2x1x128xf32>
    tpu.vector_store %arg10[%c0_68, %c0_69, %c0_70], %209 {strides = array<i32>} : memref<2x8x128xf32, #tpu.memory_space<vmem>>, vector<2x1x128xf32>,
    %c0_71 = arith.constant 0 : index
    %c3 = arith.constant 3 : index
    %c0_72 = arith.constant 0 : index
    %210 = vector.load %arg13[%c0_71, %c3, %c0_72] : memref<2x8x512xf32, #tpu.memory_space<vmem>>, vector<2x1x512xf32>
    %211 = vector.shape_cast %210 : vector<2x1x512xf32> to vector<2x512xf32>
    %212 = arith.truncf %146 : vector<2x128xf32> to vector<2x128xbf16>
    %cst_73 = arith.constant dense<0.000000e+00> : vector<2x512xf32>
    %213 = tpu.matmul %212, %10, %cst_73 {dimension_numbers = #tpu.dot_dimension_numbers<[1], [0], [0], [1], [0, 0, 1, 1], [], []>} : vector<2x128xbf16>, vector<128x512xbf16>, vector<2x512xf32> -> vector<2x512xf32>
    %214 = arith.addf %211, %213 : vector<2x512xf32>
    %215 = vector.extract_strided_slice %214 {offsets = [0, 0], sizes = [2, 128], strides = [1, 1]} : vector<2x512xf32> to vector<2x128xf32>
    %216 = arith.negf %215 : vector<2x128xf32>
    %217 = math.exp %216 : vector<2x128xf32>
    %cst_74 = arith.constant 1.000000e+00 : f32
    %218 = vector.broadcast %cst_74 : f32 to vector<2x128xf32>
    %219 = arith.addf %218, %217 : vector<2x128xf32>
    %220 = arith.divf %218, %219 : vector<2x128xf32>
    %221 = vector.extract_strided_slice %214 {offsets = [0, 128], sizes = [2, 128], strides = [1, 1]} : vector<2x512xf32> to vector<2x128xf32>
    %222 = arith.negf %221 : vector<2x128xf32>
    %223 = math.exp %222 : vector<2x128xf32>
    %cst_75 = arith.constant 1.000000e+00 : f32
    %224 = vector.broadcast %cst_75 : f32 to vector<2x128xf32>
    %225 = arith.addf %224, %223 : vector<2x128xf32>
    %226 = arith.divf %224, %225 : vector<2x128xf32>
    %227 = vector.extract_strided_slice %214 {offsets = [0, 256], sizes = [2, 128], strides = [1, 1]} : vector<2x512xf32> to vector<2x128xf32>
    %228 = math.tanh %227 : vector<2x128xf32>
    %229 = vector.extract_strided_slice %214 {offsets = [0, 384], sizes = [2, 128], strides = [1, 1]} : vector<2x512xf32> to vector<2x128xf32>
    %230 = arith.negf %229 : vector<2x128xf32>
    %231 = math.exp %230 : vector<2x128xf32>
    %cst_76 = arith.constant 1.000000e+00 : f32
    %232 = vector.broadcast %cst_76 : f32 to vector<2x128xf32>
    %233 = arith.addf %232, %231 : vector<2x128xf32>
    %234 = arith.divf %232, %233 : vector<2x128xf32>
    %235 = arith.mulf %226, %144 : vector<2x128xf32>
    %236 = arith.mulf %220, %228 : vector<2x128xf32>
    %237 = arith.addf %235, %236 : vector<2x128xf32>
    %238 = math.tanh %237 : vector<2x128xf32>
    %239 = arith.mulf %234, %238 : vector<2x128xf32>
    %240 = tpu.concatenate %146, %176 in 1 : vector<2x128xf32>, vector<2x128xf32> -> vector<2x256xf32>
    %241 = arith.truncf %240 : vector<2x256xf32> to vector<2x256xbf16>
    %cst_77 = arith.constant dense<0.000000e+00> : vector<2x512xf32>
    %242 = tpu.matmul %241, %11, %cst_77 {dimension_numbers = #tpu.dot_dimension_numbers<[1], [0], [0], [1], [0, 0, 1, 1], [], []>} : vector<2x256xbf16>, vector<256x512xbf16>, vector<2x512xf32> -> vector<2x512xf32>
    %243 = vector.broadcast %13 : vector<1x512xf32> to vector<2x512xf32>
    %244 = arith.addf %242, %243 : vector<2x512xf32>
    %245 = vector.extract_strided_slice %244 {offsets = [0, 0], sizes = [2, 128], strides = [1, 1]} : vector<2x512xf32> to vector<2x128xf32>
    %246 = arith.negf %245 : vector<2x128xf32>
    %247 = math.exp %246 : vector<2x128xf32>
    %cst_78 = arith.constant 1.000000e+00 : f32
    %248 = vector.broadcast %cst_78 : f32 to vector<2x128xf32>
    %249 = arith.addf %248, %247 : vector<2x128xf32>
    %250 = arith.divf %248, %249 : vector<2x128xf32>
    %251 = vector.extract_strided_slice %244 {offsets = [0, 128], sizes = [2, 128], strides = [1, 1]} : vector<2x512xf32> to vector<2x128xf32>
    %252 = arith.negf %251 : vector<2x128xf32>
    %253 = math.exp %252 : vector<2x128xf32>
    %cst_79 = arith.constant 1.000000e+00 : f32
    %254 = vector.broadcast %cst_79 : f32 to vector<2x128xf32>
    %255 = arith.addf %254, %253 : vector<2x128xf32>
    %256 = arith.divf %254, %255 : vector<2x128xf32>
    %257 = vector.extract_strided_slice %244 {offsets = [0, 256], sizes = [2, 128], strides = [1, 1]} : vector<2x512xf32> to vector<2x128xf32>
    %258 = math.tanh %257 : vector<2x128xf32>
    %259 = vector.extract_strided_slice %244 {offsets = [0, 384], sizes = [2, 128], strides = [1, 1]} : vector<2x512xf32> to vector<2x128xf32>
    %260 = arith.negf %259 : vector<2x128xf32>
    %261 = math.exp %260 : vector<2x128xf32>
    %cst_80 = arith.constant 1.000000e+00 : f32
    %262 = vector.broadcast %cst_80 : f32 to vector<2x128xf32>
    %263 = arith.addf %262, %261 : vector<2x128xf32>
    %264 = arith.divf %262, %263 : vector<2x128xf32>
    %265 = arith.mulf %256, %174 : vector<2x128xf32>
    %266 = arith.mulf %250, %258 : vector<2x128xf32>
    %267 = arith.addf %265, %266 : vector<2x128xf32>
    %268 = math.tanh %267 : vector<2x128xf32>
    %269 = arith.mulf %264, %268 : vector<2x128xf32>
    %270 = tpu.concatenate %176, %206 in 1 : vector<2x128xf32>, vector<2x128xf32> -> vector<2x256xf32>
    %271 = arith.truncf %270 : vector<2x256xf32> to vector<2x256xbf16>
    %cst_81 = arith.constant dense<0.000000e+00> : vector<2x512xf32>
    %272 = tpu.matmul %271, %12, %cst_81 {dimension_numbers = #tpu.dot_dimension_numbers<[1], [0], [0], [1], [0, 0, 1, 1], [], []>} : vector<2x256xbf16>, vector<256x512xbf16>, vector<2x512xf32> -> vector<2x512xf32>
    %273 = vector.broadcast %14 : vector<1x512xf32> to vector<2x512xf32>
    %274 = arith.addf %272, %273 : vector<2x512xf32>
    %275 = vector.extract_strided_slice %274 {offsets = [0, 0], sizes = [2, 128], strides = [1, 1]} : vector<2x512xf32> to vector<2x128xf32>
    %276 = arith.negf %275 : vector<2x128xf32>
    %277 = math.exp %276 : vector<2x128xf32>
    %cst_82 = arith.constant 1.000000e+00 : f32
    %278 = vector.broadcast %cst_82 : f32 to vector<2x128xf32>
    %279 = arith.addf %278, %277 : vector<2x128xf32>
    %280 = arith.divf %278, %279 : vector<2x128xf32>
    %281 = vector.extract_strided_slice %274 {offsets = [0, 128], sizes = [2, 128], strides = [1, 1]} : vector<2x512xf32> to vector<2x128xf32>
    %282 = arith.negf %281 : vector<2x128xf32>
    %283 = math.exp %282 : vector<2x128xf32>
    %cst_83 = arith.constant 1.000000e+00 : f32
    %284 = vector.broadcast %cst_83 : f32 to vector<2x128xf32>
    %285 = arith.addf %284, %283 : vector<2x128xf32>
    %286 = arith.divf %284, %285 : vector<2x128xf32>
    %287 = vector.extract_strided_slice %274 {offsets = [0, 256], sizes = [2, 128], strides = [1, 1]} : vector<2x512xf32> to vector<2x128xf32>
    %288 = math.tanh %287 : vector<2x128xf32>
    %289 = vector.extract_strided_slice %274 {offsets = [0, 384], sizes = [2, 128], strides = [1, 1]} : vector<2x512xf32> to vector<2x128xf32>
    %290 = arith.negf %289 : vector<2x128xf32>
    %291 = math.exp %290 : vector<2x128xf32>
    %cst_84 = arith.constant 1.000000e+00 : f32
    %292 = vector.broadcast %cst_84 : f32 to vector<2x128xf32>
    %293 = arith.addf %292, %291 : vector<2x128xf32>
    %294 = arith.divf %292, %293 : vector<2x128xf32>
    %295 = arith.mulf %286, %204 : vector<2x128xf32>
    %296 = arith.mulf %280, %288 : vector<2x128xf32>
    %297 = arith.addf %295, %296 : vector<2x128xf32>
    %298 = math.tanh %297 : vector<2x128xf32>
    %299 = arith.mulf %294, %298 : vector<2x128xf32>
    %c0_85 = arith.constant 0 : index
    %c1_86 = arith.constant 1 : index
    %c0_87 = arith.constant 0 : index
    %300 = vector.load %arg10[%c0_85, %c1_86, %c0_87] : memref<2x8x128xf32, #tpu.memory_space<vmem>>, vector<2x1x128xf32>
    %301 = vector.shape_cast %300 : vector<2x1x128xf32> to vector<2x128xf32>
    %302 = vector.shape_cast %299 : vector<2x128xf32> to vector<2x1x128xf32>
    tpu.vector_store %arg10[%c0_85, %c1_86, %c0_87], %302 {strides = array<i32>} : memref<2x8x128xf32, #tpu.memory_space<vmem>>, vector<2x1x128xf32>,
    %c0_88 = arith.constant 0 : index
    %c4 = arith.constant 4 : index
    %c0_89 = arith.constant 0 : index
    %303 = vector.load %arg13[%c0_88, %c4, %c0_89] : memref<2x8x512xf32, #tpu.memory_space<vmem>>, vector<2x1x512xf32>
    %304 = vector.shape_cast %303 : vector<2x1x512xf32> to vector<2x512xf32>
    %305 = arith.truncf %239 : vector<2x128xf32> to vector<2x128xbf16>
    %cst_90 = arith.constant dense<0.000000e+00> : vector<2x512xf32>
    %306 = tpu.matmul %305, %10, %cst_90 {dimension_numbers = #tpu.dot_dimension_numbers<[1], [0], [0], [1], [0, 0, 1, 1], [], []>} : vector<2x128xbf16>, vector<128x512xbf16>, vector<2x512xf32> -> vector<2x512xf32>
    %307 = arith.addf %304, %306 : vector<2x512xf32>
    %308 = vector.extract_strided_slice %307 {offsets = [0, 0], sizes = [2, 128], strides = [1, 1]} : vector<2x512xf32> to vector<2x128xf32>
    %309 = arith.negf %308 : vector<2x128xf32>
    %310 = math.exp %309 : vector<2x128xf32>
    %cst_91 = arith.constant 1.000000e+00 : f32
    %311 = vector.broadcast %cst_91 : f32 to vector<2x128xf32>
    %312 = arith.addf %311, %310 : vector<2x128xf32>
    %313 = arith.divf %311, %312 : vector<2x128xf32>
    %314 = vector.extract_strided_slice %307 {offsets = [0, 128], sizes = [2, 128], strides = [1, 1]} : vector<2x512xf32> to vector<2x128xf32>
    %315 = arith.negf %314 : vector<2x128xf32>
    %316 = math.exp %315 : vector<2x128xf32>
    %cst_92 = arith.constant 1.000000e+00 : f32
    %317 = vector.broadcast %cst_92 : f32 to vector<2x128xf32>
    %318 = arith.addf %317, %316 : vector<2x128xf32>
    %319 = arith.divf %317, %318 : vector<2x128xf32>
    %320 = vector.extract_strided_slice %307 {offsets = [0, 256], sizes = [2, 128], strides = [1, 1]} : vector<2x512xf32> to vector<2x128xf32>
    %321 = math.tanh %320 : vector<2x128xf32>
    %322 = vector.extract_strided_slice %307 {offsets = [0, 384], sizes = [2, 128], strides = [1, 1]} : vector<2x512xf32> to vector<2x128xf32>
    %323 = arith.negf %322 : vector<2x128xf32>
    %324 = math.exp %323 : vector<2x128xf32>
    %cst_93 = arith.constant 1.000000e+00 : f32
    %325 = vector.broadcast %cst_93 : f32 to vector<2x128xf32>
    %326 = arith.addf %325, %324 : vector<2x128xf32>
    %327 = arith.divf %325, %326 : vector<2x128xf32>
    %328 = arith.mulf %319, %237 : vector<2x128xf32>
    %329 = arith.mulf %313, %321 : vector<2x128xf32>
    %330 = arith.addf %328, %329 : vector<2x128xf32>
    %331 = math.tanh %330 : vector<2x128xf32>
    %332 = arith.mulf %327, %331 : vector<2x128xf32>
    %333 = tpu.concatenate %239, %269 in 1 : vector<2x128xf32>, vector<2x128xf32> -> vector<2x256xf32>
    %334 = arith.truncf %333 : vector<2x256xf32> to vector<2x256xbf16>
    %cst_94 = arith.constant dense<0.000000e+00> : vector<2x512xf32>
    %335 = tpu.matmul %334, %11, %cst_94 {dimension_numbers = #tpu.dot_dimension_numbers<[1], [0], [0], [1], [0, 0, 1, 1], [], []>} : vector<2x256xbf16>, vector<256x512xbf16>, vector<2x512xf32> -> vector<2x512xf32>
    %336 = vector.broadcast %13 : vector<1x512xf32> to vector<2x512xf32>
    %337 = arith.addf %335, %336 : vector<2x512xf32>
    %338 = vector.extract_strided_slice %337 {offsets = [0, 0], sizes = [2, 128], strides = [1, 1]} : vector<2x512xf32> to vector<2x128xf32>
    %339 = arith.negf %338 : vector<2x128xf32>
    %340 = math.exp %339 : vector<2x128xf32>
    %cst_95 = arith.constant 1.000000e+00 : f32
    %341 = vector.broadcast %cst_95 : f32 to vector<2x128xf32>
    %342 = arith.addf %341, %340 : vector<2x128xf32>
    %343 = arith.divf %341, %342 : vector<2x128xf32>
    %344 = vector.extract_strided_slice %337 {offsets = [0, 128], sizes = [2, 128], strides = [1, 1]} : vector<2x512xf32> to vector<2x128xf32>
    %345 = arith.negf %344 : vector<2x128xf32>
    %346 = math.exp %345 : vector<2x128xf32>
    %cst_96 = arith.constant 1.000000e+00 : f32
    %347 = vector.broadcast %cst_96 : f32 to vector<2x128xf32>
    %348 = arith.addf %347, %346 : vector<2x128xf32>
    %349 = arith.divf %347, %348 : vector<2x128xf32>
    %350 = vector.extract_strided_slice %337 {offsets = [0, 256], sizes = [2, 128], strides = [1, 1]} : vector<2x512xf32> to vector<2x128xf32>
    %351 = math.tanh %350 : vector<2x128xf32>
    %352 = vector.extract_strided_slice %337 {offsets = [0, 384], sizes = [2, 128], strides = [1, 1]} : vector<2x512xf32> to vector<2x128xf32>
    %353 = arith.negf %352 : vector<2x128xf32>
    %354 = math.exp %353 : vector<2x128xf32>
    %cst_97 = arith.constant 1.000000e+00 : f32
    %355 = vector.broadcast %cst_97 : f32 to vector<2x128xf32>
    %356 = arith.addf %355, %354 : vector<2x128xf32>
    %357 = arith.divf %355, %356 : vector<2x128xf32>
    %358 = arith.mulf %349, %267 : vector<2x128xf32>
    %359 = arith.mulf %343, %351 : vector<2x128xf32>
    %360 = arith.addf %358, %359 : vector<2x128xf32>
    %361 = math.tanh %360 : vector<2x128xf32>
    %362 = arith.mulf %357, %361 : vector<2x128xf32>
    %363 = tpu.concatenate %269, %299 in 1 : vector<2x128xf32>, vector<2x128xf32> -> vector<2x256xf32>
    %364 = arith.truncf %363 : vector<2x256xf32> to vector<2x256xbf16>
    %cst_98 = arith.constant dense<0.000000e+00> : vector<2x512xf32>
    %365 = tpu.matmul %364, %12, %cst_98 {dimension_numbers = #tpu.dot_dimension_numbers<[1], [0], [0], [1], [0, 0, 1, 1], [], []>} : vector<2x256xbf16>, vector<256x512xbf16>, vector<2x512xf32> -> vector<2x512xf32>
    %366 = vector.broadcast %14 : vector<1x512xf32> to vector<2x512xf32>
    %367 = arith.addf %365, %366 : vector<2x512xf32>
    %368 = vector.extract_strided_slice %367 {offsets = [0, 0], sizes = [2, 128], strides = [1, 1]} : vector<2x512xf32> to vector<2x128xf32>
    %369 = arith.negf %368 : vector<2x128xf32>
    %370 = math.exp %369 : vector<2x128xf32>
    %cst_99 = arith.constant 1.000000e+00 : f32
    %371 = vector.broadcast %cst_99 : f32 to vector<2x128xf32>
    %372 = arith.addf %371, %370 : vector<2x128xf32>
    %373 = arith.divf %371, %372 : vector<2x128xf32>
    %374 = vector.extract_strided_slice %367 {offsets = [0, 128], sizes = [2, 128], strides = [1, 1]} : vector<2x512xf32> to vector<2x128xf32>
    %375 = arith.negf %374 : vector<2x128xf32>
    %376 = math.exp %375 : vector<2x128xf32>
    %cst_100 = arith.constant 1.000000e+00 : f32
    %377 = vector.broadcast %cst_100 : f32 to vector<2x128xf32>
    %378 = arith.addf %377, %376 : vector<2x128xf32>
    %379 = arith.divf %377, %378 : vector<2x128xf32>
    %380 = vector.extract_strided_slice %367 {offsets = [0, 256], sizes = [2, 128], strides = [1, 1]} : vector<2x512xf32> to vector<2x128xf32>
    %381 = math.tanh %380 : vector<2x128xf32>
    %382 = vector.extract_strided_slice %367 {offsets = [0, 384], sizes = [2, 128], strides = [1, 1]} : vector<2x512xf32> to vector<2x128xf32>
    %383 = arith.negf %382 : vector<2x128xf32>
    %384 = math.exp %383 : vector<2x128xf32>
    %cst_101 = arith.constant 1.000000e+00 : f32
    %385 = vector.broadcast %cst_101 : f32 to vector<2x128xf32>
    %386 = arith.addf %385, %384 : vector<2x128xf32>
    %387 = arith.divf %385, %386 : vector<2x128xf32>
    %388 = arith.mulf %379, %297 : vector<2x128xf32>
    %389 = arith.mulf %373, %381 : vector<2x128xf32>
    %390 = arith.addf %388, %389 : vector<2x128xf32>
    %391 = math.tanh %390 : vector<2x128xf32>
    %392 = arith.mulf %387, %391 : vector<2x128xf32>
    %c0_102 = arith.constant 0 : index
    %c2_103 = arith.constant 2 : index
    %c0_104 = arith.constant 0 : index
    %393 = vector.load %arg10[%c0_102, %c2_103, %c0_104] : memref<2x8x128xf32, #tpu.memory_space<vmem>>, vector<2x1x128xf32>
    %394 = vector.shape_cast %393 : vector<2x1x128xf32> to vector<2x128xf32>
    %395 = vector.shape_cast %392 : vector<2x128xf32> to vector<2x1x128xf32>
    tpu.vector_store %arg10[%c0_102, %c2_103, %c0_104], %395 {strides = array<i32>} : memref<2x8x128xf32, #tpu.memory_space<vmem>>, vector<2x1x128xf32>,
    %c0_105 = arith.constant 0 : index
    %c5 = arith.constant 5 : index
    %c0_106 = arith.constant 0 : index
    %396 = vector.load %arg13[%c0_105, %c5, %c0_106] : memref<2x8x512xf32, #tpu.memory_space<vmem>>, vector<2x1x512xf32>
    %397 = vector.shape_cast %396 : vector<2x1x512xf32> to vector<2x512xf32>
    %398 = arith.truncf %332 : vector<2x128xf32> to vector<2x128xbf16>
    %cst_107 = arith.constant dense<0.000000e+00> : vector<2x512xf32>
    %399 = tpu.matmul %398, %10, %cst_107 {dimension_numbers = #tpu.dot_dimension_numbers<[1], [0], [0], [1], [0, 0, 1, 1], [], []>} : vector<2x128xbf16>, vector<128x512xbf16>, vector<2x512xf32> -> vector<2x512xf32>
    %400 = arith.addf %397, %399 : vector<2x512xf32>
    %401 = vector.extract_strided_slice %400 {offsets = [0, 0], sizes = [2, 128], strides = [1, 1]} : vector<2x512xf32> to vector<2x128xf32>
    %402 = arith.negf %401 : vector<2x128xf32>
    %403 = math.exp %402 : vector<2x128xf32>
    %cst_108 = arith.constant 1.000000e+00 : f32
    %404 = vector.broadcast %cst_108 : f32 to vector<2x128xf32>
    %405 = arith.addf %404, %403 : vector<2x128xf32>
    %406 = arith.divf %404, %405 : vector<2x128xf32>
    %407 = vector.extract_strided_slice %400 {offsets = [0, 128], sizes = [2, 128], strides = [1, 1]} : vector<2x512xf32> to vector<2x128xf32>
    %408 = arith.negf %407 : vector<2x128xf32>
    %409 = math.exp %408 : vector<2x128xf32>
    %cst_109 = arith.constant 1.000000e+00 : f32
    %410 = vector.broadcast %cst_109 : f32 to vector<2x128xf32>
    %411 = arith.addf %410, %409 : vector<2x128xf32>
    %412 = arith.divf %410, %411 : vector<2x128xf32>
    %413 = vector.extract_strided_slice %400 {offsets = [0, 256], sizes = [2, 128], strides = [1, 1]} : vector<2x512xf32> to vector<2x128xf32>
    %414 = math.tanh %413 : vector<2x128xf32>
    %415 = vector.extract_strided_slice %400 {offsets = [0, 384], sizes = [2, 128], strides = [1, 1]} : vector<2x512xf32> to vector<2x128xf32>
    %416 = arith.negf %415 : vector<2x128xf32>
    %417 = math.exp %416 : vector<2x128xf32>
    %cst_110 = arith.constant 1.000000e+00 : f32
    %418 = vector.broadcast %cst_110 : f32 to vector<2x128xf32>
    %419 = arith.addf %418, %417 : vector<2x128xf32>
    %420 = arith.divf %418, %419 : vector<2x128xf32>
    %421 = arith.mulf %412, %330 : vector<2x128xf32>
    %422 = arith.mulf %406, %414 : vector<2x128xf32>
    %423 = arith.addf %421, %422 : vector<2x128xf32>
    %424 = math.tanh %423 : vector<2x128xf32>
    %425 = arith.mulf %420, %424 : vector<2x128xf32>
    %426 = tpu.concatenate %332, %362 in 1 : vector<2x128xf32>, vector<2x128xf32> -> vector<2x256xf32>
    %427 = arith.truncf %426 : vector<2x256xf32> to vector<2x256xbf16>
    %cst_111 = arith.constant dense<0.000000e+00> : vector<2x512xf32>
    %428 = tpu.matmul %427, %11, %cst_111 {dimension_numbers = #tpu.dot_dimension_numbers<[1], [0], [0], [1], [0, 0, 1, 1], [], []>} : vector<2x256xbf16>, vector<256x512xbf16>, vector<2x512xf32> -> vector<2x512xf32>
    %429 = vector.broadcast %13 : vector<1x512xf32> to vector<2x512xf32>
    %430 = arith.addf %428, %429 : vector<2x512xf32>
    %431 = vector.extract_strided_slice %430 {offsets = [0, 0], sizes = [2, 128], strides = [1, 1]} : vector<2x512xf32> to vector<2x128xf32>
    %432 = arith.negf %431 : vector<2x128xf32>
    %433 = math.exp %432 : vector<2x128xf32>
    %cst_112 = arith.constant 1.000000e+00 : f32
    %434 = vector.broadcast %cst_112 : f32 to vector<2x128xf32>
    %435 = arith.addf %434, %433 : vector<2x128xf32>
    %436 = arith.divf %434, %435 : vector<2x128xf32>
    %437 = vector.extract_strided_slice %430 {offsets = [0, 128], sizes = [2, 128], strides = [1, 1]} : vector<2x512xf32> to vector<2x128xf32>
    %438 = arith.negf %437 : vector<2x128xf32>
    %439 = math.exp %438 : vector<2x128xf32>
    %cst_113 = arith.constant 1.000000e+00 : f32
    %440 = vector.broadcast %cst_113 : f32 to vector<2x128xf32>
    %441 = arith.addf %440, %439 : vector<2x128xf32>
    %442 = arith.divf %440, %441 : vector<2x128xf32>
    %443 = vector.extract_strided_slice %430 {offsets = [0, 256], sizes = [2, 128], strides = [1, 1]} : vector<2x512xf32> to vector<2x128xf32>
    %444 = math.tanh %443 : vector<2x128xf32>
    %445 = vector.extract_strided_slice %430 {offsets = [0, 384], sizes = [2, 128], strides = [1, 1]} : vector<2x512xf32> to vector<2x128xf32>
    %446 = arith.negf %445 : vector<2x128xf32>
    %447 = math.exp %446 : vector<2x128xf32>
    %cst_114 = arith.constant 1.000000e+00 : f32
    %448 = vector.broadcast %cst_114 : f32 to vector<2x128xf32>
    %449 = arith.addf %448, %447 : vector<2x128xf32>
    %450 = arith.divf %448, %449 : vector<2x128xf32>
    %451 = arith.mulf %442, %360 : vector<2x128xf32>
    %452 = arith.mulf %436, %444 : vector<2x128xf32>
    %453 = arith.addf %451, %452 : vector<2x128xf32>
    %454 = math.tanh %453 : vector<2x128xf32>
    %455 = arith.mulf %450, %454 : vector<2x128xf32>
    %456 = tpu.concatenate %362, %392 in 1 : vector<2x128xf32>, vector<2x128xf32> -> vector<2x256xf32>
    %457 = arith.truncf %456 : vector<2x256xf32> to vector<2x256xbf16>
    %cst_115 = arith.constant dense<0.000000e+00> : vector<2x512xf32>
    %458 = tpu.matmul %457, %12, %cst_115 {dimension_numbers = #tpu.dot_dimension_numbers<[1], [0], [0], [1], [0, 0, 1, 1], [], []>} : vector<2x256xbf16>, vector<256x512xbf16>, vector<2x512xf32> -> vector<2x512xf32>
    %459 = vector.broadcast %14 : vector<1x512xf32> to vector<2x512xf32>
    %460 = arith.addf %458, %459 : vector<2x512xf32>
    %461 = vector.extract_strided_slice %460 {offsets = [0, 0], sizes = [2, 128], strides = [1, 1]} : vector<2x512xf32> to vector<2x128xf32>
    %462 = arith.negf %461 : vector<2x128xf32>
    %463 = math.exp %462 : vector<2x128xf32>
    %cst_116 = arith.constant 1.000000e+00 : f32
    %464 = vector.broadcast %cst_116 : f32 to vector<2x128xf32>
    %465 = arith.addf %464, %463 : vector<2x128xf32>
    %466 = arith.divf %464, %465 : vector<2x128xf32>
    %467 = vector.extract_strided_slice %460 {offsets = [0, 128], sizes = [2, 128], strides = [1, 1]} : vector<2x512xf32> to vector<2x128xf32>
    %468 = arith.negf %467 : vector<2x128xf32>
    %469 = math.exp %468 : vector<2x128xf32>
    %cst_117 = arith.constant 1.000000e+00 : f32
    %470 = vector.broadcast %cst_117 : f32 to vector<2x128xf32>
    %471 = arith.addf %470, %469 : vector<2x128xf32>
    %472 = arith.divf %470, %471 : vector<2x128xf32>
    %473 = vector.extract_strided_slice %460 {offsets = [0, 256], sizes = [2, 128], strides = [1, 1]} : vector<2x512xf32> to vector<2x128xf32>
    %474 = math.tanh %473 : vector<2x128xf32>
    %475 = vector.extract_strided_slice %460 {offsets = [0, 384], sizes = [2, 128], strides = [1, 1]} : vector<2x512xf32> to vector<2x128xf32>
    %476 = arith.negf %475 : vector<2x128xf32>
    %477 = math.exp %476 : vector<2x128xf32>
    %cst_118 = arith.constant 1.000000e+00 : f32
    %478 = vector.broadcast %cst_118 : f32 to vector<2x128xf32>
    %479 = arith.addf %478, %477 : vector<2x128xf32>
    %480 = arith.divf %478, %479 : vector<2x128xf32>
    %481 = arith.mulf %472, %390 : vector<2x128xf32>
    %482 = arith.mulf %466, %474 : vector<2x128xf32>
    %483 = arith.addf %481, %482 : vector<2x128xf32>
    %484 = math.tanh %483 : vector<2x128xf32>
    %485 = arith.mulf %480, %484 : vector<2x128xf32>
    %c0_119 = arith.constant 0 : index
    %c3_120 = arith.constant 3 : index
    %c0_121 = arith.constant 0 : index
    %486 = vector.load %arg10[%c0_119, %c3_120, %c0_121] : memref<2x8x128xf32, #tpu.memory_space<vmem>>, vector<2x1x128xf32>
    %487 = vector.shape_cast %486 : vector<2x1x128xf32> to vector<2x128xf32>
    %488 = vector.shape_cast %485 : vector<2x128xf32> to vector<2x1x128xf32>
    tpu.vector_store %arg10[%c0_119, %c3_120, %c0_121], %488 {strides = array<i32>} : memref<2x8x128xf32, #tpu.memory_space<vmem>>, vector<2x1x128xf32>,
    %c0_122 = arith.constant 0 : index
    %c6 = arith.constant 6 : index
    %c0_123 = arith.constant 0 : index
    %489 = vector.load %arg13[%c0_122, %c6, %c0_123] : memref<2x8x512xf32, #tpu.memory_space<vmem>>, vector<2x1x512xf32>
    %490 = vector.shape_cast %489 : vector<2x1x512xf32> to vector<2x512xf32>
    %491 = arith.truncf %425 : vector<2x128xf32> to vector<2x128xbf16>
    %cst_124 = arith.constant dense<0.000000e+00> : vector<2x512xf32>
    %492 = tpu.matmul %491, %10, %cst_124 {dimension_numbers = #tpu.dot_dimension_numbers<[1], [0], [0], [1], [0, 0, 1, 1], [], []>} : vector<2x128xbf16>, vector<128x512xbf16>, vector<2x512xf32> -> vector<2x512xf32>
    %493 = arith.addf %490, %492 : vector<2x512xf32>
    %494 = vector.extract_strided_slice %493 {offsets = [0, 0], sizes = [2, 128], strides = [1, 1]} : vector<2x512xf32> to vector<2x128xf32>
    %495 = arith.negf %494 : vector<2x128xf32>
    %496 = math.exp %495 : vector<2x128xf32>
    %cst_125 = arith.constant 1.000000e+00 : f32
    %497 = vector.broadcast %cst_125 : f32 to vector<2x128xf32>
    %498 = arith.addf %497, %496 : vector<2x128xf32>
    %499 = arith.divf %497, %498 : vector<2x128xf32>
    %500 = vector.extract_strided_slice %493 {offsets = [0, 128], sizes = [2, 128], strides = [1, 1]} : vector<2x512xf32> to vector<2x128xf32>
    %501 = arith.negf %500 : vector<2x128xf32>
    %502 = math.exp %501 : vector<2x128xf32>
    %cst_126 = arith.constant 1.000000e+00 : f32
    %503 = vector.broadcast %cst_126 : f32 to vector<2x128xf32>
    %504 = arith.addf %503, %502 : vector<2x128xf32>
    %505 = arith.divf %503, %504 : vector<2x128xf32>
    %506 = vector.extract_strided_slice %493 {offsets = [0, 256], sizes = [2, 128], strides = [1, 1]} : vector<2x512xf32> to vector<2x128xf32>
    %507 = math.tanh %506 : vector<2x128xf32>
    %508 = vector.extract_strided_slice %493 {offsets = [0, 384], sizes = [2, 128], strides = [1, 1]} : vector<2x512xf32> to vector<2x128xf32>
    %509 = arith.negf %508 : vector<2x128xf32>
    %510 = math.exp %509 : vector<2x128xf32>
    %cst_127 = arith.constant 1.000000e+00 : f32
    %511 = vector.broadcast %cst_127 : f32 to vector<2x128xf32>
    %512 = arith.addf %511, %510 : vector<2x128xf32>
    %513 = arith.divf %511, %512 : vector<2x128xf32>
    %514 = arith.mulf %505, %423 : vector<2x128xf32>
    %515 = arith.mulf %499, %507 : vector<2x128xf32>
    %516 = arith.addf %514, %515 : vector<2x128xf32>
    %517 = math.tanh %516 : vector<2x128xf32>
    %518 = arith.mulf %513, %517 : vector<2x128xf32>
    %519 = tpu.concatenate %425, %455 in 1 : vector<2x128xf32>, vector<2x128xf32> -> vector<2x256xf32>
    %520 = arith.truncf %519 : vector<2x256xf32> to vector<2x256xbf16>
    %cst_128 = arith.constant dense<0.000000e+00> : vector<2x512xf32>
    %521 = tpu.matmul %520, %11, %cst_128 {dimension_numbers = #tpu.dot_dimension_numbers<[1], [0], [0], [1], [0, 0, 1, 1], [], []>} : vector<2x256xbf16>, vector<256x512xbf16>, vector<2x512xf32> -> vector<2x512xf32>
    %522 = vector.broadcast %13 : vector<1x512xf32> to vector<2x512xf32>
    %523 = arith.addf %521, %522 : vector<2x512xf32>
    %524 = vector.extract_strided_slice %523 {offsets = [0, 0], sizes = [2, 128], strides = [1, 1]} : vector<2x512xf32> to vector<2x128xf32>
    %525 = arith.negf %524 : vector<2x128xf32>
    %526 = math.exp %525 : vector<2x128xf32>
    %cst_129 = arith.constant 1.000000e+00 : f32
    %527 = vector.broadcast %cst_129 : f32 to vector<2x128xf32>
    %528 = arith.addf %527, %526 : vector<2x128xf32>
    %529 = arith.divf %527, %528 : vector<2x128xf32>
    %530 = vector.extract_strided_slice %523 {offsets = [0, 128], sizes = [2, 128], strides = [1, 1]} : vector<2x512xf32> to vector<2x128xf32>
    %531 = arith.negf %530 : vector<2x128xf32>
    %532 = math.exp %531 : vector<2x128xf32>
    %cst_130 = arith.constant 1.000000e+00 : f32
    %533 = vector.broadcast %cst_130 : f32 to vector<2x128xf32>
    %534 = arith.addf %533, %532 : vector<2x128xf32>
    %535 = arith.divf %533, %534 : vector<2x128xf32>
    %536 = vector.extract_strided_slice %523 {offsets = [0, 256], sizes = [2, 128], strides = [1, 1]} : vector<2x512xf32> to vector<2x128xf32>
    %537 = math.tanh %536 : vector<2x128xf32>
    %538 = vector.extract_strided_slice %523 {offsets = [0, 384], sizes = [2, 128], strides = [1, 1]} : vector<2x512xf32> to vector<2x128xf32>
    %539 = arith.negf %538 : vector<2x128xf32>
    %540 = math.exp %539 : vector<2x128xf32>
    %cst_131 = arith.constant 1.000000e+00 : f32
    %541 = vector.broadcast %cst_131 : f32 to vector<2x128xf32>
    %542 = arith.addf %541, %540 : vector<2x128xf32>
    %543 = arith.divf %541, %542 : vector<2x128xf32>
    %544 = arith.mulf %535, %453 : vector<2x128xf32>
    %545 = arith.mulf %529, %537 : vector<2x128xf32>
    %546 = arith.addf %544, %545 : vector<2x128xf32>
    %547 = math.tanh %546 : vector<2x128xf32>
    %548 = arith.mulf %543, %547 : vector<2x128xf32>
    %549 = tpu.concatenate %455, %485 in 1 : vector<2x128xf32>, vector<2x128xf32> -> vector<2x256xf32>
    %550 = arith.truncf %549 : vector<2x256xf32> to vector<2x256xbf16>
    %cst_132 = arith.constant dense<0.000000e+00> : vector<2x512xf32>
    %551 = tpu.matmul %550, %12, %cst_132 {dimension_numbers = #tpu.dot_dimension_numbers<[1], [0], [0], [1], [0, 0, 1, 1], [], []>} : vector<2x256xbf16>, vector<256x512xbf16>, vector<2x512xf32> -> vector<2x512xf32>
    %552 = vector.broadcast %14 : vector<1x512xf32> to vector<2x512xf32>
    %553 = arith.addf %551, %552 : vector<2x512xf32>
    %554 = vector.extract_strided_slice %553 {offsets = [0, 0], sizes = [2, 128], strides = [1, 1]} : vector<2x512xf32> to vector<2x128xf32>
    %555 = arith.negf %554 : vector<2x128xf32>
    %556 = math.exp %555 : vector<2x128xf32>
    %cst_133 = arith.constant 1.000000e+00 : f32
    %557 = vector.broadcast %cst_133 : f32 to vector<2x128xf32>
    %558 = arith.addf %557, %556 : vector<2x128xf32>
    %559 = arith.divf %557, %558 : vector<2x128xf32>
    %560 = vector.extract_strided_slice %553 {offsets = [0, 128], sizes = [2, 128], strides = [1, 1]} : vector<2x512xf32> to vector<2x128xf32>
    %561 = arith.negf %560 : vector<2x128xf32>
    %562 = math.exp %561 : vector<2x128xf32>
    %cst_134 = arith.constant 1.000000e+00 : f32
    %563 = vector.broadcast %cst_134 : f32 to vector<2x128xf32>
    %564 = arith.addf %563, %562 : vector<2x128xf32>
    %565 = arith.divf %563, %564 : vector<2x128xf32>
    %566 = vector.extract_strided_slice %553 {offsets = [0, 256], sizes = [2, 128], strides = [1, 1]} : vector<2x512xf32> to vector<2x128xf32>
    %567 = math.tanh %566 : vector<2x128xf32>
    %568 = vector.extract_strided_slice %553 {offsets = [0, 384], sizes = [2, 128], strides = [1, 1]} : vector<2x512xf32> to vector<2x128xf32>
    %569 = arith.negf %568 : vector<2x128xf32>
    %570 = math.exp %569 : vector<2x128xf32>
    %cst_135 = arith.constant 1.000000e+00 : f32
    %571 = vector.broadcast %cst_135 : f32 to vector<2x128xf32>
    %572 = arith.addf %571, %570 : vector<2x128xf32>
    %573 = arith.divf %571, %572 : vector<2x128xf32>
    %574 = arith.mulf %565, %483 : vector<2x128xf32>
    %575 = arith.mulf %559, %567 : vector<2x128xf32>
    %576 = arith.addf %574, %575 : vector<2x128xf32>
    %577 = math.tanh %576 : vector<2x128xf32>
    %578 = arith.mulf %573, %577 : vector<2x128xf32>
    %c0_136 = arith.constant 0 : index
    %c4_137 = arith.constant 4 : index
    %c0_138 = arith.constant 0 : index
    %579 = vector.load %arg10[%c0_136, %c4_137, %c0_138] : memref<2x8x128xf32, #tpu.memory_space<vmem>>, vector<2x1x128xf32>
    %580 = vector.shape_cast %579 : vector<2x1x128xf32> to vector<2x128xf32>
    %581 = vector.shape_cast %578 : vector<2x128xf32> to vector<2x1x128xf32>
    tpu.vector_store %arg10[%c0_136, %c4_137, %c0_138], %581 {strides = array<i32>} : memref<2x8x128xf32, #tpu.memory_space<vmem>>, vector<2x1x128xf32>,
    %c0_139 = arith.constant 0 : index
    %c7 = arith.constant 7 : index
    %c0_140 = arith.constant 0 : index
    %582 = vector.load %arg13[%c0_139, %c7, %c0_140] : memref<2x8x512xf32, #tpu.memory_space<vmem>>, vector<2x1x512xf32>
    %583 = vector.shape_cast %582 : vector<2x1x512xf32> to vector<2x512xf32>
    %584 = arith.truncf %518 : vector<2x128xf32> to vector<2x128xbf16>
    %cst_141 = arith.constant dense<0.000000e+00> : vector<2x512xf32>
    %585 = tpu.matmul %584, %10, %cst_141 {dimension_numbers = #tpu.dot_dimension_numbers<[1], [0], [0], [1], [0, 0, 1, 1], [], []>} : vector<2x128xbf16>, vector<128x512xbf16>, vector<2x512xf32> -> vector<2x512xf32>
    %586 = arith.addf %583, %585 : vector<2x512xf32>
    %587 = vector.extract_strided_slice %586 {offsets = [0, 0], sizes = [2, 128], strides = [1, 1]} : vector<2x512xf32> to vector<2x128xf32>
    %588 = arith.negf %587 : vector<2x128xf32>
    %589 = math.exp %588 : vector<2x128xf32>
    %cst_142 = arith.constant 1.000000e+00 : f32
    %590 = vector.broadcast %cst_142 : f32 to vector<2x128xf32>
    %591 = arith.addf %590, %589 : vector<2x128xf32>
    %592 = arith.divf %590, %591 : vector<2x128xf32>
    %593 = vector.extract_strided_slice %586 {offsets = [0, 128], sizes = [2, 128], strides = [1, 1]} : vector<2x512xf32> to vector<2x128xf32>
    %594 = arith.negf %593 : vector<2x128xf32>
    %595 = math.exp %594 : vector<2x128xf32>
    %cst_143 = arith.constant 1.000000e+00 : f32
    %596 = vector.broadcast %cst_143 : f32 to vector<2x128xf32>
    %597 = arith.addf %596, %595 : vector<2x128xf32>
    %598 = arith.divf %596, %597 : vector<2x128xf32>
    %599 = vector.extract_strided_slice %586 {offsets = [0, 256], sizes = [2, 128], strides = [1, 1]} : vector<2x512xf32> to vector<2x128xf32>
    %600 = math.tanh %599 : vector<2x128xf32>
    %601 = vector.extract_strided_slice %586 {offsets = [0, 384], sizes = [2, 128], strides = [1, 1]} : vector<2x512xf32> to vector<2x128xf32>
    %602 = arith.negf %601 : vector<2x128xf32>
    %603 = math.exp %602 : vector<2x128xf32>
    %cst_144 = arith.constant 1.000000e+00 : f32
    %604 = vector.broadcast %cst_144 : f32 to vector<2x128xf32>
    %605 = arith.addf %604, %603 : vector<2x128xf32>
    %606 = arith.divf %604, %605 : vector<2x128xf32>
    %607 = arith.mulf %598, %516 : vector<2x128xf32>
    %608 = arith.mulf %592, %600 : vector<2x128xf32>
    %609 = arith.addf %607, %608 : vector<2x128xf32>
    %610 = math.tanh %609 : vector<2x128xf32>
    %611 = arith.mulf %606, %610 : vector<2x128xf32>
    %612 = tpu.concatenate %518, %548 in 1 : vector<2x128xf32>, vector<2x128xf32> -> vector<2x256xf32>
    %613 = arith.truncf %612 : vector<2x256xf32> to vector<2x256xbf16>
    %cst_145 = arith.constant dense<0.000000e+00> : vector<2x512xf32>
    %614 = tpu.matmul %613, %11, %cst_145 {dimension_numbers = #tpu.dot_dimension_numbers<[1], [0], [0], [1], [0, 0, 1, 1], [], []>} : vector<2x256xbf16>, vector<256x512xbf16>, vector<2x512xf32> -> vector<2x512xf32>
    %615 = vector.broadcast %13 : vector<1x512xf32> to vector<2x512xf32>
    %616 = arith.addf %614, %615 : vector<2x512xf32>
    %617 = vector.extract_strided_slice %616 {offsets = [0, 0], sizes = [2, 128], strides = [1, 1]} : vector<2x512xf32> to vector<2x128xf32>
    %618 = arith.negf %617 : vector<2x128xf32>
    %619 = math.exp %618 : vector<2x128xf32>
    %cst_146 = arith.constant 1.000000e+00 : f32
    %620 = vector.broadcast %cst_146 : f32 to vector<2x128xf32>
    %621 = arith.addf %620, %619 : vector<2x128xf32>
    %622 = arith.divf %620, %621 : vector<2x128xf32>
    %623 = vector.extract_strided_slice %616 {offsets = [0, 128], sizes = [2, 128], strides = [1, 1]} : vector<2x512xf32> to vector<2x128xf32>
    %624 = arith.negf %623 : vector<2x128xf32>
    %625 = math.exp %624 : vector<2x128xf32>
    %cst_147 = arith.constant 1.000000e+00 : f32
    %626 = vector.broadcast %cst_147 : f32 to vector<2x128xf32>
    %627 = arith.addf %626, %625 : vector<2x128xf32>
    %628 = arith.divf %626, %627 : vector<2x128xf32>
    %629 = vector.extract_strided_slice %616 {offsets = [0, 256], sizes = [2, 128], strides = [1, 1]} : vector<2x512xf32> to vector<2x128xf32>
    %630 = math.tanh %629 : vector<2x128xf32>
    %631 = vector.extract_strided_slice %616 {offsets = [0, 384], sizes = [2, 128], strides = [1, 1]} : vector<2x512xf32> to vector<2x128xf32>
    %632 = arith.negf %631 : vector<2x128xf32>
    %633 = math.exp %632 : vector<2x128xf32>
    %cst_148 = arith.constant 1.000000e+00 : f32
    %634 = vector.broadcast %cst_148 : f32 to vector<2x128xf32>
    %635 = arith.addf %634, %633 : vector<2x128xf32>
    %636 = arith.divf %634, %635 : vector<2x128xf32>
    %637 = arith.mulf %628, %546 : vector<2x128xf32>
    %638 = arith.mulf %622, %630 : vector<2x128xf32>
    %639 = arith.addf %637, %638 : vector<2x128xf32>
    %640 = math.tanh %639 : vector<2x128xf32>
    %641 = arith.mulf %636, %640 : vector<2x128xf32>
    %642 = tpu.concatenate %548, %578 in 1 : vector<2x128xf32>, vector<2x128xf32> -> vector<2x256xf32>
    %643 = arith.truncf %642 : vector<2x256xf32> to vector<2x256xbf16>
    %cst_149 = arith.constant dense<0.000000e+00> : vector<2x512xf32>
    %644 = tpu.matmul %643, %12, %cst_149 {dimension_numbers = #tpu.dot_dimension_numbers<[1], [0], [0], [1], [0, 0, 1, 1], [], []>} : vector<2x256xbf16>, vector<256x512xbf16>, vector<2x512xf32> -> vector<2x512xf32>
    %645 = vector.broadcast %14 : vector<1x512xf32> to vector<2x512xf32>
    %646 = arith.addf %644, %645 : vector<2x512xf32>
    %647 = vector.extract_strided_slice %646 {offsets = [0, 0], sizes = [2, 128], strides = [1, 1]} : vector<2x512xf32> to vector<2x128xf32>
    %648 = arith.negf %647 : vector<2x128xf32>
    %649 = math.exp %648 : vector<2x128xf32>
    %cst_150 = arith.constant 1.000000e+00 : f32
    %650 = vector.broadcast %cst_150 : f32 to vector<2x128xf32>
    %651 = arith.addf %650, %649 : vector<2x128xf32>
    %652 = arith.divf %650, %651 : vector<2x128xf32>
    %653 = vector.extract_strided_slice %646 {offsets = [0, 128], sizes = [2, 128], strides = [1, 1]} : vector<2x512xf32> to vector<2x128xf32>
    %654 = arith.negf %653 : vector<2x128xf32>
    %655 = math.exp %654 : vector<2x128xf32>
    %cst_151 = arith.constant 1.000000e+00 : f32
    %656 = vector.broadcast %cst_151 : f32 to vector<2x128xf32>
    %657 = arith.addf %656, %655 : vector<2x128xf32>
    %658 = arith.divf %656, %657 : vector<2x128xf32>
    %659 = vector.extract_strided_slice %646 {offsets = [0, 256], sizes = [2, 128], strides = [1, 1]} : vector<2x512xf32> to vector<2x128xf32>
    %660 = math.tanh %659 : vector<2x128xf32>
    %661 = vector.extract_strided_slice %646 {offsets = [0, 384], sizes = [2, 128], strides = [1, 1]} : vector<2x512xf32> to vector<2x128xf32>
    %662 = arith.negf %661 : vector<2x128xf32>
    %663 = math.exp %662 : vector<2x128xf32>
    %cst_152 = arith.constant 1.000000e+00 : f32
    %664 = vector.broadcast %cst_152 : f32 to vector<2x128xf32>
    %665 = arith.addf %664, %663 : vector<2x128xf32>
    %666 = arith.divf %664, %665 : vector<2x128xf32>
    %667 = arith.mulf %658, %576 : vector<2x128xf32>
    %668 = arith.mulf %652, %660 : vector<2x128xf32>
    %669 = arith.addf %667, %668 : vector<2x128xf32>
    %670 = math.tanh %669 : vector<2x128xf32>
    %671 = arith.mulf %666, %670 : vector<2x128xf32>
    %c0_153 = arith.constant 0 : index
    %c5_154 = arith.constant 5 : index
    %c0_155 = arith.constant 0 : index
    %672 = vector.load %arg10[%c0_153, %c5_154, %c0_155] : memref<2x8x128xf32, #tpu.memory_space<vmem>>, vector<2x1x128xf32>
    %673 = vector.shape_cast %672 : vector<2x1x128xf32> to vector<2x128xf32>
    %674 = vector.shape_cast %671 : vector<2x128xf32> to vector<2x1x128xf32>
    tpu.vector_store %arg10[%c0_153, %c5_154, %c0_155], %674 {strides = array<i32>} : memref<2x8x128xf32, #tpu.memory_space<vmem>>, vector<2x1x128xf32>,
    %675 = tpu.concatenate %611, %641 in 1 : vector<2x128xf32>, vector<2x128xf32> -> vector<2x256xf32>
    %676 = arith.truncf %675 : vector<2x256xf32> to vector<2x256xbf16>
    %cst_156 = arith.constant dense<0.000000e+00> : vector<2x512xf32>
    %677 = tpu.matmul %676, %11, %cst_156 {dimension_numbers = #tpu.dot_dimension_numbers<[1], [0], [0], [1], [0, 0, 1, 1], [], []>} : vector<2x256xbf16>, vector<256x512xbf16>, vector<2x512xf32> -> vector<2x512xf32>
    %678 = vector.broadcast %13 : vector<1x512xf32> to vector<2x512xf32>
    %679 = arith.addf %677, %678 : vector<2x512xf32>
    %680 = vector.extract_strided_slice %679 {offsets = [0, 0], sizes = [2, 128], strides = [1, 1]} : vector<2x512xf32> to vector<2x128xf32>
    %681 = arith.negf %680 : vector<2x128xf32>
    %682 = math.exp %681 : vector<2x128xf32>
    %cst_157 = arith.constant 1.000000e+00 : f32
    %683 = vector.broadcast %cst_157 : f32 to vector<2x128xf32>
    %684 = arith.addf %683, %682 : vector<2x128xf32>
    %685 = arith.divf %683, %684 : vector<2x128xf32>
    %686 = vector.extract_strided_slice %679 {offsets = [0, 128], sizes = [2, 128], strides = [1, 1]} : vector<2x512xf32> to vector<2x128xf32>
    %687 = arith.negf %686 : vector<2x128xf32>
    %688 = math.exp %687 : vector<2x128xf32>
    %cst_158 = arith.constant 1.000000e+00 : f32
    %689 = vector.broadcast %cst_158 : f32 to vector<2x128xf32>
    %690 = arith.addf %689, %688 : vector<2x128xf32>
    %691 = arith.divf %689, %690 : vector<2x128xf32>
    %692 = vector.extract_strided_slice %679 {offsets = [0, 256], sizes = [2, 128], strides = [1, 1]} : vector<2x512xf32> to vector<2x128xf32>
    %693 = math.tanh %692 : vector<2x128xf32>
    %694 = vector.extract_strided_slice %679 {offsets = [0, 384], sizes = [2, 128], strides = [1, 1]} : vector<2x512xf32> to vector<2x128xf32>
    %695 = arith.negf %694 : vector<2x128xf32>
    %696 = math.exp %695 : vector<2x128xf32>
    %cst_159 = arith.constant 1.000000e+00 : f32
    %697 = vector.broadcast %cst_159 : f32 to vector<2x128xf32>
    %698 = arith.addf %697, %696 : vector<2x128xf32>
    %699 = arith.divf %697, %698 : vector<2x128xf32>
    %700 = arith.mulf %691, %639 : vector<2x128xf32>
    %701 = arith.mulf %685, %693 : vector<2x128xf32>
    %702 = arith.addf %700, %701 : vector<2x128xf32>
    %703 = math.tanh %702 : vector<2x128xf32>
    %704 = arith.mulf %699, %703 : vector<2x128xf32>
    %705 = tpu.concatenate %641, %671 in 1 : vector<2x128xf32>, vector<2x128xf32> -> vector<2x256xf32>
    %706 = arith.truncf %705 : vector<2x256xf32> to vector<2x256xbf16>
    %cst_160 = arith.constant dense<0.000000e+00> : vector<2x512xf32>
    %707 = tpu.matmul %706, %12, %cst_160 {dimension_numbers = #tpu.dot_dimension_numbers<[1], [0], [0], [1], [0, 0, 1, 1], [], []>} : vector<2x256xbf16>, vector<256x512xbf16>, vector<2x512xf32> -> vector<2x512xf32>
    %708 = vector.broadcast %14 : vector<1x512xf32> to vector<2x512xf32>
    %709 = arith.addf %707, %708 : vector<2x512xf32>
    %710 = vector.extract_strided_slice %709 {offsets = [0, 0], sizes = [2, 128], strides = [1, 1]} : vector<2x512xf32> to vector<2x128xf32>
    %711 = arith.negf %710 : vector<2x128xf32>
    %712 = math.exp %711 : vector<2x128xf32>
    %cst_161 = arith.constant 1.000000e+00 : f32
    %713 = vector.broadcast %cst_161 : f32 to vector<2x128xf32>
    %714 = arith.addf %713, %712 : vector<2x128xf32>
    %715 = arith.divf %713, %714 : vector<2x128xf32>
    %716 = vector.extract_strided_slice %709 {offsets = [0, 128], sizes = [2, 128], strides = [1, 1]} : vector<2x512xf32> to vector<2x128xf32>
    %717 = arith.negf %716 : vector<2x128xf32>
    %718 = math.exp %717 : vector<2x128xf32>
    %cst_162 = arith.constant 1.000000e+00 : f32
    %719 = vector.broadcast %cst_162 : f32 to vector<2x128xf32>
    %720 = arith.addf %719, %718 : vector<2x128xf32>
    %721 = arith.divf %719, %720 : vector<2x128xf32>
    %722 = vector.extract_strided_slice %709 {offsets = [0, 256], sizes = [2, 128], strides = [1, 1]} : vector<2x512xf32> to vector<2x128xf32>
    %723 = math.tanh %722 : vector<2x128xf32>
    %724 = vector.extract_strided_slice %709 {offsets = [0, 384], sizes = [2, 128], strides = [1, 1]} : vector<2x512xf32> to vector<2x128xf32>
    %725 = arith.negf %724 : vector<2x128xf32>
    %726 = math.exp %725 : vector<2x128xf32>
    %cst_163 = arith.constant 1.000000e+00 : f32
    %727 = vector.broadcast %cst_163 : f32 to vector<2x128xf32>
    %728 = arith.addf %727, %726 : vector<2x128xf32>
    %729 = arith.divf %727, %728 : vector<2x128xf32>
    %730 = arith.mulf %721, %669 : vector<2x128xf32>
    %731 = arith.mulf %715, %723 : vector<2x128xf32>
    %732 = arith.addf %730, %731 : vector<2x128xf32>
    %733 = math.tanh %732 : vector<2x128xf32>
    %734 = arith.mulf %729, %733 : vector<2x128xf32>
    %c0_164 = arith.constant 0 : index
    %c6_165 = arith.constant 6 : index
    %c0_166 = arith.constant 0 : index
    %735 = vector.load %arg10[%c0_164, %c6_165, %c0_166] : memref<2x8x128xf32, #tpu.memory_space<vmem>>, vector<2x1x128xf32>
    %736 = vector.shape_cast %735 : vector<2x1x128xf32> to vector<2x128xf32>
    %737 = vector.shape_cast %734 : vector<2x128xf32> to vector<2x1x128xf32>
    tpu.vector_store %arg10[%c0_164, %c6_165, %c0_166], %737 {strides = array<i32>} : memref<2x8x128xf32, #tpu.memory_space<vmem>>, vector<2x1x128xf32>,
    %738 = tpu.concatenate %704, %734 in 1 : vector<2x128xf32>, vector<2x128xf32> -> vector<2x256xf32>
    %739 = arith.truncf %738 : vector<2x256xf32> to vector<2x256xbf16>
    %cst_167 = arith.constant dense<0.000000e+00> : vector<2x512xf32>
    %740 = tpu.matmul %739, %12, %cst_167 {dimension_numbers = #tpu.dot_dimension_numbers<[1], [0], [0], [1], [0, 0, 1, 1], [], []>} : vector<2x256xbf16>, vector<256x512xbf16>, vector<2x512xf32> -> vector<2x512xf32>
    %741 = vector.broadcast %14 : vector<1x512xf32> to vector<2x512xf32>
    %742 = arith.addf %740, %741 : vector<2x512xf32>
    %743 = vector.extract_strided_slice %742 {offsets = [0, 0], sizes = [2, 128], strides = [1, 1]} : vector<2x512xf32> to vector<2x128xf32>
    %744 = arith.negf %743 : vector<2x128xf32>
    %745 = math.exp %744 : vector<2x128xf32>
    %cst_168 = arith.constant 1.000000e+00 : f32
    %746 = vector.broadcast %cst_168 : f32 to vector<2x128xf32>
    %747 = arith.addf %746, %745 : vector<2x128xf32>
    %748 = arith.divf %746, %747 : vector<2x128xf32>
    %749 = vector.extract_strided_slice %742 {offsets = [0, 128], sizes = [2, 128], strides = [1, 1]} : vector<2x512xf32> to vector<2x128xf32>
    %750 = arith.negf %749 : vector<2x128xf32>
    %751 = math.exp %750 : vector<2x128xf32>
    %cst_169 = arith.constant 1.000000e+00 : f32
    %752 = vector.broadcast %cst_169 : f32 to vector<2x128xf32>
    %753 = arith.addf %752, %751 : vector<2x128xf32>
    %754 = arith.divf %752, %753 : vector<2x128xf32>
    %755 = vector.extract_strided_slice %742 {offsets = [0, 256], sizes = [2, 128], strides = [1, 1]} : vector<2x512xf32> to vector<2x128xf32>
    %756 = math.tanh %755 : vector<2x128xf32>
    %757 = vector.extract_strided_slice %742 {offsets = [0, 384], sizes = [2, 128], strides = [1, 1]} : vector<2x512xf32> to vector<2x128xf32>
    %758 = arith.negf %757 : vector<2x128xf32>
    %759 = math.exp %758 : vector<2x128xf32>
    %cst_170 = arith.constant 1.000000e+00 : f32
    %760 = vector.broadcast %cst_170 : f32 to vector<2x128xf32>
    %761 = arith.addf %760, %759 : vector<2x128xf32>
    %762 = arith.divf %760, %761 : vector<2x128xf32>
    %763 = arith.mulf %754, %732 : vector<2x128xf32>
    %764 = arith.mulf %748, %756 : vector<2x128xf32>
    %765 = arith.addf %763, %764 : vector<2x128xf32>
    %766 = math.tanh %765 : vector<2x128xf32>
    %767 = arith.mulf %762, %766 : vector<2x128xf32>
    %c0_171 = arith.constant 0 : index
    %c7_172 = arith.constant 7 : index
    %c0_173 = arith.constant 0 : index
    %768 = vector.load %arg10[%c0_171, %c7_172, %c0_173] : memref<2x8x128xf32, #tpu.memory_space<vmem>>, vector<2x1x128xf32>
    %769 = vector.shape_cast %768 : vector<2x1x128xf32> to vector<2x128xf32>
    %770 = vector.shape_cast %767 : vector<2x128xf32> to vector<2x1x128xf32>
    tpu.vector_store %arg10[%c0_171, %c7_172, %c0_173], %770 {strides = array<i32>} : memref<2x8x128xf32, #tpu.memory_space<vmem>>, vector<2x1x128xf32>,
    %c0_174 = arith.constant 0 : index
    %c0_175 = arith.constant 0 : index
    %c0_176 = arith.constant 0 : index
    %771 = vector.load %arg11[%c0_174, %c0_175, %c0_176] : memref<3x2x128xf32, #tpu.memory_space<vmem>>, vector<1x2x128xf32>
    %772 = vector.shape_cast %771 : vector<1x2x128xf32> to vector<2x128xf32>
    %773 = vector.shape_cast %611 : vector<2x128xf32> to vector<1x2x128xf32>
    tpu.vector_store %arg11[%c0_174, %c0_175, %c0_176], %773 {strides = array<i32>} : memref<3x2x128xf32, #tpu.memory_space<vmem>>, vector<1x2x128xf32>,
    %c0_177 = arith.constant 0 : index
    %c0_178 = arith.constant 0 : index
    %c0_179 = arith.constant 0 : index
    %774 = vector.load %arg12[%c0_177, %c0_178, %c0_179] : memref<3x2x128xf32, #tpu.memory_space<vmem>>, vector<1x2x128xf32>
    %775 = vector.shape_cast %774 : vector<1x2x128xf32> to vector<2x128xf32>
    %776 = vector.shape_cast %609 : vector<2x128xf32> to vector<1x2x128xf32>
    tpu.vector_store %arg12[%c0_177, %c0_178, %c0_179], %776 {strides = array<i32>} : memref<3x2x128xf32, #tpu.memory_space<vmem>>, vector<1x2x128xf32>,
    %c1_180 = arith.constant 1 : index
    %c0_181 = arith.constant 0 : index
    %c0_182 = arith.constant 0 : index
    %777 = vector.load %arg11[%c1_180, %c0_181, %c0_182] : memref<3x2x128xf32, #tpu.memory_space<vmem>>, vector<1x2x128xf32>
    %778 = vector.shape_cast %777 : vector<1x2x128xf32> to vector<2x128xf32>
    %779 = vector.shape_cast %704 : vector<2x128xf32> to vector<1x2x128xf32>
    tpu.vector_store %arg11[%c1_180, %c0_181, %c0_182], %779 {strides = array<i32>} : memref<3x2x128xf32, #tpu.memory_space<vmem>>, vector<1x2x128xf32>,
    %c1_183 = arith.constant 1 : index
    %c0_184 = arith.constant 0 : index
    %c0_185 = arith.constant 0 : index
    %780 = vector.load %arg12[%c1_183, %c0_184, %c0_185] : memref<3x2x128xf32, #tpu.memory_space<vmem>>, vector<1x2x128xf32>
    %781 = vector.shape_cast %780 : vector<1x2x128xf32> to vector<2x128xf32>
    %782 = vector.shape_cast %702 : vector<2x128xf32> to vector<1x2x128xf32>
    tpu.vector_store %arg12[%c1_183, %c0_184, %c0_185], %782 {strides = array<i32>} : memref<3x2x128xf32, #tpu.memory_space<vmem>>, vector<1x2x128xf32>,
    %c2_186 = arith.constant 2 : index
    %c0_187 = arith.constant 0 : index
    %c0_188 = arith.constant 0 : index
    %783 = vector.load %arg11[%c2_186, %c0_187, %c0_188] : memref<3x2x128xf32, #tpu.memory_space<vmem>>, vector<1x2x128xf32>
    %784 = vector.shape_cast %783 : vector<1x2x128xf32> to vector<2x128xf32>
    %785 = vector.shape_cast %767 : vector<2x128xf32> to vector<1x2x128xf32>
    tpu.vector_store %arg11[%c2_186, %c0_187, %c0_188], %785 {strides = array<i32>} : memref<3x2x128xf32, #tpu.memory_space<vmem>>, vector<1x2x128xf32>,
    %c2_189 = arith.constant 2 : index
    %c0_190 = arith.constant 0 : index
    %c0_191 = arith.constant 0 : index
    %786 = vector.load %arg12[%c2_189, %c0_190, %c0_191] : memref<3x2x128xf32, #tpu.memory_space<vmem>>, vector<1x2x128xf32>
    %787 = vector.shape_cast %786 : vector<1x2x128xf32> to vector<2x128xf32>
    %788 = vector.shape_cast %765 : vector<2x128xf32> to vector<1x2x128xf32>
    tpu.vector_store %arg12[%c2_189, %c0_190, %c0_191], %788 {strides = array<i32>} : memref<3x2x128xf32, #tpu.memory_space<vmem>>, vector<1x2x128xf32>,
    return
  }
}

</mosaic_0001>

<llo_original>
// kernel: _lambda_.1
$region0: #{_lambda_.1}
  #allocation0 [shape = 'u32[]', space=smem, size = 0x4, offset = 0x4, fixed_abs, tag = 'smem constant byte address 0x4 - core index']
  #allocation1 [shape = 'u32[144,128]{1,0:T(1,128)}', space=vmem, size = 0x12000, scoped, tag = 'internal scratch']
  #allocation2 [shape = 'f32[2,8,512]{2,1,0:T(8,128)}', space=vmem, size = 0x8000, scoped, tag = 'scratch operand']
  %s0 = inlined_call_operand.vmem [shape: f32[2,8,64], index: 0, kind: input, shape index: {}]
  %s1 = inlined_call_operand.hbm [shape: bf16[64,512], index: 1, kind: input, shape index: {}]
  %s2 = inlined_call_operand.hbm [shape: bf16[128,512], index: 2, kind: input, shape index: {}]
  %s3 = inlined_call_operand.vmem [shape: f32[1,512], index: 3, kind: input, shape index: {}]
  %s4 = inlined_call_operand.hbm [shape: bf16[256,512], index: 4, kind: input, shape index: {}]
  %s5 = inlined_call_operand.vmem [shape: f32[1,512], index: 5, kind: input, shape index: {}]
  %s6 = inlined_call_operand.hbm [shape: bf16[256,512], index: 6, kind: input, shape index: {}]
  %s7 = inlined_call_operand.vmem [shape: f32[1,512], index: 7, kind: input, shape index: {}]
  %s8 = inlined_call_operand.vmem [shape: f32[3,2,128], index: 8, kind: input, shape index: {}]
  %s9 = inlined_call_operand.vmem [shape: f32[3,2,128], index: 9, kind: input, shape index: {}]
  %s10 = inlined_call_operand.hbm [shape: f32[2,8,128], index: 10, kind: output, shape index: {0}]
  %s11 = inlined_call_operand.hbm [shape: f32[3,2,128], index: 11, kind: output, shape index: {1}]
  %s12 = inlined_call_operand.hbm [shape: f32[3,2,128], index: 12, kind: output, shape index: {2}]
  %13 = xla_tuple %s10, %s11, %s12
  %s14 = sld [smem:[#allocation0]]
  $region82: #{_lambda_.1} parent=0
    _
  %s16 = ssub.s32 1, %s14
  %s17 = scalar_select 0, %s16, %s14
  $region1: #{_lambda_.1} parent=0
    #allocation3 [shape = 'u8[65536]{0}', space=vmem, size = 0x10000, scoped, tag = 'input window, operand 1, single buffered']
    #allocation4 [shape = 's32[1]{0}', space=sflag, size = 0x4, scoped, tag = 'scoped memory for _lambda_.1']
    #allocation5 [shape = 's32[1]{0}', space=sflag, size = 0x4, scoped, tag = 'scoped memory for _lambda_.1']
    #allocation6 [shape = 'u8[131072]{0}', space=vmem, size = 0x20000, scoped, tag = 'input window, operand 2, single buffered']
    #allocation7 [shape = 's32[1]{0}', space=sflag, size = 0x4, scoped, tag = 'scoped memory for _lambda_.1']
    #allocation8 [shape = 'u8[262144]{0}', space=vmem, size = 0x40000, scoped, tag = 'input window, operand 4, single buffered']
    #allocation9 [shape = 'u8[262144]{0}', space=vmem, size = 0x40000, scoped, tag = 'input window, operand 6, single buffered']
    #allocation10 [shape = 's32[1]{0}', space=sflag, size = 0x4, scoped, tag = 'scoped memory for _lambda_.1']
    #allocation11 [shape = 'u8[8192]{0}', space=vmem, size = 0x2000, scoped, tag = 'output window, operand 0, single buffered']
    #allocation12 [shape = 'u8[3072]{0}', space=vmem, size = 0xc00, scoped, tag = 'output window, operand 1, single buffered']
    #allocation13 [shape = 's32[1]{0}', space=sflag, size = 0x4, scoped, tag = 'scoped memory for _lambda_.1']
    #allocation14 [shape = 'u8[3072]{0}', space=vmem, size = 0xc00, scoped, tag = 'output window, operand 2, single buffered']
    %18 = vsyncpa [#allocation4], 0
    %19 = vsyncpa [#allocation7], 0
    %20 = vsyncpa [#allocation10], 0
    %21 = vsyncpa [#allocation5], 0
    %22 = vsyncpa [#allocation13], 0
    // Predicated region
    $region2: #{_lambda_.1} parent=1 // pred_check
      _
    $region3: #{_lambda_.1} parent=1 // pred_check_branch
      %24 = sbr.rel (0) target = $region5
    $region4: #{_lambda_.1} parent=1 // pred_region
      _
    $region5: #{_lambda_.1} parent=1 // pred_fallthru
      _
    // Predicated region
    $region6: #{_lambda_.1} parent=1 // pred_check
      _
    $region7: #{_lambda_.1} parent=1 // pred_check_branch
      %26 = sbr.rel (0) target = $region9
    $region8: #{_lambda_.1} parent=1 // pred_region
      %s28 = ssub.s32 2048, 2048
      %29 = vsyncadd [#allocation4], %s28
      %s30 = sshll.u32 [#allocation3], 4
      %s31 = int_to_ptr.vmem [resolvable:$true] %s30
      %36 = dma.hbm_to_vmem [thread:$0]  %s1, 2048, %s31, [#allocation4], 256, 256, 16
    $region9: #{_lambda_.1} parent=1 // pred_fallthru
      _
    // Predicated region
    $region10: #{_lambda_.1} parent=1 // pred_check
      _
    $region11: #{_lambda_.1} parent=1 // pred_check_branch
      %38 = sbr.rel (0) target = $region13
    $region12: #{_lambda_.1} parent=1 // pred_region
      %s40 = ssub.s32 4096, 4096
      %41 = vsyncadd [#allocation7], %s40
      %s42 = sshll.u32 [#allocation6], 4
      %s43 = int_to_ptr.vmem [resolvable:$true] %s42
      %48 = dma.hbm_to_vmem [thread:$0]  %s2, 4096, %s43, [#allocation7], 256, 256, 16
    $region13: #{_lambda_.1} parent=1 // pred_fallthru
      _
    // Predicated region
    $region14: #{_lambda_.1} parent=1 // pred_check
      _
    $region15: #{_lambda_.1} parent=1 // pred_check_branch
      %50 = sbr.rel (0) target = $region17
    $region16: #{_lambda_.1} parent=1 // pred_region
      _
    $region17: #{_lambda_.1} parent=1 // pred_fallthru
      _
    // Predicated region
    $region18: #{_lambda_.1} parent=1 // pred_check
      _
    $region19: #{_lambda_.1} parent=1 // pred_check_branch
      %52 = sbr.rel (0) target = $region21
    $region20: #{_lambda_.1} parent=1 // pred_region
      %s54 = ssub.s32 8192, 8192
      %55 = vsyncadd [#allocation7], %s54
      %s56 = sshll.u32 [#allocation8], 4
      %s57 = int_to_ptr.vmem [resolvable:$true] %s56
      %62 = dma.hbm_to_vmem [thread:$0]  %s4, 8192, %s57, [#allocation7], 256, 256, 16
    $region21: #{_lambda_.1} parent=1 // pred_fallthru
      _
    // Predicated region
    $region22: #{_lambda_.1} parent=1 // pred_check
      _
    $region23: #{_lambda_.1} parent=1 // pred_check_branch
      %64 = sbr.rel (0) target = $region25
    $region24: #{_lambda_.1} parent=1 // pred_region
      _
    $region25: #{_lambda_.1} parent=1 // pred_fallthru
      _
    // Predicated region
    $region26: #{_lambda_.1} parent=1 // pred_check
      _
    $region27: #{_lambda_.1} parent=1 // pred_check_branch
      %66 = sbr.rel (0) target = $region29
    $region28: #{_lambda_.1} parent=1 // pred_region
      %s68 = ssub.s32 8192, 8192
      %69 = vsyncadd [#allocation10], %s68
      %s70 = sshll.u32 [#allocation9], 4
      %s71 = int_to_ptr.vmem [resolvable:$true] %s70
      %76 = dma.hbm_to_vmem [thread:$0]  %s6, 8192, %s71, [#allocation10], 256, 256, 16
    $region29: #{_lambda_.1} parent=1 // pred_fallthru
      _
    // Predicated region
    $region30: #{_lambda_.1} parent=1 // pred_check
      _
    $region31: #{_lambda_.1} parent=1 // pred_check_branch
      %78 = sbr.rel (0) target = $region33
    $region32: #{_lambda_.1} parent=1 // pred_region
      _
    $region33: #{_lambda_.1} parent=1 // pred_fallthru
      _
    // Predicated region
    $region34: #{_lambda_.1} parent=1 // pred_check
      _
    $region35: #{_lambda_.1} parent=1 // pred_check_branch
      %80 = sbr.rel (0) target = $region37
    $region36: #{_lambda_.1} parent=1 // pred_region
      _
    $region37: #{_lambda_.1} parent=1 // pred_fallthru
      _
    // Predicated region
    $region38: #{_lambda_.1} parent=1 // pred_check
      _
    $region39: #{_lambda_.1} parent=1 // pred_check_branch
      %82 = sbr.rel (0) target = $region41
    $region40: #{_lambda_.1} parent=1 // pred_region
      _
    $region41: #{_lambda_.1} parent=1 // pred_fallthru
      _
    // Predicated region
    $region42: #{_lambda_.1} parent=1 // pred_check
      _
    $region43: #{_lambda_.1} parent=1 // pred_check_branch
      %84 = sbr.rel (0) target = $region45
    $region44: #{_lambda_.1} parent=1 // pred_region
      %85 = dma.done [#allocation4], 2048
    $region45: #{_lambda_.1} parent=1 // pred_fallthru
      _
    // Predicated region
    $region46: #{_lambda_.1} parent=1 // pred_check
      _
    $region47: #{_lambda_.1} parent=1 // pred_check_branch
      %87 = sbr.rel (0) target = $region49
    $region48: #{_lambda_.1} parent=1 // pred_region
      %88 = dma.done [#allocation7], 4096
    $region49: #{_lambda_.1} parent=1 // pred_fallthru
      _
    // Predicated region
    $region50: #{_lambda_.1} parent=1 // pred_check
      _
    $region51: #{_lambda_.1} parent=1 // pred_check_branch
      %90 = sbr.rel (0) target = $region53
    $region52: #{_lambda_.1} parent=1 // pred_region
      %91 = dma.done [#allocation7], 8192
    $region53: #{_lambda_.1} parent=1 // pred_fallthru
      _
    // Predicated region
    $region54: #{_lambda_.1} parent=1 // pred_check
      _
    $region55: #{_lambda_.1} parent=1 // pred_check_branch
      %93 = sbr.rel (0) target = $region57
    $region56: #{_lambda_.1} parent=1 // pred_region
      %94 = dma.done [#allocation10], 8192
    $region57: #{_lambda_.1} parent=1 // pred_fallthru
      _
    %v96 = vld [vmem:[%s0] sm:$0xff]
    %v97 = vld [vmem:[%s0 + $0x8] sm:$0xff]
    %v98 = vpack.c.bf16 %v97, %v96
    %v99 = vld [vmem:[#allocation3] sm:$0xff]
    %v100 = vld [vmem:[#allocation3 + $0x8] sm:$0xff]
    %v101 = vld [vmem:[#allocation3 + $0x10] sm:$0xff]
    %v102 = vld [vmem:[#allocation3 + $0x18] sm:$0xff]
    %v103 = vld [vmem:[#allocation3 + $0x20] sm:$0xff]
    %v104 = vld [vmem:[#allocation3 + $0x28] sm:$0xff]
    %v105 = vld [vmem:[#allocation3 + $0x30] sm:$0xff]
    %v106 = vld [vmem:[#allocation3 + $0x38] sm:$0xff]
    %v107 = vld [vmem:[#allocation3 + $0x40] sm:$0xff]
    %v108 = vld [vmem:[#allocation3 + $0x48] sm:$0xff]
    %v109 = vld [vmem:[#allocation3 + $0x50] sm:$0xff]
    %v110 = vld [vmem:[#allocation3 + $0x58] sm:$0xff]
    %v111 = vld [vmem:[#allocation3 + $0x60] sm:$0xff]
    %v112 = vld [vmem:[#allocation3 + $0x68] sm:$0xff]
    %v113 = vld [vmem:[#allocation3 + $0x70] sm:$0xff]
    %v114 = vld [vmem:[#allocation3 + $0x78] sm:$0xff]
    %v115 = vld [vmem:[%s3] sm:$0xf]
    %v117 = vlaneseq
    %v118 = vshrl.u32 %v117, 7
    %v119 = vsub.s32 0, %v118
    %v120 = vrot.slane %v115, %v119
    %v121 = vlaneseq
    %v122 = vshrl.u32 %v121, 7
    %v123 = vsub.s32 1, %v122
    %v124 = vrot.slane %v115, %v123
    %v125 = vlaneseq
    %v126 = vshrl.u32 %v125, 7
    %v127 = vsub.s32 2, %v126
    %v128 = vrot.slane %v115, %v127
    %v129 = vlaneseq
    %v130 = vshrl.u32 %v129, 7
    %v131 = vsub.s32 3, %v130
    %v132 = vrot.slane %v115, %v131
    %v153 = vunpack.c.l.b16 %v99
    %v154 = vunpack.c.h.b16 %v99
    %v155 = vunpack.c.l.b16 %v100
    %v156 = vunpack.c.h.b16 %v100
    %v157 = vunpack.c.l.b16 %v101
    %v158 = vunpack.c.h.b16 %v101
    %v159 = vunpack.c.l.b16 %v102
    %v160 = vunpack.c.h.b16 %v102
    %v161 = vunpack.c.l.b16 %v103
    %v162 = vunpack.c.h.b16 %v103
    %v163 = vunpack.c.l.b16 %v104
    %v164 = vunpack.c.h.b16 %v104
    %v165 = vunpack.c.l.b16 %v105
    %v166 = vunpack.c.h.b16 %v105
    %v167 = vunpack.c.l.b16 %v106
    %v168 = vunpack.c.h.b16 %v106
    %v169 = vunpack.c.l.b16 %v107
    %v170 = vunpack.c.h.b16 %v107
    %v171 = vunpack.c.l.b16 %v108
    %v172 = vunpack.c.h.b16 %v108
    %v173 = vunpack.c.l.b16 %v109
    %v174 = vunpack.c.h.b16 %v109
    %v175 = vunpack.c.l.b16 %v110
    %v176 = vunpack.c.h.b16 %v110
    %v177 = vunpack.c.l.b16 %v111
    %v178 = vunpack.c.h.b16 %v111
    %v179 = vunpack.c.l.b16 %v112
    %v180 = vunpack.c.h.b16 %v112
    %v181 = vunpack.c.l.b16 %v113
    %v182 = vunpack.c.h.b16 %v113
    %v183 = vunpack.c.l.b16 %v114
    %v184 = vunpack.c.h.b16 %v114
    %v185 = vpack.c.b16 %v157, %v153
    %v186 = vpack.c.b16 %v158, %v154
    %v187 = vpack.c.b16 %v159, %v155
    %v188 = vpack.c.b16 %v160, %v156
    %v189 = vpack.c.b16 %v165, %v161
    %v190 = vpack.c.b16 %v166, %v162
    %v191 = vpack.c.b16 %v167, %v163
    %v192 = vpack.c.b16 %v168, %v164
    %v193 = vpack.c.b16 %v173, %v169
    %v194 = vpack.c.b16 %v174, %v170
    %v195 = vpack.c.b16 %v175, %v171
    %v196 = vpack.c.b16 %v176, %v172
    %v197 = vpack.c.b16 %v181, %v177
    %v198 = vpack.c.b16 %v182, %v178
    %v199 = vpack.c.b16 %v183, %v179
    %v200 = vpack.c.b16 %v184, %v180
    %vm217 = vcmask 523264
    %v219 = vsel %vm217, %v98, 0
    %221 = vmatprep.subr.bf16.mxu0 0
    %222 = vmatpush1.bf16.msra.mxu0 0
    %223 = vmatprep.subr.bf16.mxu0 0
    %224 = vmatpush1.bf16.msra.mxu0 0
    %225 = vmatprep.subr.bf16.mxu0 0
    %226 = vmatpush1.bf16.msra.mxu0 0
    %227 = vmatprep.subr.bf16.mxu0 0
    %228 = vmatpush1.bf16.msra.mxu0 0
    %229 = vmatprep.subr.bf16.mxu0 %v198
    %230 = vmatpush1.bf16.msra.mxu0 %v197
    %231 = vmatprep.subr.bf16.mxu0 %v194
    %232 = vmatpush1.bf16.msra.mxu0 %v193
    %233 = vmatprep.subr.bf16.mxu0 %v190
    %234 = vmatpush1.bf16.msra.mxu0 %v189
    %235 = vmatprep.subr.bf16.mxu0 %v186
    %236 = vmatpush1.bf16.msra.mxu0 %v185
    %237 = vmatprep.subr.bf16.mxu0 0
    %238 = vmatpush2.bf16.msra.mxu0 0
    %239 = vmatprep.subr.bf16.mxu0 0
    %240 = vmatpush2.bf16.msra.mxu0 0
    %241 = vmatprep.subr.bf16.mxu0 0
    %242 = vmatpush2.bf16.msra.mxu0 0
    %243 = vmatprep.subr.bf16.mxu0 0
    %244 = vmatpush2.bf16.msra.mxu0 0
    %245 = vmatprep.subr.bf16.mxu0 0
    %246 = vmatpush2.bf16.msra.mxu0 0
    %247 = vmatprep.subr.bf16.mxu0 0
    %248 = vmatpush2.bf16.msra.mxu0 0
    %249 = vmatprep.subr.bf16.mxu0 0
    %250 = vmatpush2.bf16.msra.mxu0 0
    %251 = vmatprep.subr.bf16.mxu0 0
    %252 = vmatpush2.bf16.msra.mxu0 0
    %253 = vmatprep.mubr.bf16.mxu0 0
    %254 = vmatmul.mubr.bf16.gmra.mxu0 %v219
    %v255 = vpop.f32.mrf.mxu0
    %v256 = vadd.f32 %v120, %v255
    %v257 = vpop.f32.mrf.mxu0
    %v258 = vadd.f32 %v124, %v257
    %v259 = vpop.f32.mrf.mxu0
    %v260 = vadd.f32 %v120, %v259
    %v261 = vpop.f32.mrf.mxu0
    %v262 = vadd.f32 %v124, %v261
    %263 = vdwg.mxu0
    %264 = vmatprep.subr.bf16.mxu0 0
    %265 = vmatpush1.bf16.msra.mxu0 0
    %266 = vmatprep.subr.bf16.mxu0 0
    %267 = vmatpush1.bf16.msra.mxu0 0
    %268 = vmatprep.subr.bf16.mxu0 0
    %269 = vmatpush1.bf16.msra.mxu0 0
    %270 = vmatprep.subr.bf16.mxu0 0
    %271 = vmatpush1.bf16.msra.mxu0 0
    %272 = vmatprep.subr.bf16.mxu0 %v200
    %273 = vmatpush1.bf16.msra.mxu0 %v199
    %274 = vmatprep.subr.bf16.mxu0 %v196
    %275 = vmatpush1.bf16.msra.mxu0 %v195
    %276 = vmatprep.subr.bf16.mxu0 %v192
    %277 = vmatpush1.bf16.msra.mxu0 %v191
    %278 = vmatprep.subr.bf16.mxu0 %v188
    %279 = vmatpush1.bf16.msra.mxu0 %v187
    %280 = vmatprep.subr.bf16.mxu0 0
    %281 = vmatpush2.bf16.msra.mxu0 0
    %282 = vmatprep.subr.bf16.mxu0 0
    %283 = vmatpush2.bf16.msra.mxu0 0
    %284 = vmatprep.subr.bf16.mxu0 0
    %285 = vmatpush2.bf16.msra.mxu0 0
    %286 = vmatprep.subr.bf16.mxu0 0
    %287 = vmatpush2.bf16.msra.mxu0 0
    %288 = vmatprep.subr.bf16.mxu0 0
    %289 = vmatpush2.bf16.msra.mxu0 0
    %290 = vmatprep.subr.bf16.mxu0 0
    %291 = vmatpush2.bf16.msra.mxu0 0
    %292 = vmatprep.subr.bf16.mxu0 0
    %293 = vmatpush2.bf16.msra.mxu0 0
    %294 = vmatprep.subr.bf16.mxu0 0
    %295 = vmatpush2.bf16.msra.mxu0 0
    %296 = vmatprep.mubr.bf16.mxu0 0
    %297 = vmatmul.mubr.bf16.gmra.mxu0 %v219
    %v298 = vpop.f32.mrf.mxu0
    %v299 = vadd.f32 %v128, %v298
    %v300 = vpop.f32.mrf.mxu0
    %v301 = vadd.f32 %v132, %v300
    %v302 = vpop.f32.mrf.mxu0
    %v303 = vadd.f32 %v128, %v302
    %v304 = vpop.f32.mrf.mxu0
    %v305 = vadd.f32 %v132, %v304
    %306 = vdwg.mxu0
    %307 = vst [vmem:[#allocation2] sm:$0xff] %v256
    %308 = vst [vmem:[#allocation2 + $0x8] sm:$0xff] %v258
    %309 = vst [vmem:[#allocation2 + $0x10] sm:$0xff] %v299
    %310 = vst [vmem:[#allocation2 + $0x18] sm:$0xff] %v301
    %311 = vst [vmem:[#allocation2 + $0x20] sm:$0xff] %v260
    %312 = vst [vmem:[#allocation2 + $0x28] sm:$0xff] %v262
    %313 = vst [vmem:[#allocation2 + $0x30] sm:$0xff] %v303
    %314 = vst [vmem:[#allocation2 + $0x38] sm:$0xff] %v305
    %v315 = vld [vmem:[#allocation6] sm:$0xff]
    %v316 = vld [vmem:[#allocation6 + $0x8] sm:$0xff]
    %v317 = vld [vmem:[#allocation6 + $0x10] sm:$0xff]
    %v318 = vld [vmem:[#allocation6 + $0x18] sm:$0xff]
    %v319 = vld [vmem:[#allocation6 + $0x20] sm:$0xff]
    %v320 = vld [vmem:[#allocation6 + $0x28] sm:$0xff]
    %v321 = vld [vmem:[#allocation6 + $0x30] sm:$0xff]
    %v322 = vld [vmem:[#allocation6 + $0x38] sm:$0xff]
    %v323 = vld [vmem:[#allocation6 + $0x40] sm:$0xff]
    %v324 = vld [vmem:[#allocation6 + $0x48] sm:$0xff]
    %v325 = vld [vmem:[#allocation6 + $0x50] sm:$0xff]
    %v326 = vld [vmem:[#allocation6 + $0x58] sm:$0xff]
    %v327 = vld [vmem:[#allocation6 + $0x60] sm:$0xff]
    %v328 = vld [vmem:[#allocation6 + $0x68] sm:$0xff]
    %v329 = vld [vmem:[#allocation6 + $0x70] sm:$0xff]
    %v330 = vld [vmem:[#allocation6 + $0x78] sm:$0xff]
    %v331 = vld [vmem:[#allocation6 + $0x80] sm:$0xff]
    %v332 = vld [vmem:[#allocation6 + $0x88] sm:$0xff]
    %v333 = vld [vmem:[#allocation6 + $0x90] sm:$0xff]
    %v334 = vld [vmem:[#allocation6 + $0x98] sm:$0xff]
    %v335 = vld [vmem:[#allocation6 + $0xa0] sm:$0xff]
    %v336 = vld [vmem:[#allocation6 + $0xa8] sm:$0xff]
    %v337 = vld [vmem:[#allocation6 + $0xb0] sm:$0xff]
    %v338 = vld [vmem:[#allocation6 + $0xb8] sm:$0xff]
    %v339 = vld [vmem:[#allocation6 + $0xc0] sm:$0xff]
    %v340 = vld [vmem:[#allocation6 + $0xc8] sm:$0xff]
    %v341 = vld [vmem:[#allocation6 + $0xd0] sm:$0xff]
    %v342 = vld [vmem:[#allocation6 + $0xd8] sm:$0xff]
    %v343 = vld [vmem:[#allocation6 + $0xe0] sm:$0xff]
    %v344 = vld [vmem:[#allocation6 + $0xe8] sm:$0xff]
    %v345 = vld [vmem:[#allocation6 + $0xf0] sm:$0xff]
    %v346 = vld [vmem:[#allocation6 + $0xf8] sm:$0xff]
    %v347 = vld [vmem:[#allocation8] sm:$0xff]
    %v348 = vld [vmem:[#allocation8 + $0x8] sm:$0xff]
    %v349 = vld [vmem:[#allocation8 + $0x10] sm:$0xff]
    %v350 = vld [vmem:[#allocation8 + $0x18] sm:$0xff]
    %v351 = vld [vmem:[#allocation8 + $0x20] sm:$0xff]
    %v352 = vld [vmem:[#allocation8 + $0x28] sm:$0xff]
    %v353 = vld [vmem:[#allocation8 + $0x30] sm:$0xff]
    %v354 = vld [vmem:[#allocation8 + $0x38] sm:$0xff]
    %v355 = vld [vmem:[#allocation8 + $0x40] sm:$0xff]
    %v356 = vld [vmem:[#allocation8 + $0x48] sm:$0xff]
    %v357 = vld [vmem:[#allocation8 + $0x50] sm:$0xff]
    %v358 = vld [vmem:[#allocation8 + $0x58] sm:$0xff]
    %v359 = vld [vmem:[#allocation8 + $0x60] sm:$0xff]
    %v360 = vld [vmem:[#allocation8 + $0x68] sm:$0xff]
    %v361 = vld [vmem:[#allocation8 + $0x70] sm:$0xff]
    %v362 = vld [vmem:[#allocation8 + $0x78] sm:$0xff]
    %v363 = vld [vmem:[#allocation8 + $0x80] sm:$0xff]
    %v364 = vld [vmem:[#allocation8 + $0x88] sm:$0xff]
    %v365 = vld [vmem:[#allocation8 + $0x90] sm:$0xff]
    %v366 = vld [vmem:[#allocation8 + $0x98] sm:$0xff]
    %v367 = vld [vmem:[#allocation8 + $0xa0] sm:$0xff]
    %v368 = vld [vmem:[#allocation8 + $0xa8] sm:$0xff]
    %v369 = vld [vmem:[#allocation8 + $0xb0] sm:$0xff]
    %v370 = vld [vmem:[#allocation8 + $0xb8] sm:$0xff]
    %v371 = vld [vmem:[#allocation8 + $0xc0] sm:$0xff]
    %v372 = vld [vmem:[#allocation8 + $0xc8] sm:$0xff]
    %v373 = vld [vmem:[#allocation8 + $0xd0] sm:$0xff]
    %v374 = vld [vmem:[#allocation8 + $0xd8] sm:$0xff]
    %v375 = vld [vmem:[#allocation8 + $0xe0] sm:$0xff]
    %v376 = vld [vmem:[#allocation8 + $0xe8] sm:$0xff]
    %v377 = vld [vmem:[#allocation8 + $0xf0] sm:$0xff]
    %v378 = vld [vmem:[#allocation8 + $0xf8] sm:$0xff]
    %v379 = vld [vmem:[#allocation8 + $0x100] sm:$0xff]
    %v380 = vld [vmem:[#allocation8 + $0x108] sm:$0xff]
    %v381 = vld [vmem:[#allocation8 + $0x110] sm:$0xff]
    %v382 = vld [vmem:[#allocation8 + $0x118] sm:$0xff]
    %v383 = vld [vmem:[#allocation8 + $0x120] sm:$0xff]
    %v384 = vld [vmem:[#allocation8 + $0x128] sm:$0xff]
    %v385 = vld [vmem:[#allocation8 + $0x130] sm:$0xff]
    %v386 = vld [vmem:[#allocation8 + $0x138] sm:$0xff]
    %v387 = vld [vmem:[#allocation8 + $0x140] sm:$0xff]
    %v388 = vld [vmem:[#allocation8 + $0x148] sm:$0xff]
    %v389 = vld [vmem:[#allocation8 + $0x150] sm:$0xff]
    %v390 = vld [vmem:[#allocation8 + $0x158] sm:$0xff]
    %v391 = vld [vmem:[#allocation8 + $0x160] sm:$0xff]
    %v392 = vld [vmem:[#allocation8 + $0x168] sm:$0xff]
    %v393 = vld [vmem:[#allocation8 + $0x170] sm:$0xff]
    %v394 = vld [vmem:[#allocation8 + $0x178] sm:$0xff]
    %v395 = vld [vmem:[#allocation8 + $0x180] sm:$0xff]
    %v396 = vld [vmem:[#allocation8 + $0x188] sm:$0xff]
    %v397 = vld [vmem:[#allocation8 + $0x190] sm:$0xff]
    %v398 = vld [vmem:[#allocation8 + $0x198] sm:$0xff]
    %v399 = vld [vmem:[#allocation8 + $0x1a0] sm:$0xff]
    %v400 = vld [vmem:[#allocation8 + $0x1a8] sm:$0xff]
    %v401 = vld [vmem:[#allocation8 + $0x1b0] sm:$0xff]
    %v402 = vld [vmem:[#allocation8 + $0x1b8] sm:$0xff]
    %v403 = vld [vmem:[#allocation8 + $0x1c0] sm:$0xff]
    %v404 = vld [vmem:[#allocation8 + $0x1c8] sm:$0xff]
    %v405 = vld [vmem:[#allocation8 + $0x1d0] sm:$0xff]
    %v406 = vld [vmem:[#allocation8 + $0x1d8] sm:$0xff]
    %v407 = vld [vmem:[#allocation8 + $0x1e0] sm:$0xff]
    %v408 = vld [vmem:[#allocation8 + $0x1e8] sm:$0xff]
    %v409 = vld [vmem:[#allocation8 + $0x1f0] sm:$0xff]
    %v410 = vld [vmem:[#allocation8 + $0x1f8] sm:$0xff]
    %v411 = vld [vmem:[#allocation9] sm:$0xff]
    %v412 = vld [vmem:[#allocation9 + $0x8] sm:$0xff]
    %v413 = vld [vmem:[#allocation9 + $0x10] sm:$0xff]
    %v414 = vld [vmem:[#allocation9 + $0x18] sm:$0xff]
    %v415 = vld [vmem:[#allocation9 + $0x20] sm:$0xff]
    %v416 = vld [vmem:[#allocation9 + $0x28] sm:$0xff]
    %v417 = vld [vmem:[#allocation9 + $0x30] sm:$0xff]
    %v418 = vld [vmem:[#allocation9 + $0x38] sm:$0xff]
    %v419 = vld [vmem:[#allocation9 + $0x40] sm:$0xff]
    %v420 = vld [vmem:[#allocation9 + $0x48] sm:$0xff]
    %v421 = vld [vmem:[#allocation9 + $0x50] sm:$0xff]
    %v422 = vld [vmem:[#allocation9 + $0x58] sm:$0xff]
    %v423 = vld [vmem:[#allocation9 + $0x60] sm:$0xff]
    %v424 = vld [vmem:[#allocation9 + $0x68] sm:$0xff]
    %v425 = vld [vmem:[#allocation9 + $0x70] sm:$0xff]
    %v426 = vld [vmem:[#allocation9 + $0x78] sm:$0xff]
    %v427 = vld [vmem:[#allocation9 + $0x80] sm:$0xff]
    %v428 = vld [vmem:[#allocation9 + $0x88] sm:$0xff]
    %v429 = vld [vmem:[#allocation9 + $0x90] sm:$0xff]
    %v430 = vld [vmem:[#allocation9 + $0x98] sm:$0xff]
    %v431 = vld [vmem:[#allocation9 + $0xa0] sm:$0xff]
    %v432 = vld [vmem:[#allocation9 + $0xa8] sm:$0xff]
    %v433 = vld [vmem:[#allocation9 + $0xb0] sm:$0xff]
    %v434 = vld [vmem:[#allocation9 + $0xb8] sm:$0xff]
    %v435 = vld [vmem:[#allocation9 + $0xc0] sm:$0xff]
    %v436 = vld [vmem:[#allocation9 + $0xc8] sm:$0xff]
    %v437 = vld [vmem:[#allocation9 + $0xd0] sm:$0xff]
    %v438 = vld [vmem:[#allocation9 + $0xd8] sm:$0xff]
    %v439 = vld [vmem:[#allocation9 + $0xe0] sm:$0xff]
    %v440 = vld [vmem:[#allocation9 + $0xe8] sm:$0xff]
    %v441 = vld [vmem:[#allocation9 + $0xf0] sm:$0xff]
    %v442 = vld [vmem:[#allocation9 + $0xf8] sm:$0xff]
    %v443 = vld [vmem:[#allocation9 + $0x100] sm:$0xff]
    %v444 = vld [vmem:[#allocation9 + $0x108] sm:$0xff]
    %v445 = vld [vmem:[#allocation9 + $0x110] sm:$0xff]
    %v446 = vld [vmem:[#allocation9 + $0x118] sm:$0xff]
    %v447 = vld [vmem:[#allocation9 + $0x120] sm:$0xff]
    %v448 = vld [vmem:[#allocation9 + $0x128] sm:$0xff]
    %v449 = vld [vmem:[#allocation9 + $0x130] sm:$0xff]
    %v450 = vld [vmem:[#allocation9 + $0x138] sm:$0xff]
    %v451 = vld [vmem:[#allocation9 + $0x140] sm:$0xff]
    %v452 = vld [vmem:[#allocation9 + $0x148] sm:$0xff]
    %v453 = vld [vmem:[#allocation9 + $0x150] sm:$0xff]
    %v454 = vld [vmem:[#allocation9 + $0x158] sm:$0xff]
    %v455 = vld [vmem:[#allocation9 + $0x160] sm:$0xff]
    %v456 = vld [vmem:[#allocation9 + $0x168] sm:$0xff]
    %v457 = vld [vmem:[#allocation9 + $0x170] sm:$0xff]
    %v458 = vld [vmem:[#allocation9 + $0x178] sm:$0xff]
    %v459 = vld [vmem:[#allocation9 + $0x180] sm:$0xff]
    %v460 = vld [vmem:[#allocation9 + $0x188] sm:$0xff]
    %v461 = vld [vmem:[#allocation9 + $0x190] sm:$0xff]
    %v462 = vld [vmem:[#allocation9 + $0x198] sm:$0xff]
    %v463 = vld [vmem:[#allocation9 + $0x1a0] sm:$0xff]
    %v464 = vld [vmem:[#allocation9 + $0x1a8] sm:$0xff]
    %v465 = vld [vmem:[#allocation9 + $0x1b0] sm:$0xff]
    %v466 = vld [vmem:[#allocation9 + $0x1b8] sm:$0xff]
    %v467 = vld [vmem:[#allocation9 + $0x1c0] sm:$0xff]
    %v468 = vld [vmem:[#allocation9 + $0x1c8] sm:$0xff]
    %v469 = vld [vmem:[#allocation9 + $0x1d0] sm:$0xff]
    %v470 = vld [vmem:[#allocation9 + $0x1d8] sm:$0xff]
    %v471 = vld [vmem:[#allocation9 + $0x1e0] sm:$0xff]
    %v472 = vld [vmem:[#allocation9 + $0x1e8] sm:$0xff]
    %v473 = vld [vmem:[#allocation9 + $0x1f0] sm:$0xff]
    %v474 = vld [vmem:[#allocation9 + $0x1f8] sm:$0xff]
    %v475 = vld [vmem:[%s5] sm:$0xf]
    %v476 = vld [vmem:[%s7] sm:$0xf]
    %v477 = vld [vmem:[%s8] sm:$0x3]
    %s478 = scalar_lea.vmem %s8, 2
    %v479 = vld [vmem:[%s478] sm:$0x3]
    %s480 = scalar_lea.vmem %s8, 4
    %v481 = vld [vmem:[%s480] sm:$0x3]
    %v482 = vld [vmem:[%s9] sm:$0x3]
    %s483 = scalar_lea.vmem %s9, 2
    %v484 = vld [vmem:[%s483] sm:$0x3]
    %s485 = scalar_lea.vmem %s9, 4
    %v486 = vld [vmem:[%s485] sm:$0x3]
    %v487 = vld [vmem:[#allocation2] ss:$8 sm:$0xf]
    %s488 = scalar_lea.vmem [#allocation2], 32
    %v489 = vld [vmem:[%s488] ss:$8 sm:$0xf]
    %v490 = vpack.c.bf16 %v477, %v477
    %v523 = vunpack.c.l.b16 %v315
    %v524 = vunpack.c.h.b16 %v315
    %v525 = vunpack.c.l.b16 %v316
    %v526 = vunpack.c.h.b16 %v316
    %v527 = vunpack.c.l.b16 %v317
    %v528 = vunpack.c.h.b16 %v317
    %v529 = vunpack.c.l.b16 %v318
    %v530 = vunpack.c.h.b16 %v318
    %v531 = vunpack.c.l.b16 %v319
    %v532 = vunpack.c.h.b16 %v319
    %v533 = vunpack.c.l.b16 %v320
    %v534 = vunpack.c.h.b16 %v320
    %v535 = vunpack.c.l.b16 %v321
    %v536 = vunpack.c.h.b16 %v321
    %v537 = vunpack.c.l.b16 %v322
    %v538 = vunpack.c.h.b16 %v322
    %v539 = vunpack.c.l.b16 %v323
    %v540 = vunpack.c.h.b16 %v323
    %v541 = vunpack.c.l.b16 %v324
    %v542 = vunpack.c.h.b16 %v324
    %v543 = vunpack.c.l.b16 %v325
    %v544 = vunpack.c.h.b16 %v325
    %v545 = vunpack.c.l.b16 %v326
    %v546 = vunpack.c.h.b16 %v326
    %v547 = vunpack.c.l.b16 %v327
    %v548 = vunpack.c.h.b16 %v327
    %v549 = vunpack.c.l.b16 %v328
    %v550 = vunpack.c.h.b16 %v328
    %v551 = vunpack.c.l.b16 %v329
    %v552 = vunpack.c.h.b16 %v329
    %v553 = vunpack.c.l.b16 %v330
    %v554 = vunpack.c.h.b16 %v330
    %v555 = vunpack.c.l.b16 %v331
    %v556 = vunpack.c.h.b16 %v331
    %v557 = vunpack.c.l.b16 %v332
    %v558 = vunpack.c.h.b16 %v332
    %v559 = vunpack.c.l.b16 %v333
    %v560 = vunpack.c.h.b16 %v333
    %v561 = vunpack.c.l.b16 %v334
    %v562 = vunpack.c.h.b16 %v334
    %v563 = vunpack.c.l.b16 %v335
    %v564 = vunpack.c.h.b16 %v335
    %v565 = vunpack.c.l.b16 %v336
    %v566 = vunpack.c.h.b16 %v336
    %v567 = vunpack.c.l.b16 %v337
    %v568 = vunpack.c.h.b16 %v337
    %v569 = vunpack.c.l.b16 %v338
    %v570 = vunpack.c.h.b16 %v338
    %v571 = vunpack.c.l.b16 %v339
    %v572 = vunpack.c.h.b16 %v339
    %v573 = vunpack.c.l.b16 %v340
    %v574 = vunpack.c.h.b16 %v340
    %v575 = vunpack.c.l.b16 %v341
    %v576 = vunpack.c.h.b16 %v341
    %v577 = vunpack.c.l.b16 %v342
    %v578 = vunpack.c.h.b16 %v342
    %v579 = vunpack.c.l.b16 %v343
    %v580 = vunpack.c.h.b16 %v343
    %v581 = vunpack.c.l.b16 %v344
    %v582 = vunpack.c.h.b16 %v344
    %v583 = vunpack.c.l.b16 %v345
    %v584 = vunpack.c.h.b16 %v345
    %v585 = vunpack.c.l.b16 %v346
    %v586 = vunpack.c.h.b16 %v346
    %v587 = vpack.c.b16 %v527, %v523
    %v588 = vpack.c.b16 %v528, %v524
    %v589 = vpack.c.b16 %v529, %v525
    %v590 = vpack.c.b16 %v530, %v526
    %v591 = vpack.c.b16 %v535, %v531
    %v592 = vpack.c.b16 %v536, %v532
    %v593 = vpack.c.b16 %v537, %v533
    %v594 = vpack.c.b16 %v538, %v534
    %v595 = vpack.c.b16 %v543, %v539
    %v596 = vpack.c.b16 %v544, %v540
    %v597 = vpack.c.b16 %v545, %v541
    %v598 = vpack.c.b16 %v546, %v542
    %v599 = vpack.c.b16 %v551, %v547
    %v600 = vpack.c.b16 %v552, %v548
    %v601 = vpack.c.b16 %v553, %v549
    %v602 = vpack.c.b16 %v554, %v550
    %v603 = vpack.c.b16 %v559, %v555
    %v604 = vpack.c.b16 %v560, %v556
    %v605 = vpack.c.b16 %v561, %v557
    %v606 = vpack.c.b16 %v562, %v558
    %v607 = vpack.c.b16 %v567, %v563
    %v608 = vpack.c.b16 %v568, %v564
    %v609 = vpack.c.b16 %v569, %v565
    %v610 = vpack.c.b16 %v570, %v566
    %v611 = vpack.c.b16 %v575, %v571
    %v612 = vpack.c.b16 %v576, %v572
    %v613 = vpack.c.b16 %v577, %v573
    %v614 = vpack.c.b16 %v578, %v574
    %v615 = vpack.c.b16 %v583, %v579
    %v616 = vpack.c.b16 %v584, %v580
    %v617 = vpack.c.b16 %v585, %v581
    %v618 = vpack.c.b16 %v586, %v582
    %651 = vmatprep.subr.bf16.mxu0 %v616
    %652 = vmatpush1.bf16.msra.mxu0 %v615
    %653 = vmatprep.subr.bf16.mxu0 %v612
    %654 = vmatpush1.bf16.msra.mxu0 %v611
    %655 = vmatprep.subr.bf16.mxu0 %v608
    %656 = vmatpush1.bf16.msra.mxu0 %v607
    %657 = vmatprep.subr.bf16.mxu0 %v604
    %658 = vmatpush1.bf16.msra.mxu0 %v603
    %659 = vmatprep.subr.bf16.mxu0 %v600
    %660 = vmatpush1.bf16.msra.mxu0 %v599
    %661 = vmatprep.subr.bf16.mxu0 %v596
    %662 = vmatpush1.bf16.msra.mxu0 %v595
    %663 = vmatprep.subr.bf16.mxu0 %v592
    %664 = vmatpush1.bf16.msra.mxu0 %v591
    %665 = vmatprep.subr.bf16.mxu0 %v588
    %666 = vmatpush1.bf16.msra.mxu0 %v587
    %667 = vmatprep.subr.bf16.mxu0 0
    %668 = vmatpush2.bf16.msra.mxu0 0
    %669 = vmatprep.subr.bf16.mxu0 0
    %670 = vmatpush2.bf16.msra.mxu0 0
    %671 = vmatprep.subr.bf16.mxu0 0
    %672 = vmatpush2.bf16.msra.mxu0 0
    %673 = vmatprep.subr.bf16.mxu0 0
    %674 = vmatpush2.bf16.msra.mxu0 0
    %675 = vmatprep.subr.bf16.mxu0 0
    %676 = vmatpush2.bf16.msra.mxu0 0
    %677 = vmatprep.subr.bf16.mxu0 0
    %678 = vmatpush2.bf16.msra.mxu0 0
    %679 = vmatprep.subr.bf16.mxu0 0
    %680 = vmatpush2.bf16.msra.mxu0 0
    %681 = vmatprep.subr.bf16.mxu0 0
    %682 = vmatpush2.bf16.msra.mxu0 0
    %683 = vmatprep.mubr.bf16.mxu0 0
    %684 = vmatmul.mubr.bf16.gmra.mxu0 %v490
    %v685 = vpop.f32.mrf.mxu0
    %v686 = vadd.f32 0.0, %v685
    %v687 = vpop.f32.mrf.mxu0
    %v688 = vadd.f32 0.0, %v687
    %v689 = vpop.f32.mrf.mxu0
    %v690 = vpop.f32.mrf.mxu0
    %691 = vdwg.mxu0
    %692 = vmatprep.subr.bf16.mxu0 %v618
    %693 = vmatpush1.bf16.msra.mxu0 %v617
    %694 = vmatprep.subr.bf16.mxu0 %v614
    %695 = vmatpush1.bf16.msra.mxu0 %v613
    %696 = vmatprep.subr.bf16.mxu0 %v610
    %697 = vmatpush1.bf16.msra.mxu0 %v609
    %698 = vmatprep.subr.bf16.mxu0 %v606
    %699 = vmatpush1.bf16.msra.mxu0 %v605
    %700 = vmatprep.subr.bf16.mxu0 %v602
    %701 = vmatpush1.bf16.msra.mxu0 %v601
    %702 = vmatprep.subr.bf16.mxu0 %v598
    %703 = vmatpush1.bf16.msra.mxu0 %v597
    %704 = vmatprep.subr.bf16.mxu0 %v594
    %705 = vmatpush1.bf16.msra.mxu0 %v593
    %706 = vmatprep.subr.bf16.mxu0 %v590
    %707 = vmatpush1.bf16.msra.mxu0 %v589
    %708 = vmatprep.subr.bf16.mxu0 0
    %709 = vmatpush2.bf16.msra.mxu0 0
    %710 = vmatprep.subr.bf16.mxu0 0
    %711 = vmatpush2.bf16.msra.mxu0 0
    %712 = vmatprep.subr.bf16.mxu0 0
    %713 = vmatpush2.bf16.msra.mxu0 0
    %714 = vmatprep.subr.bf16.mxu0 0
    %715 = vmatpush2.bf16.msra.mxu0 0
    %716 = vmatprep.subr.bf16.mxu0 0
    %717 = vmatpush2.bf16.msra.mxu0 0
    %718 = vmatprep.subr.bf16.mxu0 0
    %719 = vmatpush2.bf16.msra.mxu0 0
    %720 = vmatprep.subr.bf16.mxu0 0
    %721 = vmatpush2.bf16.msra.mxu0 0
    %722 = vmatprep.subr.bf16.mxu0 0
    %723 = vmatpush2.bf16.msra.mxu0 0
    %724 = vmatprep.mubr.bf16.mxu0 0
    %725 = vmatmul.mubr.bf16.gmra.mxu0 %v490
    %v726 = vpop.f32.mrf.mxu0
    %v727 = vadd.f32 0.0, %v726
    %v728 = vpop.f32.mrf.mxu0
    %v729 = vadd.f32 0.0, %v728
    %v730 = vpop.f32.mrf.mxu0
    %v731 = vpop.f32.mrf.mxu0
    %732 = vdwg.mxu0
    %v737 = vcombine.low %v686, %v688
    %v738 = vcombine.low %v727, %v729
    %v740 = vunpack.c.l.s4 1966171168
    %v741 = vunpack.c.0.s8 %v740
    %v742 = vlaneseq
    %v743 = vshrl.u32 %v742, 7
    %v744 = vsub.s32 %v741, %v743
    %v745 = vrot.slane %v737, %v744
    %v747 = vunpack.c.l.s4 1966171168
    %v748 = vunpack.c.0.s8 %v747
    %v749 = vlaneseq
    %v750 = vshrl.u32 %v749, 7
    %v751 = vsub.s32 %v748, %v750
    %v752 = vrot.slane %v738, %v751
    %v753 = vcombine.low %v745, %v752
    %v754 = vcombine.high %v745, %v752
    %v756 = vunpack.c.l.s4 1966171168
    %v757 = vunpack.c.0.s8 %v756
    %v758 = vlaneseq
    %v759 = vshrl.u32 %v758, 7
    %v760 = vsub.s32 %v757, %v759
    %v761 = vrot.slane %v753, %v760
    %v763 = vunpack.c.l.s4 1966171168
    %v764 = vunpack.c.0.s8 %v763
    %v765 = vlaneseq
    %v766 = vshrl.u32 %v765, 7
    %v767 = vsub.s32 %v764, %v766
    %v768 = vrot.slane %v754, %v767
    %v771 = vadd.f32 %v487, %v761
    %v772 = vadd.f32 %v489, %v768
    %v773 = vxor.u32 %v771, 2147483648
    %v774 = vxor.u32 %v772, 2147483648
    %v775 = vmul.f32 %v773, 1.442695
    %v776 = vpow.pop %v775
    %v777 = vmul.f32 %v774, 1.442695
    %v778 = vpow.pop %v777
    %v779 = vadd.f32 %v776, 1.0
    %v780 = vadd.f32 %v778, 1.0
    %v781 = vrcp.pop %v779
    %v782 = vmul.f32 1.0, %v781
    %v783 = vrcp.pop %v780
    %v784 = vmul.f32 1.0, %v783
    %v787 = vrot.slane %v771, 1
    %v788 = vrot.slane %v772, 1
    %v791 = vxor.u32 %v787, 2147483648
    %v792 = vxor.u32 %v788, 2147483648
    %v793 = vmul.f32 %v791, 1.442695
    %v794 = vpow.pop %v793
    %v795 = vmul.f32 %v792, 1.442695
    %v796 = vpow.pop %v795
    %v797 = vadd.f32 %v794, 1.0
    %v798 = vadd.f32 %v796, 1.0
    %v799 = vrcp.pop %v797
    %v800 = vmul.f32 1.0, %v799
    %v801 = vrcp.pop %v798
    %v802 = vmul.f32 1.0, %v801
    %v803 = vrot.slane %v771, 2
    %v804 = vrot.slane %v772, 2
    %v807 = vtanh.pop %v803
    %v808 = vtanh.pop %v804
    %v809 = vrot.slane %v771, 3
    %v810 = vrot.slane %v772, 3
    %v813 = vxor.u32 %v809, 2147483648
    %v814 = vxor.u32 %v810, 2147483648
    %v815 = vmul.f32 %v813, 1.442695
    %v816 = vpow.pop %v815
    %v817 = vmul.f32 %v814, 1.442695
    %v818 = vpow.pop %v817
    %v819 = vadd.f32 %v816, 1.0
    %v820 = vadd.f32 %v818, 1.0
    %v821 = vrcp.pop %v819
    %v822 = vmul.f32 1.0, %v821
    %v823 = vrcp.pop %v820
    %v824 = vmul.f32 1.0, %v823
    %v827 = vunpack.c.l.s4 1966171168
    %v828 = vunpack.c.0.s8 %v827
    %v829 = vlaneseq
    %v830 = vshrl.u32 %v829, 7
    %v831 = vsub.s32 %v828, %v830
    %v832 = vrot.slane %v482, %v831
    %v833 = vcombine.high %v832, %v832
    %v835 = vunpack.c.l.s4 1966171168
    %v836 = vunpack.c.0.s8 %v835
    %v837 = vlaneseq
    %v838 = vshrl.u32 %v837, 7
    %v839 = vsub.s32 %v836, %v838
    %v840 = vrot.slane %v832, %v839
    %v842 = vunpack.c.l.s4 1966171168
    %v843 = vunpack.c.0.s8 %v842
    %v844 = vlaneseq
    %v845 = vshrl.u32 %v844, 7
    %v846 = vsub.s32 %v843, %v845
    %v847 = vrot.slane %v833, %v846
    %v850 = vmul.f32 %v800, %v840
    %v851 = vmul.f32 %v802, %v847
    %v852 = vmul.f32 %v782, %v807
    %v853 = vmul.f32 %v784, %v808
    %v854 = vadd.f32 %v850, %v852
    %v855 = vadd.f32 %v851, %v853
    %v856 = vtanh.pop %v854
    %v857 = vtanh.pop %v855
    %v858 = vmul.f32 %v822, %v856
    %v859 = vmul.f32 %v824, %v857
    %s860 = scalar_lea.vmem [#allocation2], 1
    %v861 = vld [vmem:[%s860] ss:$8 sm:$0xf]
    %s862 = scalar_lea.vmem [#allocation2], 33
    %v863 = vld [vmem:[%s862] ss:$8 sm:$0xf]
    %v864 = vpack.c.bf16 %v858, %v858
    %v865 = vpack.c.bf16 %v859, %v859
    %v868 = vunpack.c.l.b16 %v864
    %v869 = vunpack.c.l.b16 %v865
    %v870 = vrot.slane %v869, 7
    %vm871 = vcmask 1041409
    %v872 = vsel %vm871, %v870, %v868
    %v873 = vpack.c.b16 %v872, %v872
    %875 = vmatprep.subr.bf16.mxu0 %v616
    %876 = vmatpush1.bf16.msra.mxu0 %v615
    %877 = vmatprep.subr.bf16.mxu0 %v612
    %878 = vmatpush1.bf16.msra.mxu0 %v611
    %879 = vmatprep.subr.bf16.mxu0 %v608
    %880 = vmatpush1.bf16.msra.mxu0 %v607
    %881 = vmatprep.subr.bf16.mxu0 %v604
    %882 = vmatpush1.bf16.msra.mxu0 %v603
    %883 = vmatprep.subr.bf16.mxu0 %v600
    %884 = vmatpush1.bf16.msra.mxu0 %v599
    %885 = vmatprep.subr.bf16.mxu0 %v596
    %886 = vmatpush1.bf16.msra.mxu0 %v595
    %887 = vmatprep.subr.bf16.mxu0 %v592
    %888 = vmatpush1.bf16.msra.mxu0 %v591
    %889 = vmatprep.subr.bf16.mxu0 %v588
    %890 = vmatpush1.bf16.msra.mxu0 %v587
    %891 = vmatprep.subr.bf16.mxu0 0
    %892 = vmatpush2.bf16.msra.mxu0 0
    %893 = vmatprep.subr.bf16.mxu0 0
    %894 = vmatpush2.bf16.msra.mxu0 0
    %895 = vmatprep.subr.bf16.mxu0 0
    %896 = vmatpush2.bf16.msra.mxu0 0
    %897 = vmatprep.subr.bf16.mxu0 0
    %898 = vmatpush2.bf16.msra.mxu0 0
    %899 = vmatprep.subr.bf16.mxu0 0
    %900 = vmatpush2.bf16.msra.mxu0 0
    %901 = vmatprep.subr.bf16.mxu0 0
    %902 = vmatpush2.bf16.msra.mxu0 0
    %903 = vmatprep.subr.bf16.mxu0 0
    %904 = vmatpush2.bf16.msra.mxu0 0
    %905 = vmatprep.subr.bf16.mxu0 0
    %906 = vmatpush2.bf16.msra.mxu0 0
    %907 = vmatprep.mubr.bf16.mxu0 0
    %908 = vmatmul.mubr.bf16.gmra.mxu0 %v873
    %v909 = vpop.f32.mrf.mxu0
    %v910 = vadd.f32 0.0, %v909
    %v911 = vpop.f32.mrf.mxu0
    %v912 = vadd.f32 0.0, %v911
    %v913 = vpop.f32.mrf.mxu0
    %v914 = vpop.f32.mrf.mxu0
    %915 = vdwg.mxu0
    %916 = vmatprep.subr.bf16.mxu0 %v618
    %917 = vmatpush1.bf16.msra.mxu0 %v617
    %918 = vmatprep.subr.bf16.mxu0 %v614
    %919 = vmatpush1.bf16.msra.mxu0 %v613
    %920 = vmatprep.subr.bf16.mxu0 %v610
    %921 = vmatpush1.bf16.msra.mxu0 %v609
    %922 = vmatprep.subr.bf16.mxu0 %v606
    %923 = vmatpush1.bf16.msra.mxu0 %v605
    %924 = vmatprep.subr.bf16.mxu0 %v602
    %925 = vmatpush1.bf16.msra.mxu0 %v601
    %926 = vmatprep.subr.bf16.mxu0 %v598
    %927 = vmatpush1.bf16.msra.mxu0 %v597
    %928 = vmatprep.subr.bf16.mxu0 %v594
    %929 = vmatpush1.bf16.msra.mxu0 %v593
    %930 = vmatprep.subr.bf16.mxu0 %v590
    %931 = vmatpush1.bf16.msra.mxu0 %v589
    %932 = vmatprep.subr.bf16.mxu0 0
    %933 = vmatpush2.bf16.msra.mxu0 0
    %934 = vmatprep.subr.bf16.mxu0 0
    %935 = vmatpush2.bf16.msra.mxu0 0
    %936 = vmatprep.subr.bf16.mxu0 0
    %937 = vmatpush2.bf16.msra.mxu0 0
    %938 = vmatprep.subr.bf16.mxu0 0
    %939 = vmatpush2.bf16.msra.mxu0 0
    %940 = vmatprep.subr.bf16.mxu0 0
    %941 = vmatpush2.bf16.msra.mxu0 0
    %942 = vmatprep.subr.bf16.mxu0 0
    %943 = vmatpush2.bf16.msra.mxu0 0
    %944 = vmatprep.subr.bf16.mxu0 0
    %945 = vmatpush2.bf16.msra.mxu0 0
    %946 = vmatprep.subr.bf16.mxu0 0
    %947 = vmatpush2.bf16.msra.mxu0 0
    %948 = vmatprep.mubr.bf16.mxu0 0
    %949 = vmatmul.mubr.bf16.gmra.mxu0 %v873
    %v950 = vpop.f32.mrf.mxu0
    %v951 = vadd.f32 0.0, %v950
    %v952 = vpop.f32.mrf.mxu0
    %v953 = vadd.f32 0.0, %v952
    %v954 = vpop.f32.mrf.mxu0
    %v955 = vpop.f32.mrf.mxu0
    %956 = vdwg.mxu0
    %v961 = vcombine.low %v910, %v912
    %v962 = vcombine.low %v951, %v953
    %v964 = vunpack.c.l.s4 1966171168
    %v965 = vunpack.c.0.s8 %v964
    %v966 = vlaneseq
    %v967 = vshrl.u32 %v966, 7
    %v968 = vsub.s32 %v965, %v967
    %v969 = vrot.slane %v961, %v968
    %v971 = vunpack.c.l.s4 1966171168
    %v972 = vunpack.c.0.s8 %v971
    %v973 = vlaneseq
    %v974 = vshrl.u32 %v973, 7
    %v975 = vsub.s32 %v972, %v974
    %v976 = vrot.slane %v962, %v975
    %v977 = vcombine.low %v969, %v976
    %v978 = vcombine.high %v969, %v976
    %v980 = vunpack.c.l.s4 1966171168
    %v981 = vunpack.c.0.s8 %v980
    %v982 = vlaneseq
    %v983 = vshrl.u32 %v982, 7
    %v984 = vsub.s32 %v981, %v983
    %v985 = vrot.slane %v977, %v984
    %v987 = vunpack.c.l.s4 1966171168
    %v988 = vunpack.c.0.s8 %v987
    %v989 = vlaneseq
    %v990 = vshrl.u32 %v989, 7
    %v991 = vsub.s32 %v988, %v990
    %v992 = vrot.slane %v978, %v991
    %v995 = vadd.f32 %v861, %v985
    %v996 = vadd.f32 %v863, %v992
    %v997 = vxor.u32 %v995, 2147483648
    %v998 = vxor.u32 %v996, 2147483648
    %v999 = vmul.f32 %v997, 1.442695
    %v1000 = vpow.pop %v999
    %v1001 = vmul.f32 %v998, 1.442695
    %v1002 = vpow.pop %v1001
    %v1003 = vadd.f32 %v1000, 1.0
    %v1004 = vadd.f32 %v1002, 1.0
    %v1005 = vrcp.pop %v1003
    %v1006 = vmul.f32 1.0, %v1005
    %v1007 = vrcp.pop %v1004
    %v1008 = vmul.f32 1.0, %v1007
    %v1011 = vrot.slane %v995, 1
    %v1012 = vrot.slane %v996, 1
    %v1015 = vxor.u32 %v1011, 2147483648
    %v1016 = vxor.u32 %v1012, 2147483648
    %v1017 = vmul.f32 %v1015, 1.442695
    %v1018 = vpow.pop %v1017
    %v1019 = vmul.f32 %v1016, 1.442695
    %v1020 = vpow.pop %v1019
    %v1021 = vadd.f32 %v1018, 1.0
    %v1022 = vadd.f32 %v1020, 1.0
    %v1023 = vrcp.pop %v1021
    %v1024 = vmul.f32 1.0, %v1023
    %v1025 = vrcp.pop %v1022
    %v1026 = vmul.f32 1.0, %v1025
    %v1027 = vrot.slane %v995, 2
    %v1028 = vrot.slane %v996, 2
    %v1031 = vtanh.pop %v1027
    %v1032 = vtanh.pop %v1028
    %v1033 = vrot.slane %v995, 3
    %v1034 = vrot.slane %v996, 3
    %v1037 = vxor.u32 %v1033, 2147483648
    %v1038 = vxor.u32 %v1034, 2147483648
    %v1039 = vmul.f32 %v1037, 1.442695
    %v1040 = vpow.pop %v1039
    %v1041 = vmul.f32 %v1038, 1.442695
    %v1042 = vpow.pop %v1041
    %v1043 = vadd.f32 %v1040, 1.0
    %v1044 = vadd.f32 %v1042, 1.0
    %v1045 = vrcp.pop %v1043
    %v1046 = vmul.f32 1.0, %v1045
    %v1047 = vrcp.pop %v1044
    %v1048 = vmul.f32 1.0, %v1047
    %v1049 = vmul.f32 %v1024, %v854
    %v1050 = vmul.f32 %v1026, %v855
    %v1051 = vmul.f32 %v1006, %v1031
    %v1052 = vmul.f32 %v1008, %v1032
    %v1053 = vadd.f32 %v1049, %v1051
    %v1054 = vadd.f32 %v1050, %v1052
    %v1055 = vtanh.pop %v1053
    %v1056 = vtanh.pop %v1054
    %v1057 = vmul.f32 %v1046, %v1055
    %v1058 = vmul.f32 %v1048, %v1056
    %v1061 = vcombine.low %v858, %v859
    %v1063 = vunpack.c.l.s4 1966171168
    %v1064 = vunpack.c.0.s8 %v1063
    %v1065 = vlaneseq
    %v1066 = vshrl.u32 %v1065, 7
    %v1067 = vsub.s32 %v1064, %v1066
    %v1068 = vrot.slane %v1061, %v1067
    %v1070 = vunpack.c.l.s4 1966171168
    %v1071 = vunpack.c.0.s8 %v1070
    %v1072 = vlaneseq
    %v1073 = vshrl.u32 %v1072, 7
    %v1074 = vsub.s32 %v1071, %v1073
    %v1075 = vrot.slane %v1068, %v1074
    %v1077 = vpack.c.bf16 %v1075, %v1075
    %v1078 = vpack.c.bf16 %v479, %v479
    %v1080 = vlaneseq
    %v1081 = vshrl.u32 %v1080, 7
    %v1082 = vsub.s32 0, %v1081
    %v1083 = vrot.slane %v475, %v1082
    %v1084 = vlaneseq
    %v1085 = vshrl.u32 %v1084, 7
    %v1086 = vsub.s32 1, %v1085
    %v1087 = vrot.slane %v475, %v1086
    %v1088 = vlaneseq
    %v1089 = vshrl.u32 %v1088, 7
    %v1090 = vsub.s32 2, %v1089
    %v1091 = vrot.slane %v475, %v1090
    %v1092 = vlaneseq
    %v1093 = vshrl.u32 %v1092, 7
    %v1094 = vsub.s32 3, %v1093
    %v1095 = vrot.slane %v475, %v1094
    %v1164 = vunpack.c.l.b16 %v347
    %v1165 = vunpack.c.h.b16 %v347
    %v1166 = vunpack.c.l.b16 %v348
    %v1167 = vunpack.c.h.b16 %v348
    %v1168 = vunpack.c.l.b16 %v349
    %v1169 = vunpack.c.h.b16 %v349
    %v1170 = vunpack.c.l.b16 %v350
    %v1171 = vunpack.c.h.b16 %v350
    %v1172 = vunpack.c.l.b16 %v351
    %v1173 = vunpack.c.h.b16 %v351
    %v1174 = vunpack.c.l.b16 %v352
    %v1175 = vunpack.c.h.b16 %v352
    %v1176 = vunpack.c.l.b16 %v353
    %v1177 = vunpack.c.h.b16 %v353
    %v1178 = vunpack.c.l.b16 %v354
    %v1179 = vunpack.c.h.b16 %v354
    %v1180 = vunpack.c.l.b16 %v355
    %v1181 = vunpack.c.h.b16 %v355
    %v1182 = vunpack.c.l.b16 %v356
    %v1183 = vunpack.c.h.b16 %v356
    %v1184 = vunpack.c.l.b16 %v357
    %v1185 = vunpack.c.h.b16 %v357
    %v1186 = vunpack.c.l.b16 %v358
    %v1187 = vunpack.c.h.b16 %v358
    %v1188 = vunpack.c.l.b16 %v359
    %v1189 = vunpack.c.h.b16 %v359
    %v1190 = vunpack.c.l.b16 %v360
    %v1191 = vunpack.c.h.b16 %v360
    %v1192 = vunpack.c.l.b16 %v361
    %v1193 = vunpack.c.h.b16 %v361
    %v1194 = vunpack.c.l.b16 %v362
    %v1195 = vunpack.c.h.b16 %v362
    %v1196 = vunpack.c.l.b16 %v363
    %v1197 = vunpack.c.h.b16 %v363
    %v1198 = vunpack.c.l.b16 %v364
    %v1199 = vunpack.c.h.b16 %v364
    %v1200 = vunpack.c.l.b16 %v365
    %v1201 = vunpack.c.h.b16 %v365
    %v1202 = vunpack.c.l.b16 %v366
    %v1203 = vunpack.c.h.b16 %v366
    %v1204 = vunpack.c.l.b16 %v367
    %v1205 = vunpack.c.h.b16 %v367
    %v1206 = vunpack.c.l.b16 %v368
    %v1207 = vunpack.c.h.b16 %v368
    %v1208 = vunpack.c.l.b16 %v369
    %v1209 = vunpack.c.h.b16 %v369
    %v1210 = vunpack.c.l.b16 %v370
    %v1211 = vunpack.c.h.b16 %v370
    %v1212 = vunpack.c.l.b16 %v371
    %v1213 = vunpack.c.h.b16 %v371
    %v1214 = vunpack.c.l.b16 %v372
    %v1215 = vunpack.c.h.b16 %v372
    %v1216 = vunpack.c.l.b16 %v373
    %v1217 = vunpack.c.h.b16 %v373
    %v1218 = vunpack.c.l.b16 %v374
    %v1219 = vunpack.c.h.b16 %v374
    %v1220 = vunpack.c.l.b16 %v375
    %v1221 = vunpack.c.h.b16 %v375
    %v1222 = vunpack.c.l.b16 %v376
    %v1223 = vunpack.c.h.b16 %v376
    %v1224 = vunpack.c.l.b16 %v377
    %v1225 = vunpack.c.h.b16 %v377
    %v1226 = vunpack.c.l.b16 %v378
    %v1227 = vunpack.c.h.b16 %v378
    %v1228 = vunpack.c.l.b16 %v379
    %v1229 = vunpack.c.h.b16 %v379
    %v1230 = vunpack.c.l.b16 %v380
    %v1231 = vunpack.c.h.b16 %v380
    %v1232 = vunpack.c.l.b16 %v381
    %v1233 = vunpack.c.h.b16 %v381
    %v1234 = vunpack.c.l.b16 %v382
    %v1235 = vunpack.c.h.b16 %v382
    %v1236 = vunpack.c.l.b16 %v383
    %v1237 = vunpack.c.h.b16 %v383
    %v1238 = vunpack.c.l.b16 %v384
    %v1239 = vunpack.c.h.b16 %v384
    %v1240 = vunpack.c.l.b16 %v385
    %v1241 = vunpack.c.h.b16 %v385
    %v1242 = vunpack.c.l.b16 %v386
    %v1243 = vunpack.c.h.b16 %v386
    %v1244 = vunpack.c.l.b16 %v387
    %v1245 = vunpack.c.h.b16 %v387
    %v1246 = vunpack.c.l.b16 %v388
    %v1247 = vunpack.c.h.b16 %v388
    %v1248 = vunpack.c.l.b16 %v389
    %v1249 = vunpack.c.h.b16 %v389
    %v1250 = vunpack.c.l.b16 %v390
    %v1251 = vunpack.c.h.b16 %v390
    %v1252 = vunpack.c.l.b16 %v391
    %v1253 = vunpack.c.h.b16 %v391
    %v1254 = vunpack.c.l.b16 %v392
    %v1255 = vunpack.c.h.b16 %v392
    %v1256 = vunpack.c.l.b16 %v393
    %v1257 = vunpack.c.h.b16 %v393
    %v1258 = vunpack.c.l.b16 %v394
    %v1259 = vunpack.c.h.b16 %v394
    %v1260 = vunpack.c.l.b16 %v395
    %v1261 = vunpack.c.h.b16 %v395
    %v1262 = vunpack.c.l.b16 %v396
    %v1263 = vunpack.c.h.b16 %v396
    %v1264 = vunpack.c.l.b16 %v397
    %v1265 = vunpack.c.h.b16 %v397
    %v1266 = vunpack.c.l.b16 %v398
    %v1267 = vunpack.c.h.b16 %v398
    %v1268 = vunpack.c.l.b16 %v399
    %v1269 = vunpack.c.h.b16 %v399
    %v1270 = vunpack.c.l.b16 %v400
    %v1271 = vunpack.c.h.b16 %v400
    %v1272 = vunpack.c.l.b16 %v401
    %v1273 = vunpack.c.h.b16 %v401
    %v1274 = vunpack.c.l.b16 %v402
    %v1275 = vunpack.c.h.b16 %v402
    %v1276 = vunpack.c.l.b16 %v403
    %v1277 = vunpack.c.h.b16 %v403
    %v1278 = vunpack.c.l.b16 %v404
    %v1279 = vunpack.c.h.b16 %v404
    %v1280 = vunpack.c.l.b16 %v405
    %v1281 = vunpack.c.h.b16 %v405
    %v1282 = vunpack.c.l.b16 %v406
    %v1283 = vunpack.c.h.b16 %v406
    %v1284 = vunpack.c.l.b16 %v407
    %v1285 = vunpack.c.h.b16 %v407
    %v1286 = vunpack.c.l.b16 %v408
    %v1287 = vunpack.c.h.b16 %v408
    %v1288 = vunpack.c.l.b16 %v409
    %v1289 = vunpack.c.h.b16 %v409
    %v1290 = vunpack.c.l.b16 %v410
    %v1291 = vunpack.c.h.b16 %v410
    %v1292 = vpack.c.b16 %v1168, %v1164
    %v1293 = vpack.c.b16 %v1169, %v1165
    %v1294 = vpack.c.b16 %v1170, %v1166
    %v1295 = vpack.c.b16 %v1171, %v1167
    %v1296 = vpack.c.b16 %v1176, %v1172
    %v1297 = vpack.c.b16 %v1177, %v1173
    %v1298 = vpack.c.b16 %v1178, %v1174
    %v1299 = vpack.c.b16 %v1179, %v1175
    %v1300 = vpack.c.b16 %v1184, %v1180
    %v1301 = vpack.c.b16 %v1185, %v1181
    %v1302 = vpack.c.b16 %v1186, %v1182
    %v1303 = vpack.c.b16 %v1187, %v1183
    %v1304 = vpack.c.b16 %v1192, %v1188
    %v1305 = vpack.c.b16 %v1193, %v1189
    %v1306 = vpack.c.b16 %v1194, %v1190
    %v1307 = vpack.c.b16 %v1195, %v1191
    %v1308 = vpack.c.b16 %v1200, %v1196
    %v1309 = vpack.c.b16 %v1201, %v1197
    %v1310 = vpack.c.b16 %v1202, %v1198
    %v1311 = vpack.c.b16 %v1203, %v1199
    %v1312 = vpack.c.b16 %v1208, %v1204
    %v1313 = vpack.c.b16 %v1209, %v1205
    %v1314 = vpack.c.b16 %v1210, %v1206
    %v1315 = vpack.c.b16 %v1211, %v1207
    %v1316 = vpack.c.b16 %v1216, %v1212
    %v1317 = vpack.c.b16 %v1217, %v1213
    %v1318 = vpack.c.b16 %v1218, %v1214
    %v1319 = vpack.c.b16 %v1219, %v1215
    %v1320 = vpack.c.b16 %v1224, %v1220
    %v1321 = vpack.c.b16 %v1225, %v1221
    %v1322 = vpack.c.b16 %v1226, %v1222
    %v1323 = vpack.c.b16 %v1227, %v1223
    %v1324 = vpack.c.b16 %v1232, %v1228
    %v1325 = vpack.c.b16 %v1233, %v1229
    %v1326 = vpack.c.b16 %v1234, %v1230
    %v1327 = vpack.c.b16 %v1235, %v1231
    %v1328 = vpack.c.b16 %v1240, %v1236
    %v1329 = vpack.c.b16 %v1241, %v1237
    %v1330 = vpack.c.b16 %v1242, %v1238
    %v1331 = vpack.c.b16 %v1243, %v1239
    %v1332 = vpack.c.b16 %v1248, %v1244
    %v1333 = vpack.c.b16 %v1249, %v1245
    %v1334 = vpack.c.b16 %v1250, %v1246
    %v1335 = vpack.c.b16 %v1251, %v1247
    %v1336 = vpack.c.b16 %v1256, %v1252
    %v1337 = vpack.c.b16 %v1257, %v1253
    %v1338 = vpack.c.b16 %v1258, %v1254
    %v1339 = vpack.c.b16 %v1259, %v1255
    %v1340 = vpack.c.b16 %v1264, %v1260
    %v1341 = vpack.c.b16 %v1265, %v1261
    %v1342 = vpack.c.b16 %v1266, %v1262
    %v1343 = vpack.c.b16 %v1267, %v1263
    %v1344 = vpack.c.b16 %v1272, %v1268
    %v1345 = vpack.c.b16 %v1273, %v1269
    %v1346 = vpack.c.b16 %v1274, %v1270
    %v1347 = vpack.c.b16 %v1275, %v1271
    %v1348 = vpack.c.b16 %v1280, %v1276
    %v1349 = vpack.c.b16 %v1281, %v1277
    %v1350 = vpack.c.b16 %v1282, %v1278
    %v1351 = vpack.c.b16 %v1283, %v1279
    %v1352 = vpack.c.b16 %v1288, %v1284
    %v1353 = vpack.c.b16 %v1289, %v1285
    %v1354 = vpack.c.b16 %v1290, %v1286
    %v1355 = vpack.c.b16 %v1291, %v1287
    %1420 = vmatprep.subr.bf16.mxu0 %v1321
    %1421 = vmatpush1.bf16.msra.mxu0 %v1320
    %1422 = vmatprep.subr.bf16.mxu0 %v1317
    %1423 = vmatpush1.bf16.msra.mxu0 %v1316
    %1424 = vmatprep.subr.bf16.mxu0 %v1313
    %1425 = vmatpush1.bf16.msra.mxu0 %v1312
    %1426 = vmatprep.subr.bf16.mxu0 %v1309
    %1427 = vmatpush1.bf16.msra.mxu0 %v1308
    %1428 = vmatprep.subr.bf16.mxu0 %v1305
    %1429 = vmatpush1.bf16.msra.mxu0 %v1304
    %1430 = vmatprep.subr.bf16.mxu0 %v1301
    %1431 = vmatpush1.bf16.msra.mxu0 %v1300
    %1432 = vmatprep.subr.bf16.mxu0 %v1297
    %1433 = vmatpush1.bf16.msra.mxu0 %v1296
    %1434 = vmatprep.subr.bf16.mxu0 %v1293
    %1435 = vmatpush1.bf16.msra.mxu0 %v1292
    %1436 = vmatprep.subr.bf16.mxu0 %v1353
    %1437 = vmatpush2.bf16.msra.mxu0 %v1352
    %1438 = vmatprep.subr.bf16.mxu0 %v1349
    %1439 = vmatpush2.bf16.msra.mxu0 %v1348
    %1440 = vmatprep.subr.bf16.mxu0 %v1345
    %1441 = vmatpush2.bf16.msra.mxu0 %v1344
    %1442 = vmatprep.subr.bf16.mxu0 %v1341
    %1443 = vmatpush2.bf16.msra.mxu0 %v1340
    %1444 = vmatprep.subr.bf16.mxu0 %v1337
    %1445 = vmatpush2.bf16.msra.mxu0 %v1336
    %1446 = vmatprep.subr.bf16.mxu0 %v1333
    %1447 = vmatpush2.bf16.msra.mxu0 %v1332
    %1448 = vmatprep.subr.bf16.mxu0 %v1329
    %1449 = vmatpush2.bf16.msra.mxu0 %v1328
    %1450 = vmatprep.subr.bf16.mxu0 %v1325
    %1451 = vmatpush2.bf16.msra.mxu0 %v1324
    %1452 = vmatprep.mubr.bf16.mxu0 %v1078
    %1453 = vmatmul.mubr.bf16.gmra.mxu0 %v1077
    %v1454 = vpop.f32.mrf.mxu0
    %v1455 = vadd.f32 %v1083, %v1454
    %v1456 = vpop.f32.mrf.mxu0
    %v1457 = vadd.f32 %v1087, %v1456
    %v1458 = vpop.f32.mrf.mxu0
    %v1459 = vpop.f32.mrf.mxu0
    %1460 = vdwg.mxu0
    %1461 = vmatprep.subr.bf16.mxu0 %v1323
    %1462 = vmatpush1.bf16.msra.mxu0 %v1322
    %1463 = vmatprep.subr.bf16.mxu0 %v1319
    %1464 = vmatpush1.bf16.msra.mxu0 %v1318
    %1465 = vmatprep.subr.bf16.mxu0 %v1315
    %1466 = vmatpush1.bf16.msra.mxu0 %v1314
    %1467 = vmatprep.subr.bf16.mxu0 %v1311
    %1468 = vmatpush1.bf16.msra.mxu0 %v1310
    %1469 = vmatprep.subr.bf16.mxu0 %v1307
    %1470 = vmatpush1.bf16.msra.mxu0 %v1306
    %1471 = vmatprep.subr.bf16.mxu0 %v1303
    %1472 = vmatpush1.bf16.msra.mxu0 %v1302
    %1473 = vmatprep.subr.bf16.mxu0 %v1299
    %1474 = vmatpush1.bf16.msra.mxu0 %v1298
    %1475 = vmatprep.subr.bf16.mxu0 %v1295
    %1476 = vmatpush1.bf16.msra.mxu0 %v1294
    %1477 = vmatprep.subr.bf16.mxu0 %v1355
    %1478 = vmatpush2.bf16.msra.mxu0 %v1354
    %1479 = vmatprep.subr.bf16.mxu0 %v1351
    %1480 = vmatpush2.bf16.msra.mxu0 %v1350
    %1481 = vmatprep.subr.bf16.mxu0 %v1347
    %1482 = vmatpush2.bf16.msra.mxu0 %v1346
    %1483 = vmatprep.subr.bf16.mxu0 %v1343
    %1484 = vmatpush2.bf16.msra.mxu0 %v1342
    %1485 = vmatprep.subr.bf16.mxu0 %v1339
    %1486 = vmatpush2.bf16.msra.mxu0 %v1338
    %1487 = vmatprep.subr.bf16.mxu0 %v1335
    %1488 = vmatpush2.bf16.msra.mxu0 %v1334
    %1489 = vmatprep.subr.bf16.mxu0 %v1331
    %1490 = vmatpush2.bf16.msra.mxu0 %v1330
    %1491 = vmatprep.subr.bf16.mxu0 %v1327
    %1492 = vmatpush2.bf16.msra.mxu0 %v1326
    %1493 = vmatprep.mubr.bf16.mxu0 %v1078
    %1494 = vmatmul.mubr.bf16.gmra.mxu0 %v1077
    %v1495 = vpop.f32.mrf.mxu0
    %v1496 = vadd.f32 %v1091, %v1495
    %v1497 = vpop.f32.mrf.mxu0
    %v1498 = vadd.f32 %v1095, %v1497
    %v1499 = vpop.f32.mrf.mxu0
    %v1500 = vpop.f32.mrf.mxu0
    %1501 = vdwg.mxu0
    %v1502 = vxor.u32 %v1455, 2147483648
    %v1503 = vmul.f32 %v1502, 1.442695
    %v1504 = vpow.pop %v1503
    %v1505 = vadd.f32 %v1504, 1.0
    %v1506 = vrcp.pop %v1505
    %v1507 = vmul.f32 1.0, %v1506
    %v1508 = vxor.u32 %v1457, 2147483648
    %v1509 = vmul.f32 %v1508, 1.442695
    %v1510 = vpow.pop %v1509
    %v1511 = vadd.f32 %v1510, 1.0
    %v1512 = vrcp.pop %v1511
    %v1513 = vmul.f32 1.0, %v1512
    %v1514 = vtanh.pop %v1496
    %v1515 = vxor.u32 %v1498, 2147483648
    %v1516 = vmul.f32 %v1515, 1.442695
    %v1517 = vpow.pop %v1516
    %v1518 = vadd.f32 %v1517, 1.0
    %v1519 = vrcp.pop %v1518
    %v1520 = vmul.f32 1.0, %v1519
    %v1521 = vmul.f32 %v1513, %v484
    %v1522 = vmul.f32 %v1507, %v1514
    %v1523 = vadd.f32 %v1521, %v1522
    %v1524 = vtanh.pop %v1523
    %v1525 = vmul.f32 %v1520, %v1524
    %s1526 = scalar_lea.vmem [#allocation2], 2
    %v1527 = vld [vmem:[%s1526] ss:$8 sm:$0xf]
    %s1528 = scalar_lea.vmem [#allocation2], 34
    %v1529 = vld [vmem:[%s1528] ss:$8 sm:$0xf]
    %v1530 = vpack.c.bf16 %v1057, %v1057
    %v1531 = vpack.c.bf16 %v1058, %v1058
    %v1534 = vunpack.c.l.b16 %v1530
    %v1535 = vunpack.c.l.b16 %v1531
    %v1536 = vrot.slane %v1535, 7
    %v1537 = vsel %vm871, %v1536, %v1534
    %v1538 = vpack.c.b16 %v1537, %v1537
    %1540 = vmatprep.subr.bf16.mxu0 %v616
    %1541 = vmatpush1.bf16.msra.mxu0 %v615
    %1542 = vmatprep.subr.bf16.mxu0 %v612
    %1543 = vmatpush1.bf16.msra.mxu0 %v611
    %1544 = vmatprep.subr.bf16.mxu0 %v608
    %1545 = vmatpush1.bf16.msra.mxu0 %v607
    %1546 = vmatprep.subr.bf16.mxu0 %v604
    %1547 = vmatpush1.bf16.msra.mxu0 %v603
    %1548 = vmatprep.subr.bf16.mxu0 %v600
    %1549 = vmatpush1.bf16.msra.mxu0 %v599
    %1550 = vmatprep.subr.bf16.mxu0 %v596
    %1551 = vmatpush1.bf16.msra.mxu0 %v595
    %1552 = vmatprep.subr.bf16.mxu0 %v592
    %1553 = vmatpush1.bf16.msra.mxu0 %v591
    %1554 = vmatprep.subr.bf16.mxu0 %v588
    %1555 = vmatpush1.bf16.msra.mxu0 %v587
    %1556 = vmatprep.subr.bf16.mxu0 0
    %1557 = vmatpush2.bf16.msra.mxu0 0
    %1558 = vmatprep.subr.bf16.mxu0 0
    %1559 = vmatpush2.bf16.msra.mxu0 0
    %1560 = vmatprep.subr.bf16.mxu0 0
    %1561 = vmatpush2.bf16.msra.mxu0 0
    %1562 = vmatprep.subr.bf16.mxu0 0
    %1563 = vmatpush2.bf16.msra.mxu0 0
    %1564 = vmatprep.subr.bf16.mxu0 0
    %1565 = vmatpush2.bf16.msra.mxu0 0
    %1566 = vmatprep.subr.bf16.mxu0 0
    %1567 = vmatpush2.bf16.msra.mxu0 0
    %1568 = vmatprep.subr.bf16.mxu0 0
    %1569 = vmatpush2.bf16.msra.mxu0 0
    %1570 = vmatprep.subr.bf16.mxu0 0
    %1571 = vmatpush2.bf16.msra.mxu0 0
    %1572 = vmatprep.mubr.bf16.mxu0 0
    %1573 = vmatmul.mubr.bf16.gmra.mxu0 %v1538
    %v1574 = vpop.f32.mrf.mxu0
    %v1575 = vadd.f32 0.0, %v1574
    %v1576 = vpop.f32.mrf.mxu0
    %v1577 = vadd.f32 0.0, %v1576
    %v1578 = vpop.f32.mrf.mxu0
    %v1579 = vpop.f32.mrf.mxu0
    %1580 = vdwg.mxu0
    %1581 = vmatprep.subr.bf16.mxu0 %v618
    %1582 = vmatpush1.bf16.msra.mxu0 %v617
    %1583 = vmatprep.subr.bf16.mxu0 %v614
    %1584 = vmatpush1.bf16.msra.mxu0 %v613
    %1585 = vmatprep.subr.bf16.mxu0 %v610
    %1586 = vmatpush1.bf16.msra.mxu0 %v609
    %1587 = vmatprep.subr.bf16.mxu0 %v606
    %1588 = vmatpush1.bf16.msra.mxu0 %v605
    %1589 = vmatprep.subr.bf16.mxu0 %v602
    %1590 = vmatpush1.bf16.msra.mxu0 %v601
    %1591 = vmatprep.subr.bf16.mxu0 %v598
    %1592 = vmatpush1.bf16.msra.mxu0 %v597
    %1593 = vmatprep.subr.bf16.mxu0 %v594
    %1594 = vmatpush1.bf16.msra.mxu0 %v593
    %1595 = vmatprep.subr.bf16.mxu0 %v590
    %1596 = vmatpush1.bf16.msra.mxu0 %v589
    %1597 = vmatprep.subr.bf16.mxu0 0
    %1598 = vmatpush2.bf16.msra.mxu0 0
    %1599 = vmatprep.subr.bf16.mxu0 0
    %1600 = vmatpush2.bf16.msra.mxu0 0
    %1601 = vmatprep.subr.bf16.mxu0 0
    %1602 = vmatpush2.bf16.msra.mxu0 0
    %1603 = vmatprep.subr.bf16.mxu0 0
    %1604 = vmatpush2.bf16.msra.mxu0 0
    %1605 = vmatprep.subr.bf16.mxu0 0
    %1606 = vmatpush2.bf16.msra.mxu0 0
    %1607 = vmatprep.subr.bf16.mxu0 0
    %1608 = vmatpush2.bf16.msra.mxu0 0
    %1609 = vmatprep.subr.bf16.mxu0 0
    %1610 = vmatpush2.bf16.msra.mxu0 0
    %1611 = vmatprep.subr.bf16.mxu0 0
    %1612 = vmatpush2.bf16.msra.mxu0 0
    %1613 = vmatprep.mubr.bf16.mxu0 0
    %1614 = vmatmul.mubr.bf16.gmra.mxu0 %v1538
    %v1615 = vpop.f32.mrf.mxu0
    %v1616 = vadd.f32 0.0, %v1615
    %v1617 = vpop.f32.mrf.mxu0
    %v1618 = vadd.f32 0.0, %v1617
    %v1619 = vpop.f32.mrf.mxu0
    %v1620 = vpop.f32.mrf.mxu0
    %1621 = vdwg.mxu0
    %v1626 = vcombine.low %v1575, %v1577
    %v1627 = vcombine.low %v1616, %v1618
    %v1629 = vunpack.c.l.s4 1966171168
    %v1630 = vunpack.c.0.s8 %v1629
    %v1631 = vlaneseq
    %v1632 = vshrl.u32 %v1631, 7
    %v1633 = vsub.s32 %v1630, %v1632
    %v1634 = vrot.slane %v1626, %v1633
    %v1636 = vunpack.c.l.s4 1966171168
    %v1637 = vunpack.c.0.s8 %v1636
    %v1638 = vlaneseq
    %v1639 = vshrl.u32 %v1638, 7
    %v1640 = vsub.s32 %v1637, %v1639
    %v1641 = vrot.slane %v1627, %v1640
    %v1642 = vcombine.low %v1634, %v1641
    %v1643 = vcombine.high %v1634, %v1641
    %v1645 = vunpack.c.l.s4 1966171168
    %v1646 = vunpack.c.0.s8 %v1645
    %v1647 = vlaneseq
    %v1648 = vshrl.u32 %v1647, 7
    %v1649 = vsub.s32 %v1646, %v1648
    %v1650 = vrot.slane %v1642, %v1649
    %v1652 = vunpack.c.l.s4 1966171168
    %v1653 = vunpack.c.0.s8 %v1652
    %v1654 = vlaneseq
    %v1655 = vshrl.u32 %v1654, 7
    %v1656 = vsub.s32 %v1653, %v1655
    %v1657 = vrot.slane %v1643, %v1656
    %v1660 = vadd.f32 %v1527, %v1650
    %v1661 = vadd.f32 %v1529, %v1657
    %v1662 = vxor.u32 %v1660, 2147483648
    %v1663 = vxor.u32 %v1661, 2147483648
    %v1664 = vmul.f32 %v1662, 1.442695
    %v1665 = vpow.pop %v1664
    %v1666 = vmul.f32 %v1663, 1.442695
    %v1667 = vpow.pop %v1666
    %v1668 = vadd.f32 %v1665, 1.0
    %v1669 = vadd.f32 %v1667, 1.0
    %v1670 = vrcp.pop %v1668
    %v1671 = vmul.f32 1.0, %v1670
    %v1672 = vrcp.pop %v1669
    %v1673 = vmul.f32 1.0, %v1672
    %v1676 = vrot.slane %v1660, 1
    %v1677 = vrot.slane %v1661, 1
    %v1680 = vxor.u32 %v1676, 2147483648
    %v1681 = vxor.u32 %v1677, 2147483648
    %v1682 = vmul.f32 %v1680, 1.442695
    %v1683 = vpow.pop %v1682
    %v1684 = vmul.f32 %v1681, 1.442695
    %v1685 = vpow.pop %v1684
    %v1686 = vadd.f32 %v1683, 1.0
    %v1687 = vadd.f32 %v1685, 1.0
    %v1688 = vrcp.pop %v1686
    %v1689 = vmul.f32 1.0, %v1688
    %v1690 = vrcp.pop %v1687
    %v1691 = vmul.f32 1.0, %v1690
    %v1692 = vrot.slane %v1660, 2
    %v1693 = vrot.slane %v1661, 2
    %v1696 = vtanh.pop %v1692
    %v1697 = vtanh.pop %v1693
    %v1698 = vrot.slane %v1660, 3
    %v1699 = vrot.slane %v1661, 3
    %v1702 = vxor.u32 %v1698, 2147483648
    %v1703 = vxor.u32 %v1699, 2147483648
    %v1704 = vmul.f32 %v1702, 1.442695
    %v1705 = vpow.pop %v1704
    %v1706 = vmul.f32 %v1703, 1.442695
    %v1707 = vpow.pop %v1706
    %v1708 = vadd.f32 %v1705, 1.0
    %v1709 = vadd.f32 %v1707, 1.0
    %v1710 = vrcp.pop %v1708
    %v1711 = vmul.f32 1.0, %v1710
    %v1712 = vrcp.pop %v1709
    %v1713 = vmul.f32 1.0, %v1712
    %v1714 = vmul.f32 %v1689, %v1053
    %v1715 = vmul.f32 %v1691, %v1054
    %v1716 = vmul.f32 %v1671, %v1696
    %v1717 = vmul.f32 %v1673, %v1697
    %v1718 = vadd.f32 %v1714, %v1716
    %v1719 = vadd.f32 %v1715, %v1717
    %v1720 = vtanh.pop %v1718
    %v1721 = vtanh.pop %v1719
    %v1722 = vmul.f32 %v1711, %v1720
    %v1723 = vmul.f32 %v1713, %v1721
    %v1726 = vcombine.low %v1057, %v1058
    %v1728 = vunpack.c.l.s4 1966171168
    %v1729 = vunpack.c.0.s8 %v1728
    %v1730 = vlaneseq
    %v1731 = vshrl.u32 %v1730, 7
    %v1732 = vsub.s32 %v1729, %v1731
    %v1733 = vrot.slane %v1726, %v1732
    %v1735 = vunpack.c.l.s4 1966171168
    %v1736 = vunpack.c.0.s8 %v1735
    %v1737 = vlaneseq
    %v1738 = vshrl.u32 %v1737, 7
    %v1739 = vsub.s32 %v1736, %v1738
    %v1740 = vrot.slane %v1733, %v1739
    %v1742 = vpack.c.bf16 %v1740, %v1740
    %v1743 = vpack.c.bf16 %v1525, %v1525
    %1744 = vmatprep.subr.bf16.mxu0 %v1321
    %1745 = vmatpush1.bf16.msra.mxu0 %v1320
    %1746 = vmatprep.subr.bf16.mxu0 %v1317
    %1747 = vmatpush1.bf16.msra.mxu0 %v1316
    %1748 = vmatprep.subr.bf16.mxu0 %v1313
    %1749 = vmatpush1.bf16.msra.mxu0 %v1312
    %1750 = vmatprep.subr.bf16.mxu0 %v1309
    %1751 = vmatpush1.bf16.msra.mxu0 %v1308
    %1752 = vmatprep.subr.bf16.mxu0 %v1305
    %1753 = vmatpush1.bf16.msra.mxu0 %v1304
    %1754 = vmatprep.subr.bf16.mxu0 %v1301
    %1755 = vmatpush1.bf16.msra.mxu0 %v1300
    %1756 = vmatprep.subr.bf16.mxu0 %v1297
    %1757 = vmatpush1.bf16.msra.mxu0 %v1296
    %1758 = vmatprep.subr.bf16.mxu0 %v1293
    %1759 = vmatpush1.bf16.msra.mxu0 %v1292
    %1760 = vmatprep.subr.bf16.mxu0 %v1353
    %1761 = vmatpush2.bf16.msra.mxu0 %v1352
    %1762 = vmatprep.subr.bf16.mxu0 %v1349
    %1763 = vmatpush2.bf16.msra.mxu0 %v1348
    %1764 = vmatprep.subr.bf16.mxu0 %v1345
    %1765 = vmatpush2.bf16.msra.mxu0 %v1344
    %1766 = vmatprep.subr.bf16.mxu0 %v1341
    %1767 = vmatpush2.bf16.msra.mxu0 %v1340
    %1768 = vmatprep.subr.bf16.mxu0 %v1337
    %1769 = vmatpush2.bf16.msra.mxu0 %v1336
    %1770 = vmatprep.subr.bf16.mxu0 %v1333
    %1771 = vmatpush2.bf16.msra.mxu0 %v1332
    %1772 = vmatprep.subr.bf16.mxu0 %v1329
    %1773 = vmatpush2.bf16.msra.mxu0 %v1328
    %1774 = vmatprep.subr.bf16.mxu0 %v1325
    %1775 = vmatpush2.bf16.msra.mxu0 %v1324
    %1776 = vmatprep.mubr.bf16.mxu0 %v1743
    %1777 = vmatmul.mubr.bf16.gmra.mxu0 %v1742
    %v1778 = vpop.f32.mrf.mxu0
    %v1779 = vadd.f32 %v1083, %v1778
    %v1780 = vpop.f32.mrf.mxu0
    %v1781 = vadd.f32 %v1087, %v1780
    %v1782 = vpop.f32.mrf.mxu0
    %v1783 = vpop.f32.mrf.mxu0
    %1784 = vdwg.mxu0
    %1785 = vmatprep.subr.bf16.mxu0 %v1323
    %1786 = vmatpush1.bf16.msra.mxu0 %v1322
    %1787 = vmatprep.subr.bf16.mxu0 %v1319
    %1788 = vmatpush1.bf16.msra.mxu0 %v1318
    %1789 = vmatprep.subr.bf16.mxu0 %v1315
    %1790 = vmatpush1.bf16.msra.mxu0 %v1314
    %1791 = vmatprep.subr.bf16.mxu0 %v1311
    %1792 = vmatpush1.bf16.msra.mxu0 %v1310
    %1793 = vmatprep.subr.bf16.mxu0 %v1307
    %1794 = vmatpush1.bf16.msra.mxu0 %v1306
    %1795 = vmatprep.subr.bf16.mxu0 %v1303
    %1796 = vmatpush1.bf16.msra.mxu0 %v1302
    %1797 = vmatprep.subr.bf16.mxu0 %v1299
    %1798 = vmatpush1.bf16.msra.mxu0 %v1298
    %1799 = vmatprep.subr.bf16.mxu0 %v1295
    %1800 = vmatpush1.bf16.msra.mxu0 %v1294
    %1801 = vmatprep.subr.bf16.mxu0 %v1355
    %1802 = vmatpush2.bf16.msra.mxu0 %v1354
    %1803 = vmatprep.subr.bf16.mxu0 %v1351
    %1804 = vmatpush2.bf16.msra.mxu0 %v1350
    %1805 = vmatprep.subr.bf16.mxu0 %v1347
    %1806 = vmatpush2.bf16.msra.mxu0 %v1346
    %1807 = vmatprep.subr.bf16.mxu0 %v1343
    %1808 = vmatpush2.bf16.msra.mxu0 %v1342
    %1809 = vmatprep.subr.bf16.mxu0 %v1339
    %1810 = vmatpush2.bf16.msra.mxu0 %v1338
    %1811 = vmatprep.subr.bf16.mxu0 %v1335
    %1812 = vmatpush2.bf16.msra.mxu0 %v1334
    %1813 = vmatprep.subr.bf16.mxu0 %v1331
    %1814 = vmatpush2.bf16.msra.mxu0 %v1330
    %1815 = vmatprep.subr.bf16.mxu0 %v1327
    %1816 = vmatpush2.bf16.msra.mxu0 %v1326
    %1817 = vmatprep.mubr.bf16.mxu0 %v1743
    %1818 = vmatmul.mubr.bf16.gmra.mxu0 %v1742
    %v1819 = vpop.f32.mrf.mxu0
    %v1820 = vadd.f32 %v1091, %v1819
    %v1821 = vpop.f32.mrf.mxu0
    %v1822 = vadd.f32 %v1095, %v1821
    %v1823 = vpop.f32.mrf.mxu0
    %v1824 = vpop.f32.mrf.mxu0
    %1825 = vdwg.mxu0
    %v1826 = vxor.u32 %v1779, 2147483648
    %v1827 = vmul.f32 %v1826, 1.442695
    %v1828 = vpow.pop %v1827
    %v1829 = vadd.f32 %v1828, 1.0
    %v1830 = vrcp.pop %v1829
    %v1831 = vmul.f32 1.0, %v1830
    %v1832 = vxor.u32 %v1781, 2147483648
    %v1833 = vmul.f32 %v1832, 1.442695
    %v1834 = vpow.pop %v1833
    %v1835 = vadd.f32 %v1834, 1.0
    %v1836 = vrcp.pop %v1835
    %v1837 = vmul.f32 1.0, %v1836
    %v1838 = vtanh.pop %v1820
    %v1839 = vxor.u32 %v1822, 2147483648
    %v1840 = vmul.f32 %v1839, 1.442695
    %v1841 = vpow.pop %v1840
    %v1842 = vadd.f32 %v1841, 1.0
    %v1843 = vrcp.pop %v1842
    %v1844 = vmul.f32 1.0, %v1843
    %v1845 = vmul.f32 %v1837, %v1523
    %v1846 = vmul.f32 %v1831, %v1838
    %v1847 = vadd.f32 %v1845, %v1846
    %v1848 = vtanh.pop %v1847
    %v1849 = vmul.f32 %v1844, %v1848
    %v1850 = vpack.c.bf16 %v481, %v481
    %v1852 = vlaneseq
    %v1853 = vshrl.u32 %v1852, 7
    %v1854 = vsub.s32 0, %v1853
    %v1855 = vrot.slane %v476, %v1854
    %v1856 = vlaneseq
    %v1857 = vshrl.u32 %v1856, 7
    %v1858 = vsub.s32 1, %v1857
    %v1859 = vrot.slane %v476, %v1858
    %v1860 = vlaneseq
    %v1861 = vshrl.u32 %v1860, 7
    %v1862 = vsub.s32 2, %v1861
    %v1863 = vrot.slane %v476, %v1862
    %v1864 = vlaneseq
    %v1865 = vshrl.u32 %v1864, 7
    %v1866 = vsub.s32 3, %v1865
    %v1867 = vrot.slane %v476, %v1866
    %v1936 = vunpack.c.l.b16 %v411
    %v1937 = vunpack.c.h.b16 %v411
    %v1938 = vunpack.c.l.b16 %v412
    %v1939 = vunpack.c.h.b16 %v412
    %v1940 = vunpack.c.l.b16 %v413
    %v1941 = vunpack.c.h.b16 %v413
    %v1942 = vunpack.c.l.b16 %v414
    %v1943 = vunpack.c.h.b16 %v414
    %v1944 = vunpack.c.l.b16 %v415
    %v1945 = vunpack.c.h.b16 %v415
    %v1946 = vunpack.c.l.b16 %v416
    %v1947 = vunpack.c.h.b16 %v416
    %v1948 = vunpack.c.l.b16 %v417
    %v1949 = vunpack.c.h.b16 %v417
    %v1950 = vunpack.c.l.b16 %v418
    %v1951 = vunpack.c.h.b16 %v418
    %v1952 = vunpack.c.l.b16 %v419
    %v1953 = vunpack.c.h.b16 %v419
    %v1954 = vunpack.c.l.b16 %v420
    %v1955 = vunpack.c.h.b16 %v420
    %v1956 = vunpack.c.l.b16 %v421
    %v1957 = vunpack.c.h.b16 %v421
    %v1958 = vunpack.c.l.b16 %v422
    %v1959 = vunpack.c.h.b16 %v422
    %v1960 = vunpack.c.l.b16 %v423
    %v1961 = vunpack.c.h.b16 %v423
    %v1962 = vunpack.c.l.b16 %v424
    %v1963 = vunpack.c.h.b16 %v424
    %v1964 = vunpack.c.l.b16 %v425
    %v1965 = vunpack.c.h.b16 %v425
    %v1966 = vunpack.c.l.b16 %v426
    %v1967 = vunpack.c.h.b16 %v426
    %v1968 = vunpack.c.l.b16 %v427
    %v1969 = vunpack.c.h.b16 %v427
    %v1970 = vunpack.c.l.b16 %v428
    %v1971 = vunpack.c.h.b16 %v428
    %v1972 = vunpack.c.l.b16 %v429
    %v1973 = vunpack.c.h.b16 %v429
    %v1974 = vunpack.c.l.b16 %v430
    %v1975 = vunpack.c.h.b16 %v430
    %v1976 = vunpack.c.l.b16 %v431
    %v1977 = vunpack.c.h.b16 %v431
    %v1978 = vunpack.c.l.b16 %v432
    %v1979 = vunpack.c.h.b16 %v432
    %v1980 = vunpack.c.l.b16 %v433
    %v1981 = vunpack.c.h.b16 %v433
    %v1982 = vunpack.c.l.b16 %v434
    %v1983 = vunpack.c.h.b16 %v434
    %v1984 = vunpack.c.l.b16 %v435
    %v1985 = vunpack.c.h.b16 %v435
    %v1986 = vunpack.c.l.b16 %v436
    %v1987 = vunpack.c.h.b16 %v436
    %v1988 = vunpack.c.l.b16 %v437
    %v1989 = vunpack.c.h.b16 %v437
    %v1990 = vunpack.c.l.b16 %v438
    %v1991 = vunpack.c.h.b16 %v438
    %v1992 = vunpack.c.l.b16 %v439
    %v1993 = vunpack.c.h.b16 %v439
    %v1994 = vunpack.c.l.b16 %v440
    %v1995 = vunpack.c.h.b16 %v440
    %v1996 = vunpack.c.l.b16 %v441
    %v1997 = vunpack.c.h.b16 %v441
    %v1998 = vunpack.c.l.b16 %v442
    %v1999 = vunpack.c.h.b16 %v442
    %v2000 = vunpack.c.l.b16 %v443
    %v2001 = vunpack.c.h.b16 %v443
    %v2002 = vunpack.c.l.b16 %v444
    %v2003 = vunpack.c.h.b16 %v444
    %v2004 = vunpack.c.l.b16 %v445
    %v2005 = vunpack.c.h.b16 %v445
    %v2006 = vunpack.c.l.b16 %v446
    %v2007 = vunpack.c.h.b16 %v446
    %v2008 = vunpack.c.l.b16 %v447
    %v2009 = vunpack.c.h.b16 %v447
    %v2010 = vunpack.c.l.b16 %v448
    %v2011 = vunpack.c.h.b16 %v448
    %v2012 = vunpack.c.l.b16 %v449
    %v2013 = vunpack.c.h.b16 %v449
    %v2014 = vunpack.c.l.b16 %v450
    %v2015 = vunpack.c.h.b16 %v450
    %v2016 = vunpack.c.l.b16 %v451
    %v2017 = vunpack.c.h.b16 %v451
    %v2018 = vunpack.c.l.b16 %v452
    %v2019 = vunpack.c.h.b16 %v452
    %v2020 = vunpack.c.l.b16 %v453
    %v2021 = vunpack.c.h.b16 %v453
    %v2022 = vunpack.c.l.b16 %v454
    %v2023 = vunpack.c.h.b16 %v454
    %v2024 = vunpack.c.l.b16 %v455
    %v2025 = vunpack.c.h.b16 %v455
    %v2026 = vunpack.c.l.b16 %v456
    %v2027 = vunpack.c.h.b16 %v456
    %v2028 = vunpack.c.l.b16 %v457
    %v2029 = vunpack.c.h.b16 %v457
    %v2030 = vunpack.c.l.b16 %v458
    %v2031 = vunpack.c.h.b16 %v458
    %v2032 = vunpack.c.l.b16 %v459
    %v2033 = vunpack.c.h.b16 %v459
    %v2034 = vunpack.c.l.b16 %v460
    %v2035 = vunpack.c.h.b16 %v460
    %v2036 = vunpack.c.l.b16 %v461
    %v2037 = vunpack.c.h.b16 %v461
    %v2038 = vunpack.c.l.b16 %v462
    %v2039 = vunpack.c.h.b16 %v462
    %v2040 = vunpack.c.l.b16 %v463
    %v2041 = vunpack.c.h.b16 %v463
    %v2042 = vunpack.c.l.b16 %v464
    %v2043 = vunpack.c.h.b16 %v464
    %v2044 = vunpack.c.l.b16 %v465
    %v2045 = vunpack.c.h.b16 %v465
    %v2046 = vunpack.c.l.b16 %v466
    %v2047 = vunpack.c.h.b16 %v466
    %v2048 = vunpack.c.l.b16 %v467
    %v2049 = vunpack.c.h.b16 %v467
    %v2050 = vunpack.c.l.b16 %v468
    %v2051 = vunpack.c.h.b16 %v468
    %v2052 = vunpack.c.l.b16 %v469
    %v2053 = vunpack.c.h.b16 %v469
    %v2054 = vunpack.c.l.b16 %v470
    %v2055 = vunpack.c.h.b16 %v470
    %v2056 = vunpack.c.l.b16 %v471
    %v2057 = vunpack.c.h.b16 %v471
    %v2058 = vunpack.c.l.b16 %v472
    %v2059 = vunpack.c.h.b16 %v472
    %v2060 = vunpack.c.l.b16 %v473
    %v2061 = vunpack.c.h.b16 %v473
    %v2062 = vunpack.c.l.b16 %v474
    %v2063 = vunpack.c.h.b16 %v474
    %v2064 = vpack.c.b16 %v1940, %v1936
    %v2065 = vpack.c.b16 %v1941, %v1937
    %v2066 = vpack.c.b16 %v1942, %v1938
    %v2067 = vpack.c.b16 %v1943, %v1939
    %v2068 = vpack.c.b16 %v1948, %v1944
    %v2069 = vpack.c.b16 %v1949, %v1945
    %v2070 = vpack.c.b16 %v1950, %v1946
    %v2071 = vpack.c.b16 %v1951, %v1947
    %v2072 = vpack.c.b16 %v1956, %v1952
    %v2073 = vpack.c.b16 %v1957, %v1953
    %v2074 = vpack.c.b16 %v1958, %v1954
    %v2075 = vpack.c.b16 %v1959, %v1955
    %v2076 = vpack.c.b16 %v1964, %v1960
    %v2077 = vpack.c.b16 %v1965, %v1961
    %v2078 = vpack.c.b16 %v1966, %v1962
    %v2079 = vpack.c.b16 %v1967, %v1963
    %v2080 = vpack.c.b16 %v1972, %v1968
    %v2081 = vpack.c.b16 %v1973, %v1969
    %v2082 = vpack.c.b16 %v1974, %v1970
    %v2083 = vpack.c.b16 %v1975, %v1971
    %v2084 = vpack.c.b16 %v1980, %v1976
    %v2085 = vpack.c.b16 %v1981, %v1977
    %v2086 = vpack.c.b16 %v1982, %v1978
    %v2087 = vpack.c.b16 %v1983, %v1979
    %v2088 = vpack.c.b16 %v1988, %v1984
    %v2089 = vpack.c.b16 %v1989, %v1985
    %v2090 = vpack.c.b16 %v1990, %v1986
    %v2091 = vpack.c.b16 %v1991, %v1987
    %v2092 = vpack.c.b16 %v1996, %v1992
    %v2093 = vpack.c.b16 %v1997, %v1993
    %v2094 = vpack.c.b16 %v1998, %v1994
    %v2095 = vpack.c.b16 %v1999, %v1995
    %v2096 = vpack.c.b16 %v2004, %v2000
    %v2097 = vpack.c.b16 %v2005, %v2001
    %v2098 = vpack.c.b16 %v2006, %v2002
    %v2099 = vpack.c.b16 %v2007, %v2003
    %v2100 = vpack.c.b16 %v2012, %v2008
    %v2101 = vpack.c.b16 %v2013, %v2009
    %v2102 = vpack.c.b16 %v2014, %v2010
    %v2103 = vpack.c.b16 %v2015, %v2011
    %v2104 = vpack.c.b16 %v2020, %v2016
    %v2105 = vpack.c.b16 %v2021, %v2017
    %v2106 = vpack.c.b16 %v2022, %v2018
    %v2107 = vpack.c.b16 %v2023, %v2019
    %v2108 = vpack.c.b16 %v2028, %v2024
    %v2109 = vpack.c.b16 %v2029, %v2025
    %v2110 = vpack.c.b16 %v2030, %v2026
    %v2111 = vpack.c.b16 %v2031, %v2027
    %v2112 = vpack.c.b16 %v2036, %v2032
    %v2113 = vpack.c.b16 %v2037, %v2033
    %v2114 = vpack.c.b16 %v2038, %v2034
    %v2115 = vpack.c.b16 %v2039, %v2035
    %v2116 = vpack.c.b16 %v2044, %v2040
    %v2117 = vpack.c.b16 %v2045, %v2041
    %v2118 = vpack.c.b16 %v2046, %v2042
    %v2119 = vpack.c.b16 %v2047, %v2043
    %v2120 = vpack.c.b16 %v2052, %v2048
    %v2121 = vpack.c.b16 %v2053, %v2049
    %v2122 = vpack.c.b16 %v2054, %v2050
    %v2123 = vpack.c.b16 %v2055, %v2051
    %v2124 = vpack.c.b16 %v2060, %v2056
    %v2125 = vpack.c.b16 %v2061, %v2057
    %v2126 = vpack.c.b16 %v2062, %v2058
    %v2127 = vpack.c.b16 %v2063, %v2059
    %2192 = vmatprep.subr.bf16.mxu0 %v2093
    %2193 = vmatpush1.bf16.msra.mxu0 %v2092
    %2194 = vmatprep.subr.bf16.mxu0 %v2089
    %2195 = vmatpush1.bf16.msra.mxu0 %v2088
    %2196 = vmatprep.subr.bf16.mxu0 %v2085
    %2197 = vmatpush1.bf16.msra.mxu0 %v2084
    %2198 = vmatprep.subr.bf16.mxu0 %v2081
    %2199 = vmatpush1.bf16.msra.mxu0 %v2080
    %2200 = vmatprep.subr.bf16.mxu0 %v2077
    %2201 = vmatpush1.bf16.msra.mxu0 %v2076
    %2202 = vmatprep.subr.bf16.mxu0 %v2073
    %2203 = vmatpush1.bf16.msra.mxu0 %v2072
    %2204 = vmatprep.subr.bf16.mxu0 %v2069
    %2205 = vmatpush1.bf16.msra.mxu0 %v2068
    %2206 = vmatprep.subr.bf16.mxu0 %v2065
    %2207 = vmatpush1.bf16.msra.mxu0 %v2064
    %2208 = vmatprep.subr.bf16.mxu0 %v2125
    %2209 = vmatpush2.bf16.msra.mxu0 %v2124
    %2210 = vmatprep.subr.bf16.mxu0 %v2121
    %2211 = vmatpush2.bf16.msra.mxu0 %v2120
    %2212 = vmatprep.subr.bf16.mxu0 %v2117
    %2213 = vmatpush2.bf16.msra.mxu0 %v2116
    %2214 = vmatprep.subr.bf16.mxu0 %v2113
    %2215 = vmatpush2.bf16.msra.mxu0 %v2112
    %2216 = vmatprep.subr.bf16.mxu0 %v2109
    %2217 = vmatpush2.bf16.msra.mxu0 %v2108
    %2218 = vmatprep.subr.bf16.mxu0 %v2105
    %2219 = vmatpush2.bf16.msra.mxu0 %v2104
    %2220 = vmatprep.subr.bf16.mxu0 %v2101
    %2221 = vmatpush2.bf16.msra.mxu0 %v2100
    %2222 = vmatprep.subr.bf16.mxu0 %v2097
    %2223 = vmatpush2.bf16.msra.mxu0 %v2096
    %2224 = vmatprep.mubr.bf16.mxu0 %v1850
    %2225 = vmatmul.mubr.bf16.gmra.mxu0 %v1743
    %v2226 = vpop.f32.mrf.mxu0
    %v2227 = vadd.f32 %v1855, %v2226
    %v2228 = vpop.f32.mrf.mxu0
    %v2229 = vadd.f32 %v1859, %v2228
    %v2230 = vpop.f32.mrf.mxu0
    %v2231 = vpop.f32.mrf.mxu0
    %2232 = vdwg.mxu0
    %2233 = vmatprep.subr.bf16.mxu0 %v2095
    %2234 = vmatpush1.bf16.msra.mxu0 %v2094
    %2235 = vmatprep.subr.bf16.mxu0 %v2091
    %2236 = vmatpush1.bf16.msra.mxu0 %v2090
    %2237 = vmatprep.subr.bf16.mxu0 %v2087
    %2238 = vmatpush1.bf16.msra.mxu0 %v2086
    %2239 = vmatprep.subr.bf16.mxu0 %v2083
    %2240 = vmatpush1.bf16.msra.mxu0 %v2082
    %2241 = vmatprep.subr.bf16.mxu0 %v2079
    %2242 = vmatpush1.bf16.msra.mxu0 %v2078
    %2243 = vmatprep.subr.bf16.mxu0 %v2075
    %2244 = vmatpush1.bf16.msra.mxu0 %v2074
    %2245 = vmatprep.subr.bf16.mxu0 %v2071
    %2246 = vmatpush1.bf16.msra.mxu0 %v2070
    %2247 = vmatprep.subr.bf16.mxu0 %v2067
    %2248 = vmatpush1.bf16.msra.mxu0 %v2066
    %2249 = vmatprep.subr.bf16.mxu0 %v2127
    %2250 = vmatpush2.bf16.msra.mxu0 %v2126
    %2251 = vmatprep.subr.bf16.mxu0 %v2123
    %2252 = vmatpush2.bf16.msra.mxu0 %v2122
    %2253 = vmatprep.subr.bf16.mxu0 %v2119
    %2254 = vmatpush2.bf16.msra.mxu0 %v2118
    %2255 = vmatprep.subr.bf16.mxu0 %v2115
    %2256 = vmatpush2.bf16.msra.mxu0 %v2114
    %2257 = vmatprep.subr.bf16.mxu0 %v2111
    %2258 = vmatpush2.bf16.msra.mxu0 %v2110
    %2259 = vmatprep.subr.bf16.mxu0 %v2107
    %2260 = vmatpush2.bf16.msra.mxu0 %v2106
    %2261 = vmatprep.subr.bf16.mxu0 %v2103
    %2262 = vmatpush2.bf16.msra.mxu0 %v2102
    %2263 = vmatprep.subr.bf16.mxu0 %v2099
    %2264 = vmatpush2.bf16.msra.mxu0 %v2098
    %2265 = vmatprep.mubr.bf16.mxu0 %v1850
    %2266 = vmatmul.mubr.bf16.gmra.mxu0 %v1743
    %v2267 = vpop.f32.mrf.mxu0
    %v2268 = vadd.f32 %v1863, %v2267
    %v2269 = vpop.f32.mrf.mxu0
    %v2270 = vadd.f32 %v1867, %v2269
    %v2271 = vpop.f32.mrf.mxu0
    %v2272 = vpop.f32.mrf.mxu0
    %2273 = vdwg.mxu0
    %v2274 = vxor.u32 %v2227, 2147483648
    %v2275 = vmul.f32 %v2274, 1.442695
    %v2276 = vpow.pop %v2275
    %v2277 = vadd.f32 %v2276, 1.0
    %v2278 = vrcp.pop %v2277
    %v2279 = vmul.f32 1.0, %v2278
    %v2280 = vxor.u32 %v2229, 2147483648
    %v2281 = vmul.f32 %v2280, 1.442695
    %v2282 = vpow.pop %v2281
    %v2283 = vadd.f32 %v2282, 1.0
    %v2284 = vrcp.pop %v2283
    %v2285 = vmul.f32 1.0, %v2284
    %v2286 = vtanh.pop %v2268
    %v2287 = vxor.u32 %v2270, 2147483648
    %v2288 = vmul.f32 %v2287, 1.442695
    %v2289 = vpow.pop %v2288
    %v2290 = vadd.f32 %v2289, 1.0
    %v2291 = vrcp.pop %v2290
    %v2292 = vmul.f32 1.0, %v2291
    %v2293 = vmul.f32 %v2285, %v486
    %v2294 = vmul.f32 %v2279, %v2286
    %v2295 = vadd.f32 %v2293, %v2294
    %v2296 = vtanh.pop %v2295
    %v2297 = vmul.f32 %v2292, %v2296
    %v2300 = vunpack.c.l.s4 1966171168
    %v2301 = vunpack.c.0.s8 %v2300
    %v2302 = vlaneseq
    %v2303 = vshrl.u32 %v2302, 7
    %v2304 = vsub.s32 %v2301, %v2303
    %v2305 = vrot.slane %v2297, %v2304
    %v2306 = vcombine.high %v2305, %v2305
    %v2308 = vunpack.c.l.s4 1966171168
    %v2309 = vunpack.c.0.s8 %v2308
    %v2310 = vlaneseq
    %v2311 = vshrl.u32 %v2310, 7
    %v2312 = vsub.s32 %v2309, %v2311
    %v2313 = vrot.slane %v2305, %v2312
    %v2315 = vunpack.c.l.s4 1966171168
    %v2316 = vunpack.c.0.s8 %v2315
    %v2317 = vlaneseq
    %v2318 = vshrl.u32 %v2317, 7
    %v2319 = vsub.s32 %v2316, %v2318
    %v2320 = vrot.slane %v2306, %v2319
    %2323 = vst [vmem:[#allocation11] sm:$0x1] %v2313
    %2324 = vst [vmem:[#allocation11 + $0x8] sm:$0x1] %v2320
    %s2325 = scalar_lea.vmem [#allocation2], 3
    %v2326 = vld [vmem:[%s2325] ss:$8 sm:$0xf]
    %s2327 = scalar_lea.vmem [#allocation2], 35
    %v2328 = vld [vmem:[%s2327] ss:$8 sm:$0xf]
    %v2329 = vpack.c.bf16 %v1722, %v1722
    %v2330 = vpack.c.bf16 %v1723, %v1723
    %v2333 = vunpack.c.l.b16 %v2329
    %v2334 = vunpack.c.l.b16 %v2330
    %v2335 = vrot.slane %v2334, 7
    %v2336 = vsel %vm871, %v2335, %v2333
    %v2337 = vpack.c.b16 %v2336, %v2336
    %2339 = vmatprep.subr.bf16.mxu0 %v616
    %2340 = vmatpush1.bf16.msra.mxu0 %v615
    %2341 = vmatprep.subr.bf16.mxu0 %v612
    %2342 = vmatpush1.bf16.msra.mxu0 %v611
    %2343 = vmatprep.subr.bf16.mxu0 %v608
    %2344 = vmatpush1.bf16.msra.mxu0 %v607
    %2345 = vmatprep.subr.bf16.mxu0 %v604
    %2346 = vmatpush1.bf16.msra.mxu0 %v603
    %2347 = vmatprep.subr.bf16.mxu0 %v600
    %2348 = vmatpush1.bf16.msra.mxu0 %v599
    %2349 = vmatprep.subr.bf16.mxu0 %v596
    %2350 = vmatpush1.bf16.msra.mxu0 %v595
    %2351 = vmatprep.subr.bf16.mxu0 %v592
    %2352 = vmatpush1.bf16.msra.mxu0 %v591
    %2353 = vmatprep.subr.bf16.mxu0 %v588
    %2354 = vmatpush1.bf16.msra.mxu0 %v587
    %2355 = vmatprep.subr.bf16.mxu0 0
    %2356 = vmatpush2.bf16.msra.mxu0 0
    %2357 = vmatprep.subr.bf16.mxu0 0
    %2358 = vmatpush2.bf16.msra.mxu0 0
    %2359 = vmatprep.subr.bf16.mxu0 0
    %2360 = vmatpush2.bf16.msra.mxu0 0
    %2361 = vmatprep.subr.bf16.mxu0 0
    %2362 = vmatpush2.bf16.msra.mxu0 0
    %2363 = vmatprep.subr.bf16.mxu0 0
    %2364 = vmatpush2.bf16.msra.mxu0 0
    %2365 = vmatprep.subr.bf16.mxu0 0
    %2366 = vmatpush2.bf16.msra.mxu0 0
    %2367 = vmatprep.subr.bf16.mxu0 0
    %2368 = vmatpush2.bf16.msra.mxu0 0
    %2369 = vmatprep.subr.bf16.mxu0 0
    %2370 = vmatpush2.bf16.msra.mxu0 0
    %2371 = vmatprep.mubr.bf16.mxu0 0
    %2372 = vmatmul.mubr.bf16.gmra.mxu0 %v2337
    %v2373 = vpop.f32.mrf.mxu0
    %v2374 = vadd.f32 0.0, %v2373
    %v2375 = vpop.f32.mrf.mxu0
    %v2376 = vadd.f32 0.0, %v2375
    %v2377 = vpop.f32.mrf.mxu0
    %v2378 = vpop.f32.mrf.mxu0
    %2379 = vdwg.mxu0
    %2380 = vmatprep.subr.bf16.mxu0 %v618
    %2381 = vmatpush1.bf16.msra.mxu0 %v617
    %2382 = vmatprep.subr.bf16.mxu0 %v614
    %2383 = vmatpush1.bf16.msra.mxu0 %v613
    %2384 = vmatprep.subr.bf16.mxu0 %v610
    %2385 = vmatpush1.bf16.msra.mxu0 %v609
    %2386 = vmatprep.subr.bf16.mxu0 %v606
    %2387 = vmatpush1.bf16.msra.mxu0 %v605
    %2388 = vmatprep.subr.bf16.mxu0 %v602
    %2389 = vmatpush1.bf16.msra.mxu0 %v601
    %2390 = vmatprep.subr.bf16.mxu0 %v598
    %2391 = vmatpush1.bf16.msra.mxu0 %v597
    %2392 = vmatprep.subr.bf16.mxu0 %v594
    %2393 = vmatpush1.bf16.msra.mxu0 %v593
    %2394 = vmatprep.subr.bf16.mxu0 %v590
    %2395 = vmatpush1.bf16.msra.mxu0 %v589
    %2396 = vmatprep.subr.bf16.mxu0 0
    %2397 = vmatpush2.bf16.msra.mxu0 0
    %2398 = vmatprep.subr.bf16.mxu0 0
    %2399 = vmatpush2.bf16.msra.mxu0 0
    %2400 = vmatprep.subr.bf16.mxu0 0
    %2401 = vmatpush2.bf16.msra.mxu0 0
    %2402 = vmatprep.subr.bf16.mxu0 0
    %2403 = vmatpush2.bf16.msra.mxu0 0
    %2404 = vmatprep.subr.bf16.mxu0 0
    %2405 = vmatpush2.bf16.msra.mxu0 0
    %2406 = vmatprep.subr.bf16.mxu0 0
    %2407 = vmatpush2.bf16.msra.mxu0 0
    %2408 = vmatprep.subr.bf16.mxu0 0
    %2409 = vmatpush2.bf16.msra.mxu0 0
    %2410 = vmatprep.subr.bf16.mxu0 0
    %2411 = vmatpush2.bf16.msra.mxu0 0
    %2412 = vmatprep.mubr.bf16.mxu0 0
    %2413 = vmatmul.mubr.bf16.gmra.mxu0 %v2337
    %v2414 = vpop.f32.mrf.mxu0
    %v2415 = vadd.f32 0.0, %v2414
    %v2416 = vpop.f32.mrf.mxu0
    %v2417 = vadd.f32 0.0, %v2416
    %v2418 = vpop.f32.mrf.mxu0
    %v2419 = vpop.f32.mrf.mxu0
    %2420 = vdwg.mxu0
    %v2425 = vcombine.low %v2374, %v2376
    %v2426 = vcombine.low %v2415, %v2417
    %v2428 = vunpack.c.l.s4 1966171168
    %v2429 = vunpack.c.0.s8 %v2428
    %v2430 = vlaneseq
    %v2431 = vshrl.u32 %v2430, 7
    %v2432 = vsub.s32 %v2429, %v2431
    %v2433 = vrot.slane %v2425, %v2432
    %v2435 = vunpack.c.l.s4 1966171168
    %v2436 = vunpack.c.0.s8 %v2435
    %v2437 = vlaneseq
    %v2438 = vshrl.u32 %v2437, 7
    %v2439 = vsub.s32 %v2436, %v2438
    %v2440 = vrot.slane %v2426, %v2439
    %v2441 = vcombine.low %v2433, %v2440
    %v2442 = vcombine.high %v2433, %v2440
    %v2444 = vunpack.c.l.s4 1966171168
    %v2445 = vunpack.c.0.s8 %v2444
    %v2446 = vlaneseq
    %v2447 = vshrl.u32 %v2446, 7
    %v2448 = vsub.s32 %v2445, %v2447
    %v2449 = vrot.slane %v2441, %v2448
    %v2451 = vunpack.c.l.s4 1966171168
    %v2452 = vunpack.c.0.s8 %v2451
    %v2453 = vlaneseq
    %v2454 = vshrl.u32 %v2453, 7
    %v2455 = vsub.s32 %v2452, %v2454
    %v2456 = vrot.slane %v2442, %v2455
    %v2459 = vadd.f32 %v2326, %v2449
    %v2460 = vadd.f32 %v2328, %v2456
    %v2461 = vxor.u32 %v2459, 2147483648
    %v2462 = vxor.u32 %v2460, 2147483648
    %v2463 = vmul.f32 %v2461, 1.442695
    %v2464 = vpow.pop %v2463
    %v2465 = vmul.f32 %v2462, 1.442695
    %v2466 = vpow.pop %v2465
    %v2467 = vadd.f32 %v2464, 1.0
    %v2468 = vadd.f32 %v2466, 1.0
    %v2469 = vrcp.pop %v2467
    %v2470 = vmul.f32 1.0, %v2469
    %v2471 = vrcp.pop %v2468
    %v2472 = vmul.f32 1.0, %v2471
    %v2475 = vrot.slane %v2459, 1
    %v2476 = vrot.slane %v2460, 1
    %v2479 = vxor.u32 %v2475, 2147483648
    %v2480 = vxor.u32 %v2476, 2147483648
    %v2481 = vmul.f32 %v2479, 1.442695
    %v2482 = vpow.pop %v2481
    %v2483 = vmul.f32 %v2480, 1.442695
    %v2484 = vpow.pop %v2483
    %v2485 = vadd.f32 %v2482, 1.0
    %v2486 = vadd.f32 %v2484, 1.0
    %v2487 = vrcp.pop %v2485
    %v2488 = vmul.f32 1.0, %v2487
    %v2489 = vrcp.pop %v2486
    %v2490 = vmul.f32 1.0, %v2489
    %v2491 = vrot.slane %v2459, 2
    %v2492 = vrot.slane %v2460, 2
    %v2495 = vtanh.pop %v2491
    %v2496 = vtanh.pop %v2492
    %v2497 = vrot.slane %v2459, 3
    %v2498 = vrot.slane %v2460, 3
    %v2501 = vxor.u32 %v2497, 2147483648
    %v2502 = vxor.u32 %v2498, 2147483648
    %v2503 = vmul.f32 %v2501, 1.442695
    %v2504 = vpow.pop %v2503
    %v2505 = vmul.f32 %v2502, 1.442695
    %v2506 = vpow.pop %v2505
    %v2507 = vadd.f32 %v2504, 1.0
    %v2508 = vadd.f32 %v2506, 1.0
    %v2509 = vrcp.pop %v2507
    %v2510 = vmul.f32 1.0, %v2509
    %v2511 = vrcp.pop %v2508
    %v2512 = vmul.f32 1.0, %v2511
    %v2513 = vmul.f32 %v2488, %v1718
    %v2514 = vmul.f32 %v2490, %v1719
    %v2515 = vmul.f32 %v2470, %v2495
    %v2516 = vmul.f32 %v2472, %v2496
    %v2517 = vadd.f32 %v2513, %v2515
    %v2518 = vadd.f32 %v2514, %v2516
    %v2519 = vtanh.pop %v2517
    %v2520 = vtanh.pop %v2518
    %v2521 = vmul.f32 %v2510, %v2519
    %v2522 = vmul.f32 %v2512, %v2520
    %v2525 = vcombine.low %v1722, %v1723
    %v2527 = vunpack.c.l.s4 1966171168
    %v2528 = vunpack.c.0.s8 %v2527
    %v2529 = vlaneseq
    %v2530 = vshrl.u32 %v2529, 7
    %v2531 = vsub.s32 %v2528, %v2530
    %v2532 = vrot.slane %v2525, %v2531
    %v2534 = vunpack.c.l.s4 1966171168
    %v2535 = vunpack.c.0.s8 %v2534
    %v2536 = vlaneseq
    %v2537 = vshrl.u32 %v2536, 7
    %v2538 = vsub.s32 %v2535, %v2537
    %v2539 = vrot.slane %v2532, %v2538
    %v2541 = vpack.c.bf16 %v2539, %v2539
    %v2542 = vpack.c.bf16 %v1849, %v1849
    %2543 = vmatprep.subr.bf16.mxu0 %v1321
    %2544 = vmatpush1.bf16.msra.mxu0 %v1320
    %2545 = vmatprep.subr.bf16.mxu0 %v1317
    %2546 = vmatpush1.bf16.msra.mxu0 %v1316
    %2547 = vmatprep.subr.bf16.mxu0 %v1313
    %2548 = vmatpush1.bf16.msra.mxu0 %v1312
    %2549 = vmatprep.subr.bf16.mxu0 %v1309
    %2550 = vmatpush1.bf16.msra.mxu0 %v1308
    %2551 = vmatprep.subr.bf16.mxu0 %v1305
    %2552 = vmatpush1.bf16.msra.mxu0 %v1304
    %2553 = vmatprep.subr.bf16.mxu0 %v1301
    %2554 = vmatpush1.bf16.msra.mxu0 %v1300
    %2555 = vmatprep.subr.bf16.mxu0 %v1297
    %2556 = vmatpush1.bf16.msra.mxu0 %v1296
    %2557 = vmatprep.subr.bf16.mxu0 %v1293
    %2558 = vmatpush1.bf16.msra.mxu0 %v1292
    %2559 = vmatprep.subr.bf16.mxu0 %v1353
    %2560 = vmatpush2.bf16.msra.mxu0 %v1352
    %2561 = vmatprep.subr.bf16.mxu0 %v1349
    %2562 = vmatpush2.bf16.msra.mxu0 %v1348
    %2563 = vmatprep.subr.bf16.mxu0 %v1345
    %2564 = vmatpush2.bf16.msra.mxu0 %v1344
    %2565 = vmatprep.subr.bf16.mxu0 %v1341
    %2566 = vmatpush2.bf16.msra.mxu0 %v1340
    %2567 = vmatprep.subr.bf16.mxu0 %v1337
    %2568 = vmatpush2.bf16.msra.mxu0 %v1336
    %2569 = vmatprep.subr.bf16.mxu0 %v1333
    %2570 = vmatpush2.bf16.msra.mxu0 %v1332
    %2571 = vmatprep.subr.bf16.mxu0 %v1329
    %2572 = vmatpush2.bf16.msra.mxu0 %v1328
    %2573 = vmatprep.subr.bf16.mxu0 %v1325
    %2574 = vmatpush2.bf16.msra.mxu0 %v1324
    %2575 = vmatprep.mubr.bf16.mxu0 %v2542
    %2576 = vmatmul.mubr.bf16.gmra.mxu0 %v2541
    %v2577 = vpop.f32.mrf.mxu0
    %v2578 = vadd.f32 %v1083, %v2577
    %v2579 = vpop.f32.mrf.mxu0
    %v2580 = vadd.f32 %v1087, %v2579
    %v2581 = vpop.f32.mrf.mxu0
    %v2582 = vpop.f32.mrf.mxu0
    %2583 = vdwg.mxu0
    %2584 = vmatprep.subr.bf16.mxu0 %v1323
    %2585 = vmatpush1.bf16.msra.mxu0 %v1322
    %2586 = vmatprep.subr.bf16.mxu0 %v1319
    %2587 = vmatpush1.bf16.msra.mxu0 %v1318
    %2588 = vmatprep.subr.bf16.mxu0 %v1315
    %2589 = vmatpush1.bf16.msra.mxu0 %v1314
    %2590 = vmatprep.subr.bf16.mxu0 %v1311
    %2591 = vmatpush1.bf16.msra.mxu0 %v1310
    %2592 = vmatprep.subr.bf16.mxu0 %v1307
    %2593 = vmatpush1.bf16.msra.mxu0 %v1306
    %2594 = vmatprep.subr.bf16.mxu0 %v1303
    %2595 = vmatpush1.bf16.msra.mxu0 %v1302
    %2596 = vmatprep.subr.bf16.mxu0 %v1299
    %2597 = vmatpush1.bf16.msra.mxu0 %v1298
    %2598 = vmatprep.subr.bf16.mxu0 %v1295
    %2599 = vmatpush1.bf16.msra.mxu0 %v1294
    %2600 = vmatprep.subr.bf16.mxu0 %v1355
    %2601 = vmatpush2.bf16.msra.mxu0 %v1354
    %2602 = vmatprep.subr.bf16.mxu0 %v1351
    %2603 = vmatpush2.bf16.msra.mxu0 %v1350
    %2604 = vmatprep.subr.bf16.mxu0 %v1347
    %2605 = vmatpush2.bf16.msra.mxu0 %v1346
    %2606 = vmatprep.subr.bf16.mxu0 %v1343
    %2607 = vmatpush2.bf16.msra.mxu0 %v1342
    %2608 = vmatprep.subr.bf16.mxu0 %v1339
    %2609 = vmatpush2.bf16.msra.mxu0 %v1338
    %2610 = vmatprep.subr.bf16.mxu0 %v1335
    %2611 = vmatpush2.bf16.msra.mxu0 %v1334
    %2612 = vmatprep.subr.bf16.mxu0 %v1331
    %2613 = vmatpush2.bf16.msra.mxu0 %v1330
    %2614 = vmatprep.subr.bf16.mxu0 %v1327
    %2615 = vmatpush2.bf16.msra.mxu0 %v1326
    %2616 = vmatprep.mubr.bf16.mxu0 %v2542
    %2617 = vmatmul.mubr.bf16.gmra.mxu0 %v2541
    %v2618 = vpop.f32.mrf.mxu0
    %v2619 = vadd.f32 %v1091, %v2618
    %v2620 = vpop.f32.mrf.mxu0
    %v2621 = vadd.f32 %v1095, %v2620
    %v2622 = vpop.f32.mrf.mxu0
    %v2623 = vpop.f32.mrf.mxu0
    %2624 = vdwg.mxu0
    %v2625 = vxor.u32 %v2578, 2147483648
    %v2626 = vmul.f32 %v2625, 1.442695
    %v2627 = vpow.pop %v2626
    %v2628 = vadd.f32 %v2627, 1.0
    %v2629 = vrcp.pop %v2628
    %v2630 = vmul.f32 1.0, %v2629
    %v2631 = vxor.u32 %v2580, 2147483648
    %v2632 = vmul.f32 %v2631, 1.442695
    %v2633 = vpow.pop %v2632
    %v2634 = vadd.f32 %v2633, 1.0
    %v2635 = vrcp.pop %v2634
    %v2636 = vmul.f32 1.0, %v2635
    %v2637 = vtanh.pop %v2619
    %v2638 = vxor.u32 %v2621, 2147483648
    %v2639 = vmul.f32 %v2638, 1.442695
    %v2640 = vpow.pop %v2639
    %v2641 = vadd.f32 %v2640, 1.0
    %v2642 = vrcp.pop %v2641
    %v2643 = vmul.f32 1.0, %v2642
    %v2644 = vmul.f32 %v2636, %v1847
    %v2645 = vmul.f32 %v2630, %v2637
    %v2646 = vadd.f32 %v2644, %v2645
    %v2647 = vtanh.pop %v2646
    %v2648 = vmul.f32 %v2643, %v2647
    %v2649 = vpack.c.bf16 %v2297, %v2297
    %2650 = vmatprep.subr.bf16.mxu0 %v2093
    %2651 = vmatpush1.bf16.msra.mxu0 %v2092
    %2652 = vmatprep.subr.bf16.mxu0 %v2089
    %2653 = vmatpush1.bf16.msra.mxu0 %v2088
    %2654 = vmatprep.subr.bf16.mxu0 %v2085
    %2655 = vmatpush1.bf16.msra.mxu0 %v2084
    %2656 = vmatprep.subr.bf16.mxu0 %v2081
    %2657 = vmatpush1.bf16.msra.mxu0 %v2080
    %2658 = vmatprep.subr.bf16.mxu0 %v2077
    %2659 = vmatpush1.bf16.msra.mxu0 %v2076
    %2660 = vmatprep.subr.bf16.mxu0 %v2073
    %2661 = vmatpush1.bf16.msra.mxu0 %v2072
    %2662 = vmatprep.subr.bf16.mxu0 %v2069
    %2663 = vmatpush1.bf16.msra.mxu0 %v2068
    %2664 = vmatprep.subr.bf16.mxu0 %v2065
    %2665 = vmatpush1.bf16.msra.mxu0 %v2064
    %2666 = vmatprep.subr.bf16.mxu0 %v2125
    %2667 = vmatpush2.bf16.msra.mxu0 %v2124
    %2668 = vmatprep.subr.bf16.mxu0 %v2121
    %2669 = vmatpush2.bf16.msra.mxu0 %v2120
    %2670 = vmatprep.subr.bf16.mxu0 %v2117
    %2671 = vmatpush2.bf16.msra.mxu0 %v2116
    %2672 = vmatprep.subr.bf16.mxu0 %v2113
    %2673 = vmatpush2.bf16.msra.mxu0 %v2112
    %2674 = vmatprep.subr.bf16.mxu0 %v2109
    %2675 = vmatpush2.bf16.msra.mxu0 %v2108
    %2676 = vmatprep.subr.bf16.mxu0 %v2105
    %2677 = vmatpush2.bf16.msra.mxu0 %v2104
    %2678 = vmatprep.subr.bf16.mxu0 %v2101
    %2679 = vmatpush2.bf16.msra.mxu0 %v2100
    %2680 = vmatprep.subr.bf16.mxu0 %v2097
    %2681 = vmatpush2.bf16.msra.mxu0 %v2096
    %2682 = vmatprep.mubr.bf16.mxu0 %v2649
    %2683 = vmatmul.mubr.bf16.gmra.mxu0 %v2542
    %v2684 = vpop.f32.mrf.mxu0
    %v2685 = vadd.f32 %v1855, %v2684
    %v2686 = vpop.f32.mrf.mxu0
    %v2687 = vadd.f32 %v1859, %v2686
    %v2688 = vpop.f32.mrf.mxu0
    %v2689 = vpop.f32.mrf.mxu0
    %2690 = vdwg.mxu0
    %2691 = vmatprep.subr.bf16.mxu0 %v2095
    %2692 = vmatpush1.bf16.msra.mxu0 %v2094
    %2693 = vmatprep.subr.bf16.mxu0 %v2091
    %2694 = vmatpush1.bf16.msra.mxu0 %v2090
    %2695 = vmatprep.subr.bf16.mxu0 %v2087
    %2696 = vmatpush1.bf16.msra.mxu0 %v2086
    %2697 = vmatprep.subr.bf16.mxu0 %v2083
    %2698 = vmatpush1.bf16.msra.mxu0 %v2082
    %2699 = vmatprep.subr.bf16.mxu0 %v2079
    %2700 = vmatpush1.bf16.msra.mxu0 %v2078
    %2701 = vmatprep.subr.bf16.mxu0 %v2075
    %2702 = vmatpush1.bf16.msra.mxu0 %v2074
    %2703 = vmatprep.subr.bf16.mxu0 %v2071
    %2704 = vmatpush1.bf16.msra.mxu0 %v2070
    %2705 = vmatprep.subr.bf16.mxu0 %v2067
    %2706 = vmatpush1.bf16.msra.mxu0 %v2066
    %2707 = vmatprep.subr.bf16.mxu0 %v2127
    %2708 = vmatpush2.bf16.msra.mxu0 %v2126
    %2709 = vmatprep.subr.bf16.mxu0 %v2123
    %2710 = vmatpush2.bf16.msra.mxu0 %v2122
    %2711 = vmatprep.subr.bf16.mxu0 %v2119
    %2712 = vmatpush2.bf16.msra.mxu0 %v2118
    %2713 = vmatprep.subr.bf16.mxu0 %v2115
    %2714 = vmatpush2.bf16.msra.mxu0 %v2114
    %2715 = vmatprep.subr.bf16.mxu0 %v2111
    %2716 = vmatpush2.bf16.msra.mxu0 %v2110
    %2717 = vmatprep.subr.bf16.mxu0 %v2107
    %2718 = vmatpush2.bf16.msra.mxu0 %v2106
    %2719 = vmatprep.subr.bf16.mxu0 %v2103
    %2720 = vmatpush2.bf16.msra.mxu0 %v2102
    %2721 = vmatprep.subr.bf16.mxu0 %v2099
    %2722 = vmatpush2.bf16.msra.mxu0 %v2098
    %2723 = vmatprep.mubr.bf16.mxu0 %v2649
    %2724 = vmatmul.mubr.bf16.gmra.mxu0 %v2542
    %v2725 = vpop.f32.mrf.mxu0
    %v2726 = vadd.f32 %v1863, %v2725
    %v2727 = vpop.f32.mrf.mxu0
    %v2728 = vadd.f32 %v1867, %v2727
    %v2729 = vpop.f32.mrf.mxu0
    %v2730 = vpop.f32.mrf.mxu0
    %2731 = vdwg.mxu0
    %v2732 = vxor.u32 %v2685, 2147483648
    %v2733 = vmul.f32 %v2732, 1.442695
    %v2734 = vpow.pop %v2733
    %v2735 = vadd.f32 %v2734, 1.0
    %v2736 = vrcp.pop %v2735
    %v2737 = vmul.f32 1.0, %v2736
    %v2738 = vxor.u32 %v2687, 2147483648
    %v2739 = vmul.f32 %v2738, 1.442695
    %v2740 = vpow.pop %v2739
    %v2741 = vadd.f32 %v2740, 1.0
    %v2742 = vrcp.pop %v2741
    %v2743 = vmul.f32 1.0, %v2742
    %v2744 = vtanh.pop %v2726
    %v2745 = vxor.u32 %v2728, 2147483648
    %v2746 = vmul.f32 %v2745, 1.442695
    %v2747 = vpow.pop %v2746
    %v2748 = vadd.f32 %v2747, 1.0
    %v2749 = vrcp.pop %v2748
    %v2750 = vmul.f32 1.0, %v2749
    %v2751 = vmul.f32 %v2743, %v2295
    %v2752 = vmul.f32 %v2737, %v2744
    %v2753 = vadd.f32 %v2751, %v2752
    %v2754 = vtanh.pop %v2753
    %v2755 = vmul.f32 %v2750, %v2754
    %v2758 = vunpack.c.l.s4 1966171168
    %v2759 = vunpack.c.0.s8 %v2758
    %v2760 = vlaneseq
    %v2761 = vshrl.u32 %v2760, 7
    %v2762 = vsub.s32 %v2759, %v2761
    %v2763 = vrot.slane %v2755, %v2762
    %v2764 = vcombine.high %v2763, %v2763
    %v2766 = vunpack.c.l.s4 1966171168
    %v2767 = vunpack.c.0.s8 %v2766
    %v2768 = vlaneseq
    %v2769 = vshrl.u32 %v2768, 7
    %v2770 = vsub.s32 %v2767, %v2769
    %v2771 = vrot.slane %v2763, %v2770
    %v2773 = vunpack.c.l.s4 1966171168
    %v2774 = vunpack.c.0.s8 %v2773
    %v2775 = vlaneseq
    %v2776 = vshrl.u32 %v2775, 7
    %v2777 = vsub.s32 %v2774, %v2776
    %v2778 = vrot.slane %v2764, %v2777
    %2781 = vst [vmem:[#allocation11 + $0x1] sm:$0x1] %v2771
    %2782 = vst [vmem:[#allocation11 + $0x9] sm:$0x1] %v2778
    %s2783 = scalar_lea.vmem [#allocation2], 4
    %v2784 = vld [vmem:[%s2783] ss:$8 sm:$0xf]
    %s2785 = scalar_lea.vmem [#allocation2], 36
    %v2786 = vld [vmem:[%s2785] ss:$8 sm:$0xf]
    %v2787 = vpack.c.bf16 %v2521, %v2521
    %v2788 = vpack.c.bf16 %v2522, %v2522
    %v2791 = vunpack.c.l.b16 %v2787
    %v2792 = vunpack.c.l.b16 %v2788
    %v2793 = vrot.slane %v2792, 7
    %v2794 = vsel %vm871, %v2793, %v2791
    %v2795 = vpack.c.b16 %v2794, %v2794
    %2797 = vmatprep.subr.bf16.mxu0 %v616
    %2798 = vmatpush1.bf16.msra.mxu0 %v615
    %2799 = vmatprep.subr.bf16.mxu0 %v612
    %2800 = vmatpush1.bf16.msra.mxu0 %v611
    %2801 = vmatprep.subr.bf16.mxu0 %v608
    %2802 = vmatpush1.bf16.msra.mxu0 %v607
    %2803 = vmatprep.subr.bf16.mxu0 %v604
    %2804 = vmatpush1.bf16.msra.mxu0 %v603
    %2805 = vmatprep.subr.bf16.mxu0 %v600
    %2806 = vmatpush1.bf16.msra.mxu0 %v599
    %2807 = vmatprep.subr.bf16.mxu0 %v596
    %2808 = vmatpush1.bf16.msra.mxu0 %v595
    %2809 = vmatprep.subr.bf16.mxu0 %v592
    %2810 = vmatpush1.bf16.msra.mxu0 %v591
    %2811 = vmatprep.subr.bf16.mxu0 %v588
    %2812 = vmatpush1.bf16.msra.mxu0 %v587
    %2813 = vmatprep.subr.bf16.mxu0 0
    %2814 = vmatpush2.bf16.msra.mxu0 0
    %2815 = vmatprep.subr.bf16.mxu0 0
    %2816 = vmatpush2.bf16.msra.mxu0 0
    %2817 = vmatprep.subr.bf16.mxu0 0
    %2818 = vmatpush2.bf16.msra.mxu0 0
    %2819 = vmatprep.subr.bf16.mxu0 0
    %2820 = vmatpush2.bf16.msra.mxu0 0
    %2821 = vmatprep.subr.bf16.mxu0 0
    %2822 = vmatpush2.bf16.msra.mxu0 0
    %2823 = vmatprep.subr.bf16.mxu0 0
    %2824 = vmatpush2.bf16.msra.mxu0 0
    %2825 = vmatprep.subr.bf16.mxu0 0
    %2826 = vmatpush2.bf16.msra.mxu0 0
    %2827 = vmatprep.subr.bf16.mxu0 0
    %2828 = vmatpush2.bf16.msra.mxu0 0
    %2829 = vmatprep.mubr.bf16.mxu0 0
    %2830 = vmatmul.mubr.bf16.gmra.mxu0 %v2795
    %v2831 = vpop.f32.mrf.mxu0
    %v2832 = vadd.f32 0.0, %v2831
    %v2833 = vpop.f32.mrf.mxu0
    %v2834 = vadd.f32 0.0, %v2833
    %v2835 = vpop.f32.mrf.mxu0
    %v2836 = vpop.f32.mrf.mxu0
    %2837 = vdwg.mxu0
    %2838 = vmatprep.subr.bf16.mxu0 %v618
    %2839 = vmatpush1.bf16.msra.mxu0 %v617
    %2840 = vmatprep.subr.bf16.mxu0 %v614
    %2841 = vmatpush1.bf16.msra.mxu0 %v613
    %2842 = vmatprep.subr.bf16.mxu0 %v610
    %2843 = vmatpush1.bf16.msra.mxu0 %v609
    %2844 = vmatprep.subr.bf16.mxu0 %v606
    %2845 = vmatpush1.bf16.msra.mxu0 %v605
    %2846 = vmatprep.subr.bf16.mxu0 %v602
    %2847 = vmatpush1.bf16.msra.mxu0 %v601
    %2848 = vmatprep.subr.bf16.mxu0 %v598
    %2849 = vmatpush1.bf16.msra.mxu0 %v597
    %2850 = vmatprep.subr.bf16.mxu0 %v594
    %2851 = vmatpush1.bf16.msra.mxu0 %v593
    %2852 = vmatprep.subr.bf16.mxu0 %v590
    %2853 = vmatpush1.bf16.msra.mxu0 %v589
    %2854 = vmatprep.subr.bf16.mxu0 0
    %2855 = vmatpush2.bf16.msra.mxu0 0
    %2856 = vmatprep.subr.bf16.mxu0 0
    %2857 = vmatpush2.bf16.msra.mxu0 0
    %2858 = vmatprep.subr.bf16.mxu0 0
    %2859 = vmatpush2.bf16.msra.mxu0 0
    %2860 = vmatprep.subr.bf16.mxu0 0
    %2861 = vmatpush2.bf16.msra.mxu0 0
    %2862 = vmatprep.subr.bf16.mxu0 0
    %2863 = vmatpush2.bf16.msra.mxu0 0
    %2864 = vmatprep.subr.bf16.mxu0 0
    %2865 = vmatpush2.bf16.msra.mxu0 0
    %2866 = vmatprep.subr.bf16.mxu0 0
    %2867 = vmatpush2.bf16.msra.mxu0 0
    %2868 = vmatprep.subr.bf16.mxu0 0
    %2869 = vmatpush2.bf16.msra.mxu0 0
    %2870 = vmatprep.mubr.bf16.mxu0 0
    %2871 = vmatmul.mubr.bf16.gmra.mxu0 %v2795
    %v2872 = vpop.f32.mrf.mxu0
    %v2873 = vadd.f32 0.0, %v2872
    %v2874 = vpop.f32.mrf.mxu0
    %v2875 = vadd.f32 0.0, %v2874
    %v2876 = vpop.f32.mrf.mxu0
    %v2877 = vpop.f32.mrf.mxu0
    %2878 = vdwg.mxu0
    %v2883 = vcombine.low %v2832, %v2834
    %v2884 = vcombine.low %v2873, %v2875
    %v2886 = vunpack.c.l.s4 1966171168
    %v2887 = vunpack.c.0.s8 %v2886
    %v2888 = vlaneseq
    %v2889 = vshrl.u32 %v2888, 7
    %v2890 = vsub.s32 %v2887, %v2889
    %v2891 = vrot.slane %v2883, %v2890
    %v2893 = vunpack.c.l.s4 1966171168
    %v2894 = vunpack.c.0.s8 %v2893
    %v2895 = vlaneseq
    %v2896 = vshrl.u32 %v2895, 7
    %v2897 = vsub.s32 %v2894, %v2896
    %v2898 = vrot.slane %v2884, %v2897
    %v2899 = vcombine.low %v2891, %v2898
    %v2900 = vcombine.high %v2891, %v2898
    %v2902 = vunpack.c.l.s4 1966171168
    %v2903 = vunpack.c.0.s8 %v2902
    %v2904 = vlaneseq
    %v2905 = vshrl.u32 %v2904, 7
    %v2906 = vsub.s32 %v2903, %v2905
    %v2907 = vrot.slane %v2899, %v2906
    %v2909 = vunpack.c.l.s4 1966171168
    %v2910 = vunpack.c.0.s8 %v2909
    %v2911 = vlaneseq
    %v2912 = vshrl.u32 %v2911, 7
    %v2913 = vsub.s32 %v2910, %v2912
    %v2914 = vrot.slane %v2900, %v2913
    %v2917 = vadd.f32 %v2784, %v2907
    %v2918 = vadd.f32 %v2786, %v2914
    %v2919 = vxor.u32 %v2917, 2147483648
    %v2920 = vxor.u32 %v2918, 2147483648
    %v2921 = vmul.f32 %v2919, 1.442695
    %v2922 = vpow.pop %v2921
    %v2923 = vmul.f32 %v2920, 1.442695
    %v2924 = vpow.pop %v2923
    %v2925 = vadd.f32 %v2922, 1.0
    %v2926 = vadd.f32 %v2924, 1.0
    %v2927 = vrcp.pop %v2925
    %v2928 = vmul.f32 1.0, %v2927
    %v2929 = vrcp.pop %v2926
    %v2930 = vmul.f32 1.0, %v2929
    %v2933 = vrot.slane %v2917, 1
    %v2934 = vrot.slane %v2918, 1
    %v2937 = vxor.u32 %v2933, 2147483648
    %v2938 = vxor.u32 %v2934, 2147483648
    %v2939 = vmul.f32 %v2937, 1.442695
    %v2940 = vpow.pop %v2939
    %v2941 = vmul.f32 %v2938, 1.442695
    %v2942 = vpow.pop %v2941
    %v2943 = vadd.f32 %v2940, 1.0
    %v2944 = vadd.f32 %v2942, 1.0
    %v2945 = vrcp.pop %v2943
    %v2946 = vmul.f32 1.0, %v2945
    %v2947 = vrcp.pop %v2944
    %v2948 = vmul.f32 1.0, %v2947
    %v2949 = vrot.slane %v2917, 2
    %v2950 = vrot.slane %v2918, 2
    %v2953 = vtanh.pop %v2949
    %v2954 = vtanh.pop %v2950
    %v2955 = vrot.slane %v2917, 3
    %v2956 = vrot.slane %v2918, 3
    %v2959 = vxor.u32 %v2955, 2147483648
    %v2960 = vxor.u32 %v2956, 2147483648
    %v2961 = vmul.f32 %v2959, 1.442695
    %v2962 = vpow.pop %v2961
    %v2963 = vmul.f32 %v2960, 1.442695
    %v2964 = vpow.pop %v2963
    %v2965 = vadd.f32 %v2962, 1.0
    %v2966 = vadd.f32 %v2964, 1.0
    %v2967 = vrcp.pop %v2965
    %v2968 = vmul.f32 1.0, %v2967
    %v2969 = vrcp.pop %v2966
    %v2970 = vmul.f32 1.0, %v2969
    %v2971 = vmul.f32 %v2946, %v2517
    %v2972 = vmul.f32 %v2948, %v2518
    %v2973 = vmul.f32 %v2928, %v2953
    %v2974 = vmul.f32 %v2930, %v2954
    %v2975 = vadd.f32 %v2971, %v2973
    %v2976 = vadd.f32 %v2972, %v2974
    %v2977 = vtanh.pop %v2975
    %v2978 = vtanh.pop %v2976
    %v2979 = vmul.f32 %v2968, %v2977
    %v2980 = vmul.f32 %v2970, %v2978
    %v2983 = vcombine.low %v2521, %v2522
    %v2985 = vunpack.c.l.s4 1966171168
    %v2986 = vunpack.c.0.s8 %v2985
    %v2987 = vlaneseq
    %v2988 = vshrl.u32 %v2987, 7
    %v2989 = vsub.s32 %v2986, %v2988
    %v2990 = vrot.slane %v2983, %v2989
    %v2992 = vunpack.c.l.s4 1966171168
    %v2993 = vunpack.c.0.s8 %v2992
    %v2994 = vlaneseq
    %v2995 = vshrl.u32 %v2994, 7
    %v2996 = vsub.s32 %v2993, %v2995
    %v2997 = vrot.slane %v2990, %v2996
    %v2999 = vpack.c.bf16 %v2997, %v2997
    %v3000 = vpack.c.bf16 %v2648, %v2648
    %3001 = vmatprep.subr.bf16.mxu0 %v1321
    %3002 = vmatpush1.bf16.msra.mxu0 %v1320
    %3003 = vmatprep.subr.bf16.mxu0 %v1317
    %3004 = vmatpush1.bf16.msra.mxu0 %v1316
    %3005 = vmatprep.subr.bf16.mxu0 %v1313
    %3006 = vmatpush1.bf16.msra.mxu0 %v1312
    %3007 = vmatprep.subr.bf16.mxu0 %v1309
    %3008 = vmatpush1.bf16.msra.mxu0 %v1308
    %3009 = vmatprep.subr.bf16.mxu0 %v1305
    %3010 = vmatpush1.bf16.msra.mxu0 %v1304
    %3011 = vmatprep.subr.bf16.mxu0 %v1301
    %3012 = vmatpush1.bf16.msra.mxu0 %v1300
    %3013 = vmatprep.subr.bf16.mxu0 %v1297
    %3014 = vmatpush1.bf16.msra.mxu0 %v1296
    %3015 = vmatprep.subr.bf16.mxu0 %v1293
    %3016 = vmatpush1.bf16.msra.mxu0 %v1292
    %3017 = vmatprep.subr.bf16.mxu0 %v1353
    %3018 = vmatpush2.bf16.msra.mxu0 %v1352
    %3019 = vmatprep.subr.bf16.mxu0 %v1349
    %3020 = vmatpush2.bf16.msra.mxu0 %v1348
    %3021 = vmatprep.subr.bf16.mxu0 %v1345
    %3022 = vmatpush2.bf16.msra.mxu0 %v1344
    %3023 = vmatprep.subr.bf16.mxu0 %v1341
    %3024 = vmatpush2.bf16.msra.mxu0 %v1340
    %3025 = vmatprep.subr.bf16.mxu0 %v1337
    %3026 = vmatpush2.bf16.msra.mxu0 %v1336
    %3027 = vmatprep.subr.bf16.mxu0 %v1333
    %3028 = vmatpush2.bf16.msra.mxu0 %v1332
    %3029 = vmatprep.subr.bf16.mxu0 %v1329
    %3030 = vmatpush2.bf16.msra.mxu0 %v1328
    %3031 = vmatprep.subr.bf16.mxu0 %v1325
    %3032 = vmatpush2.bf16.msra.mxu0 %v1324
    %3033 = vmatprep.mubr.bf16.mxu0 %v3000
    %3034 = vmatmul.mubr.bf16.gmra.mxu0 %v2999
    %v3035 = vpop.f32.mrf.mxu0
    %v3036 = vadd.f32 %v1083, %v3035
    %v3037 = vpop.f32.mrf.mxu0
    %v3038 = vadd.f32 %v1087, %v3037
    %v3039 = vpop.f32.mrf.mxu0
    %v3040 = vpop.f32.mrf.mxu0
    %3041 = vdwg.mxu0
    %3042 = vmatprep.subr.bf16.mxu0 %v1323
    %3043 = vmatpush1.bf16.msra.mxu0 %v1322
    %3044 = vmatprep.subr.bf16.mxu0 %v1319
    %3045 = vmatpush1.bf16.msra.mxu0 %v1318
    %3046 = vmatprep.subr.bf16.mxu0 %v1315
    %3047 = vmatpush1.bf16.msra.mxu0 %v1314
    %3048 = vmatprep.subr.bf16.mxu0 %v1311
    %3049 = vmatpush1.bf16.msra.mxu0 %v1310
    %3050 = vmatprep.subr.bf16.mxu0 %v1307
    %3051 = vmatpush1.bf16.msra.mxu0 %v1306
    %3052 = vmatprep.subr.bf16.mxu0 %v1303
    %3053 = vmatpush1.bf16.msra.mxu0 %v1302
    %3054 = vmatprep.subr.bf16.mxu0 %v1299
    %3055 = vmatpush1.bf16.msra.mxu0 %v1298
    %3056 = vmatprep.subr.bf16.mxu0 %v1295
    %3057 = vmatpush1.bf16.msra.mxu0 %v1294
    %3058 = vmatprep.subr.bf16.mxu0 %v1355
    %3059 = vmatpush2.bf16.msra.mxu0 %v1354
    %3060 = vmatprep.subr.bf16.mxu0 %v1351
    %3061 = vmatpush2.bf16.msra.mxu0 %v1350
    %3062 = vmatprep.subr.bf16.mxu0 %v1347
    %3063 = vmatpush2.bf16.msra.mxu0 %v1346
    %3064 = vmatprep.subr.bf16.mxu0 %v1343
    %3065 = vmatpush2.bf16.msra.mxu0 %v1342
    %3066 = vmatprep.subr.bf16.mxu0 %v1339
    %3067 = vmatpush2.bf16.msra.mxu0 %v1338
    %3068 = vmatprep.subr.bf16.mxu0 %v1335
    %3069 = vmatpush2.bf16.msra.mxu0 %v1334
    %3070 = vmatprep.subr.bf16.mxu0 %v1331
    %3071 = vmatpush2.bf16.msra.mxu0 %v1330
    %3072 = vmatprep.subr.bf16.mxu0 %v1327
    %3073 = vmatpush2.bf16.msra.mxu0 %v1326
    %3074 = vmatprep.mubr.bf16.mxu0 %v3000
    %3075 = vmatmul.mubr.bf16.gmra.mxu0 %v2999
    %v3076 = vpop.f32.mrf.mxu0
    %v3077 = vadd.f32 %v1091, %v3076
    %v3078 = vpop.f32.mrf.mxu0
    %v3079 = vadd.f32 %v1095, %v3078
    %v3080 = vpop.f32.mrf.mxu0
    %v3081 = vpop.f32.mrf.mxu0
    %3082 = vdwg.mxu0
    %v3083 = vxor.u32 %v3036, 2147483648
    %v3084 = vmul.f32 %v3083, 1.442695
    %v3085 = vpow.pop %v3084
    %v3086 = vadd.f32 %v3085, 1.0
    %v3087 = vrcp.pop %v3086
    %v3088 = vmul.f32 1.0, %v3087
    %v3089 = vxor.u32 %v3038, 2147483648
    %v3090 = vmul.f32 %v3089, 1.442695
    %v3091 = vpow.pop %v3090
    %v3092 = vadd.f32 %v3091, 1.0
    %v3093 = vrcp.pop %v3092
    %v3094 = vmul.f32 1.0, %v3093
    %v3095 = vtanh.pop %v3077
    %v3096 = vxor.u32 %v3079, 2147483648
    %v3097 = vmul.f32 %v3096, 1.442695
    %v3098 = vpow.pop %v3097
    %v3099 = vadd.f32 %v3098, 1.0
    %v3100 = vrcp.pop %v3099
    %v3101 = vmul.f32 1.0, %v3100
    %v3102 = vmul.f32 %v3094, %v2646
    %v3103 = vmul.f32 %v3088, %v3095
    %v3104 = vadd.f32 %v3102, %v3103
    %v3105 = vtanh.pop %v3104
    %v3106 = vmul.f32 %v3101, %v3105
    %v3107 = vpack.c.bf16 %v2755, %v2755
    %3108 = vmatprep.subr.bf16.mxu0 %v2093
    %3109 = vmatpush1.bf16.msra.mxu0 %v2092
    %3110 = vmatprep.subr.bf16.mxu0 %v2089
    %3111 = vmatpush1.bf16.msra.mxu0 %v2088
    %3112 = vmatprep.subr.bf16.mxu0 %v2085
    %3113 = vmatpush1.bf16.msra.mxu0 %v2084
    %3114 = vmatprep.subr.bf16.mxu0 %v2081
    %3115 = vmatpush1.bf16.msra.mxu0 %v2080
    %3116 = vmatprep.subr.bf16.mxu0 %v2077
    %3117 = vmatpush1.bf16.msra.mxu0 %v2076
    %3118 = vmatprep.subr.bf16.mxu0 %v2073
    %3119 = vmatpush1.bf16.msra.mxu0 %v2072
    %3120 = vmatprep.subr.bf16.mxu0 %v2069
    %3121 = vmatpush1.bf16.msra.mxu0 %v2068
    %3122 = vmatprep.subr.bf16.mxu0 %v2065
    %3123 = vmatpush1.bf16.msra.mxu0 %v2064
    %3124 = vmatprep.subr.bf16.mxu0 %v2125
    %3125 = vmatpush2.bf16.msra.mxu0 %v2124
    %3126 = vmatprep.subr.bf16.mxu0 %v2121
    %3127 = vmatpush2.bf16.msra.mxu0 %v2120
    %3128 = vmatprep.subr.bf16.mxu0 %v2117
    %3129 = vmatpush2.bf16.msra.mxu0 %v2116
    %3130 = vmatprep.subr.bf16.mxu0 %v2113
    %3131 = vmatpush2.bf16.msra.mxu0 %v2112
    %3132 = vmatprep.subr.bf16.mxu0 %v2109
    %3133 = vmatpush2.bf16.msra.mxu0 %v2108
    %3134 = vmatprep.subr.bf16.mxu0 %v2105
    %3135 = vmatpush2.bf16.msra.mxu0 %v2104
    %3136 = vmatprep.subr.bf16.mxu0 %v2101
    %3137 = vmatpush2.bf16.msra.mxu0 %v2100
    %3138 = vmatprep.subr.bf16.mxu0 %v2097
    %3139 = vmatpush2.bf16.msra.mxu0 %v2096
    %3140 = vmatprep.mubr.bf16.mxu0 %v3107
    %3141 = vmatmul.mubr.bf16.gmra.mxu0 %v3000
    %v3142 = vpop.f32.mrf.mxu0
    %v3143 = vadd.f32 %v1855, %v3142
    %v3144 = vpop.f32.mrf.mxu0
    %v3145 = vadd.f32 %v1859, %v3144
    %v3146 = vpop.f32.mrf.mxu0
    %v3147 = vpop.f32.mrf.mxu0
    %3148 = vdwg.mxu0
    %3149 = vmatprep.subr.bf16.mxu0 %v2095
    %3150 = vmatpush1.bf16.msra.mxu0 %v2094
    %3151 = vmatprep.subr.bf16.mxu0 %v2091
    %3152 = vmatpush1.bf16.msra.mxu0 %v2090
    %3153 = vmatprep.subr.bf16.mxu0 %v2087
    %3154 = vmatpush1.bf16.msra.mxu0 %v2086
    %3155 = vmatprep.subr.bf16.mxu0 %v2083
    %3156 = vmatpush1.bf16.msra.mxu0 %v2082
    %3157 = vmatprep.subr.bf16.mxu0 %v2079
    %3158 = vmatpush1.bf16.msra.mxu0 %v2078
    %3159 = vmatprep.subr.bf16.mxu0 %v2075
    %3160 = vmatpush1.bf16.msra.mxu0 %v2074
    %3161 = vmatprep.subr.bf16.mxu0 %v2071
    %3162 = vmatpush1.bf16.msra.mxu0 %v2070
    %3163 = vmatprep.subr.bf16.mxu0 %v2067
    %3164 = vmatpush1.bf16.msra.mxu0 %v2066
    %3165 = vmatprep.subr.bf16.mxu0 %v2127
    %3166 = vmatpush2.bf16.msra.mxu0 %v2126
    %3167 = vmatprep.subr.bf16.mxu0 %v2123
    %3168 = vmatpush2.bf16.msra.mxu0 %v2122
    %3169 = vmatprep.subr.bf16.mxu0 %v2119
    %3170 = vmatpush2.bf16.msra.mxu0 %v2118
    %3171 = vmatprep.subr.bf16.mxu0 %v2115
    %3172 = vmatpush2.bf16.msra.mxu0 %v2114
    %3173 = vmatprep.subr.bf16.mxu0 %v2111
    %3174 = vmatpush2.bf16.msra.mxu0 %v2110
    %3175 = vmatprep.subr.bf16.mxu0 %v2107
    %3176 = vmatpush2.bf16.msra.mxu0 %v2106
    %3177 = vmatprep.subr.bf16.mxu0 %v2103
    %3178 = vmatpush2.bf16.msra.mxu0 %v2102
    %3179 = vmatprep.subr.bf16.mxu0 %v2099
    %3180 = vmatpush2.bf16.msra.mxu0 %v2098
    %3181 = vmatprep.mubr.bf16.mxu0 %v3107
    %3182 = vmatmul.mubr.bf16.gmra.mxu0 %v3000
    %v3183 = vpop.f32.mrf.mxu0
    %v3184 = vadd.f32 %v1863, %v3183
    %v3185 = vpop.f32.mrf.mxu0
    %v3186 = vadd.f32 %v1867, %v3185
    %v3187 = vpop.f32.mrf.mxu0
    %v3188 = vpop.f32.mrf.mxu0
    %3189 = vdwg.mxu0
    %v3190 = vxor.u32 %v3143, 2147483648
    %v3191 = vmul.f32 %v3190, 1.442695
    %v3192 = vpow.pop %v3191
    %v3193 = vadd.f32 %v3192, 1.0
    %v3194 = vrcp.pop %v3193
    %v3195 = vmul.f32 1.0, %v3194
    %v3196 = vxor.u32 %v3145, 2147483648
    %v3197 = vmul.f32 %v3196, 1.442695
    %v3198 = vpow.pop %v3197
    %v3199 = vadd.f32 %v3198, 1.0
    %v3200 = vrcp.pop %v3199
    %v3201 = vmul.f32 1.0, %v3200
    %v3202 = vtanh.pop %v3184
    %v3203 = vxor.u32 %v3186, 2147483648
    %v3204 = vmul.f32 %v3203, 1.442695
    %v3205 = vpow.pop %v3204
    %v3206 = vadd.f32 %v3205, 1.0
    %v3207 = vrcp.pop %v3206
    %v3208 = vmul.f32 1.0, %v3207
    %v3209 = vmul.f32 %v3201, %v2753
    %v3210 = vmul.f32 %v3195, %v3202
    %v3211 = vadd.f32 %v3209, %v3210
    %v3212 = vtanh.pop %v3211
    %v3213 = vmul.f32 %v3208, %v3212
    %v3216 = vunpack.c.l.s4 1966171168
    %v3217 = vunpack.c.0.s8 %v3216
    %v3218 = vlaneseq
    %v3219 = vshrl.u32 %v3218, 7
    %v3220 = vsub.s32 %v3217, %v3219
    %v3221 = vrot.slane %v3213, %v3220
    %v3222 = vcombine.high %v3221, %v3221
    %v3224 = vunpack.c.l.s4 1966171168
    %v3225 = vunpack.c.0.s8 %v3224
    %v3226 = vlaneseq
    %v3227 = vshrl.u32 %v3226, 7
    %v3228 = vsub.s32 %v3225, %v3227
    %v3229 = vrot.slane %v3221, %v3228
    %v3231 = vunpack.c.l.s4 1966171168
    %v3232 = vunpack.c.0.s8 %v3231
    %v3233 = vlaneseq
    %v3234 = vshrl.u32 %v3233, 7
    %v3235 = vsub.s32 %v3232, %v3234
    %v3236 = vrot.slane %v3222, %v3235
    %3239 = vst [vmem:[#allocation11 + $0x2] sm:$0x1] %v3229
    %3240 = vst [vmem:[#allocation11 + $0xa] sm:$0x1] %v3236
    %s3241 = scalar_lea.vmem [#allocation2], 5
    %v3242 = vld [vmem:[%s3241] ss:$8 sm:$0xf]
    %s3243 = scalar_lea.vmem [#allocation2], 37
    %v3244 = vld [vmem:[%s3243] ss:$8 sm:$0xf]
    %v3245 = vpack.c.bf16 %v2979, %v2979
    %v3246 = vpack.c.bf16 %v2980, %v2980
    %v3249 = vunpack.c.l.b16 %v3245
    %v3250 = vunpack.c.l.b16 %v3246
    %v3251 = vrot.slane %v3250, 7
    %v3252 = vsel %vm871, %v3251, %v3249
    %v3253 = vpack.c.b16 %v3252, %v3252
    %3255 = vmatprep.subr.bf16.mxu0 %v616
    %3256 = vmatpush1.bf16.msra.mxu0 %v615
    %3257 = vmatprep.subr.bf16.mxu0 %v612
    %3258 = vmatpush1.bf16.msra.mxu0 %v611
    %3259 = vmatprep.subr.bf16.mxu0 %v608
    %3260 = vmatpush1.bf16.msra.mxu0 %v607
    %3261 = vmatprep.subr.bf16.mxu0 %v604
    %3262 = vmatpush1.bf16.msra.mxu0 %v603
    %3263 = vmatprep.subr.bf16.mxu0 %v600
    %3264 = vmatpush1.bf16.msra.mxu0 %v599
    %3265 = vmatprep.subr.bf16.mxu0 %v596
    %3266 = vmatpush1.bf16.msra.mxu0 %v595
    %3267 = vmatprep.subr.bf16.mxu0 %v592
    %3268 = vmatpush1.bf16.msra.mxu0 %v591
    %3269 = vmatprep.subr.bf16.mxu0 %v588
    %3270 = vmatpush1.bf16.msra.mxu0 %v587
    %3271 = vmatprep.subr.bf16.mxu0 0
    %3272 = vmatpush2.bf16.msra.mxu0 0
    %3273 = vmatprep.subr.bf16.mxu0 0
    %3274 = vmatpush2.bf16.msra.mxu0 0
    %3275 = vmatprep.subr.bf16.mxu0 0
    %3276 = vmatpush2.bf16.msra.mxu0 0
    %3277 = vmatprep.subr.bf16.mxu0 0
    %3278 = vmatpush2.bf16.msra.mxu0 0
    %3279 = vmatprep.subr.bf16.mxu0 0
    %3280 = vmatpush2.bf16.msra.mxu0 0
    %3281 = vmatprep.subr.bf16.mxu0 0
    %3282 = vmatpush2.bf16.msra.mxu0 0
    %3283 = vmatprep.subr.bf16.mxu0 0
    %3284 = vmatpush2.bf16.msra.mxu0 0
    %3285 = vmatprep.subr.bf16.mxu0 0
    %3286 = vmatpush2.bf16.msra.mxu0 0
    %3287 = vmatprep.mubr.bf16.mxu0 0
    %3288 = vmatmul.mubr.bf16.gmra.mxu0 %v3253
    %v3289 = vpop.f32.mrf.mxu0
    %v3290 = vadd.f32 0.0, %v3289
    %v3291 = vpop.f32.mrf.mxu0
    %v3292 = vadd.f32 0.0, %v3291
    %v3293 = vpop.f32.mrf.mxu0
    %v3294 = vpop.f32.mrf.mxu0
    %3295 = vdwg.mxu0
    %3296 = vmatprep.subr.bf16.mxu0 %v618
    %3297 = vmatpush1.bf16.msra.mxu0 %v617
    %3298 = vmatprep.subr.bf16.mxu0 %v614
    %3299 = vmatpush1.bf16.msra.mxu0 %v613
    %3300 = vmatprep.subr.bf16.mxu0 %v610
    %3301 = vmatpush1.bf16.msra.mxu0 %v609
    %3302 = vmatprep.subr.bf16.mxu0 %v606
    %3303 = vmatpush1.bf16.msra.mxu0 %v605
    %3304 = vmatprep.subr.bf16.mxu0 %v602
    %3305 = vmatpush1.bf16.msra.mxu0 %v601
    %3306 = vmatprep.subr.bf16.mxu0 %v598
    %3307 = vmatpush1.bf16.msra.mxu0 %v597
    %3308 = vmatprep.subr.bf16.mxu0 %v594
    %3309 = vmatpush1.bf16.msra.mxu0 %v593
    %3310 = vmatprep.subr.bf16.mxu0 %v590
    %3311 = vmatpush1.bf16.msra.mxu0 %v589
    %3312 = vmatprep.subr.bf16.mxu0 0
    %3313 = vmatpush2.bf16.msra.mxu0 0
    %3314 = vmatprep.subr.bf16.mxu0 0
    %3315 = vmatpush2.bf16.msra.mxu0 0
    %3316 = vmatprep.subr.bf16.mxu0 0
    %3317 = vmatpush2.bf16.msra.mxu0 0
    %3318 = vmatprep.subr.bf16.mxu0 0
    %3319 = vmatpush2.bf16.msra.mxu0 0
    %3320 = vmatprep.subr.bf16.mxu0 0
    %3321 = vmatpush2.bf16.msra.mxu0 0
    %3322 = vmatprep.subr.bf16.mxu0 0
    %3323 = vmatpush2.bf16.msra.mxu0 0
    %3324 = vmatprep.subr.bf16.mxu0 0
    %3325 = vmatpush2.bf16.msra.mxu0 0
    %3326 = vmatprep.subr.bf16.mxu0 0
    %3327 = vmatpush2.bf16.msra.mxu0 0
    %3328 = vmatprep.mubr.bf16.mxu0 0
    %3329 = vmatmul.mubr.bf16.gmra.mxu0 %v3253
    %v3330 = vpop.f32.mrf.mxu0
    %v3331 = vadd.f32 0.0, %v3330
    %v3332 = vpop.f32.mrf.mxu0
    %v3333 = vadd.f32 0.0, %v3332
    %v3334 = vpop.f32.mrf.mxu0
    %v3335 = vpop.f32.mrf.mxu0
    %3336 = vdwg.mxu0
    %v3341 = vcombine.low %v3290, %v3292
    %v3342 = vcombine.low %v3331, %v3333
    %v3344 = vunpack.c.l.s4 1966171168
    %v3345 = vunpack.c.0.s8 %v3344
    %v3346 = vlaneseq
    %v3347 = vshrl.u32 %v3346, 7
    %v3348 = vsub.s32 %v3345, %v3347
    %v3349 = vrot.slane %v3341, %v3348
    %v3351 = vunpack.c.l.s4 1966171168
    %v3352 = vunpack.c.0.s8 %v3351
    %v3353 = vlaneseq
    %v3354 = vshrl.u32 %v3353, 7
    %v3355 = vsub.s32 %v3352, %v3354
    %v3356 = vrot.slane %v3342, %v3355
    %v3357 = vcombine.low %v3349, %v3356
    %v3358 = vcombine.high %v3349, %v3356
    %v3360 = vunpack.c.l.s4 1966171168
    %v3361 = vunpack.c.0.s8 %v3360
    %v3362 = vlaneseq
    %v3363 = vshrl.u32 %v3362, 7
    %v3364 = vsub.s32 %v3361, %v3363
    %v3365 = vrot.slane %v3357, %v3364
    %v3367 = vunpack.c.l.s4 1966171168
    %v3368 = vunpack.c.0.s8 %v3367
    %v3369 = vlaneseq
    %v3370 = vshrl.u32 %v3369, 7
    %v3371 = vsub.s32 %v3368, %v3370
    %v3372 = vrot.slane %v3358, %v3371
    %v3375 = vadd.f32 %v3242, %v3365
    %v3376 = vadd.f32 %v3244, %v3372
    %v3377 = vxor.u32 %v3375, 2147483648
    %v3378 = vxor.u32 %v3376, 2147483648
    %v3379 = vmul.f32 %v3377, 1.442695
    %v3380 = vpow.pop %v3379
    %v3381 = vmul.f32 %v3378, 1.442695
    %v3382 = vpow.pop %v3381
    %v3383 = vadd.f32 %v3380, 1.0
    %v3384 = vadd.f32 %v3382, 1.0
    %v3385 = vrcp.pop %v3383
    %v3386 = vmul.f32 1.0, %v3385
    %v3387 = vrcp.pop %v3384
    %v3388 = vmul.f32 1.0, %v3387
    %v3391 = vrot.slane %v3375, 1
    %v3392 = vrot.slane %v3376, 1
    %v3395 = vxor.u32 %v3391, 2147483648
    %v3396 = vxor.u32 %v3392, 2147483648
    %v3397 = vmul.f32 %v3395, 1.442695
    %v3398 = vpow.pop %v3397
    %v3399 = vmul.f32 %v3396, 1.442695
    %v3400 = vpow.pop %v3399
    %v3401 = vadd.f32 %v3398, 1.0
    %v3402 = vadd.f32 %v3400, 1.0
    %v3403 = vrcp.pop %v3401
    %v3404 = vmul.f32 1.0, %v3403
    %v3405 = vrcp.pop %v3402
    %v3406 = vmul.f32 1.0, %v3405
    %v3407 = vrot.slane %v3375, 2
    %v3408 = vrot.slane %v3376, 2
    %v3411 = vtanh.pop %v3407
    %v3412 = vtanh.pop %v3408
    %v3413 = vrot.slane %v3375, 3
    %v3414 = vrot.slane %v3376, 3
    %v3417 = vxor.u32 %v3413, 2147483648
    %v3418 = vxor.u32 %v3414, 2147483648
    %v3419 = vmul.f32 %v3417, 1.442695
    %v3420 = vpow.pop %v3419
    %v3421 = vmul.f32 %v3418, 1.442695
    %v3422 = vpow.pop %v3421
    %v3423 = vadd.f32 %v3420, 1.0
    %v3424 = vadd.f32 %v3422, 1.0
    %v3425 = vrcp.pop %v3423
    %v3426 = vmul.f32 1.0, %v3425
    %v3427 = vrcp.pop %v3424
    %v3428 = vmul.f32 1.0, %v3427
    %v3429 = vmul.f32 %v3404, %v2975
    %v3430 = vmul.f32 %v3406, %v2976
    %v3431 = vmul.f32 %v3386, %v3411
    %v3432 = vmul.f32 %v3388, %v3412
    %v3433 = vadd.f32 %v3429, %v3431
    %v3434 = vadd.f32 %v3430, %v3432
    %v3435 = vtanh.pop %v3433
    %v3436 = vtanh.pop %v3434
    %v3437 = vmul.f32 %v3426, %v3435
    %v3438 = vmul.f32 %v3428, %v3436
    %v3441 = vcombine.low %v2979, %v2980
    %v3443 = vunpack.c.l.s4 1966171168
    %v3444 = vunpack.c.0.s8 %v3443
    %v3445 = vlaneseq
    %v3446 = vshrl.u32 %v3445, 7
    %v3447 = vsub.s32 %v3444, %v3446
    %v3448 = vrot.slane %v3441, %v3447
    %v3450 = vunpack.c.l.s4 1966171168
    %v3451 = vunpack.c.0.s8 %v3450
    %v3452 = vlaneseq
    %v3453 = vshrl.u32 %v3452, 7
    %v3454 = vsub.s32 %v3451, %v3453
    %v3455 = vrot.slane %v3448, %v3454
    %v3457 = vpack.c.bf16 %v3455, %v3455
    %v3458 = vpack.c.bf16 %v3106, %v3106
    %3459 = vmatprep.subr.bf16.mxu0 %v1321
    %3460 = vmatpush1.bf16.msra.mxu0 %v1320
    %3461 = vmatprep.subr.bf16.mxu0 %v1317
    %3462 = vmatpush1.bf16.msra.mxu0 %v1316
    %3463 = vmatprep.subr.bf16.mxu0 %v1313
    %3464 = vmatpush1.bf16.msra.mxu0 %v1312
    %3465 = vmatprep.subr.bf16.mxu0 %v1309
    %3466 = vmatpush1.bf16.msra.mxu0 %v1308
    %3467 = vmatprep.subr.bf16.mxu0 %v1305
    %3468 = vmatpush1.bf16.msra.mxu0 %v1304
    %3469 = vmatprep.subr.bf16.mxu0 %v1301
    %3470 = vmatpush1.bf16.msra.mxu0 %v1300
    %3471 = vmatprep.subr.bf16.mxu0 %v1297
    %3472 = vmatpush1.bf16.msra.mxu0 %v1296
    %3473 = vmatprep.subr.bf16.mxu0 %v1293
    %3474 = vmatpush1.bf16.msra.mxu0 %v1292
    %3475 = vmatprep.subr.bf16.mxu0 %v1353
    %3476 = vmatpush2.bf16.msra.mxu0 %v1352
    %3477 = vmatprep.subr.bf16.mxu0 %v1349
    %3478 = vmatpush2.bf16.msra.mxu0 %v1348
    %3479 = vmatprep.subr.bf16.mxu0 %v1345
    %3480 = vmatpush2.bf16.msra.mxu0 %v1344
    %3481 = vmatprep.subr.bf16.mxu0 %v1341
    %3482 = vmatpush2.bf16.msra.mxu0 %v1340
    %3483 = vmatprep.subr.bf16.mxu0 %v1337
    %3484 = vmatpush2.bf16.msra.mxu0 %v1336
    %3485 = vmatprep.subr.bf16.mxu0 %v1333
    %3486 = vmatpush2.bf16.msra.mxu0 %v1332
    %3487 = vmatprep.subr.bf16.mxu0 %v1329
    %3488 = vmatpush2.bf16.msra.mxu0 %v1328
    %3489 = vmatprep.subr.bf16.mxu0 %v1325
    %3490 = vmatpush2.bf16.msra.mxu0 %v1324
    %3491 = vmatprep.mubr.bf16.mxu0 %v3458
    %3492 = vmatmul.mubr.bf16.gmra.mxu0 %v3457
    %v3493 = vpop.f32.mrf.mxu0
    %v3494 = vadd.f32 %v1083, %v3493
    %v3495 = vpop.f32.mrf.mxu0
    %v3496 = vadd.f32 %v1087, %v3495
    %v3497 = vpop.f32.mrf.mxu0
    %v3498 = vpop.f32.mrf.mxu0
    %3499 = vdwg.mxu0
    %3500 = vmatprep.subr.bf16.mxu0 %v1323
    %3501 = vmatpush1.bf16.msra.mxu0 %v1322
    %3502 = vmatprep.subr.bf16.mxu0 %v1319
    %3503 = vmatpush1.bf16.msra.mxu0 %v1318
    %3504 = vmatprep.subr.bf16.mxu0 %v1315
    %3505 = vmatpush1.bf16.msra.mxu0 %v1314
    %3506 = vmatprep.subr.bf16.mxu0 %v1311
    %3507 = vmatpush1.bf16.msra.mxu0 %v1310
    %3508 = vmatprep.subr.bf16.mxu0 %v1307
    %3509 = vmatpush1.bf16.msra.mxu0 %v1306
    %3510 = vmatprep.subr.bf16.mxu0 %v1303
    %3511 = vmatpush1.bf16.msra.mxu0 %v1302
    %3512 = vmatprep.subr.bf16.mxu0 %v1299
    %3513 = vmatpush1.bf16.msra.mxu0 %v1298
    %3514 = vmatprep.subr.bf16.mxu0 %v1295
    %3515 = vmatpush1.bf16.msra.mxu0 %v1294
    %3516 = vmatprep.subr.bf16.mxu0 %v1355
    %3517 = vmatpush2.bf16.msra.mxu0 %v1354
    %3518 = vmatprep.subr.bf16.mxu0 %v1351
    %3519 = vmatpush2.bf16.msra.mxu0 %v1350
    %3520 = vmatprep.subr.bf16.mxu0 %v1347
    %3521 = vmatpush2.bf16.msra.mxu0 %v1346
    %3522 = vmatprep.subr.bf16.mxu0 %v1343
    %3523 = vmatpush2.bf16.msra.mxu0 %v1342
    %3524 = vmatprep.subr.bf16.mxu0 %v1339
    %3525 = vmatpush2.bf16.msra.mxu0 %v1338
    %3526 = vmatprep.subr.bf16.mxu0 %v1335
    %3527 = vmatpush2.bf16.msra.mxu0 %v1334
    %3528 = vmatprep.subr.bf16.mxu0 %v1331
    %3529 = vmatpush2.bf16.msra.mxu0 %v1330
    %3530 = vmatprep.subr.bf16.mxu0 %v1327
    %3531 = vmatpush2.bf16.msra.mxu0 %v1326
    %3532 = vmatprep.mubr.bf16.mxu0 %v3458
    %3533 = vmatmul.mubr.bf16.gmra.mxu0 %v3457
    %v3534 = vpop.f32.mrf.mxu0
    %v3535 = vadd.f32 %v1091, %v3534
    %v3536 = vpop.f32.mrf.mxu0
    %v3537 = vadd.f32 %v1095, %v3536
    %v3538 = vpop.f32.mrf.mxu0
    %v3539 = vpop.f32.mrf.mxu0
    %3540 = vdwg.mxu0
    %v3541 = vxor.u32 %v3494, 2147483648
    %v3542 = vmul.f32 %v3541, 1.442695
    %v3543 = vpow.pop %v3542
    %v3544 = vadd.f32 %v3543, 1.0
    %v3545 = vrcp.pop %v3544
    %v3546 = vmul.f32 1.0, %v3545
    %v3547 = vxor.u32 %v3496, 2147483648
    %v3548 = vmul.f32 %v3547, 1.442695
    %v3549 = vpow.pop %v3548
    %v3550 = vadd.f32 %v3549, 1.0
    %v3551 = vrcp.pop %v3550
    %v3552 = vmul.f32 1.0, %v3551
    %v3553 = vtanh.pop %v3535
    %v3554 = vxor.u32 %v3537, 2147483648
    %v3555 = vmul.f32 %v3554, 1.442695
    %v3556 = vpow.pop %v3555
    %v3557 = vadd.f32 %v3556, 1.0
    %v3558 = vrcp.pop %v3557
    %v3559 = vmul.f32 1.0, %v3558
    %v3560 = vmul.f32 %v3552, %v3104
    %v3561 = vmul.f32 %v3546, %v3553
    %v3562 = vadd.f32 %v3560, %v3561
    %v3563 = vtanh.pop %v3562
    %v3564 = vmul.f32 %v3559, %v3563
    %v3565 = vpack.c.bf16 %v3213, %v3213
    %3566 = vmatprep.subr.bf16.mxu0 %v2093
    %3567 = vmatpush1.bf16.msra.mxu0 %v2092
    %3568 = vmatprep.subr.bf16.mxu0 %v2089
    %3569 = vmatpush1.bf16.msra.mxu0 %v2088
    %3570 = vmatprep.subr.bf16.mxu0 %v2085
    %3571 = vmatpush1.bf16.msra.mxu0 %v2084
    %3572 = vmatprep.subr.bf16.mxu0 %v2081
    %3573 = vmatpush1.bf16.msra.mxu0 %v2080
    %3574 = vmatprep.subr.bf16.mxu0 %v2077
    %3575 = vmatpush1.bf16.msra.mxu0 %v2076
    %3576 = vmatprep.subr.bf16.mxu0 %v2073
    %3577 = vmatpush1.bf16.msra.mxu0 %v2072
    %3578 = vmatprep.subr.bf16.mxu0 %v2069
    %3579 = vmatpush1.bf16.msra.mxu0 %v2068
    %3580 = vmatprep.subr.bf16.mxu0 %v2065
    %3581 = vmatpush1.bf16.msra.mxu0 %v2064
    %3582 = vmatprep.subr.bf16.mxu0 %v2125
    %3583 = vmatpush2.bf16.msra.mxu0 %v2124
    %3584 = vmatprep.subr.bf16.mxu0 %v2121
    %3585 = vmatpush2.bf16.msra.mxu0 %v2120
    %3586 = vmatprep.subr.bf16.mxu0 %v2117
    %3587 = vmatpush2.bf16.msra.mxu0 %v2116
    %3588 = vmatprep.subr.bf16.mxu0 %v2113
    %3589 = vmatpush2.bf16.msra.mxu0 %v2112
    %3590 = vmatprep.subr.bf16.mxu0 %v2109
    %3591 = vmatpush2.bf16.msra.mxu0 %v2108
    %3592 = vmatprep.subr.bf16.mxu0 %v2105
    %3593 = vmatpush2.bf16.msra.mxu0 %v2104
    %3594 = vmatprep.subr.bf16.mxu0 %v2101
    %3595 = vmatpush2.bf16.msra.mxu0 %v2100
    %3596 = vmatprep.subr.bf16.mxu0 %v2097
    %3597 = vmatpush2.bf16.msra.mxu0 %v2096
    %3598 = vmatprep.mubr.bf16.mxu0 %v3565
    %3599 = vmatmul.mubr.bf16.gmra.mxu0 %v3458
    %v3600 = vpop.f32.mrf.mxu0
    %v3601 = vadd.f32 %v1855, %v3600
    %v3602 = vpop.f32.mrf.mxu0
    %v3603 = vadd.f32 %v1859, %v3602
    %v3604 = vpop.f32.mrf.mxu0
    %v3605 = vpop.f32.mrf.mxu0
    %3606 = vdwg.mxu0
    %3607 = vmatprep.subr.bf16.mxu0 %v2095
    %3608 = vmatpush1.bf16.msra.mxu0 %v2094
    %3609 = vmatprep.subr.bf16.mxu0 %v2091
    %3610 = vmatpush1.bf16.msra.mxu0 %v2090
    %3611 = vmatprep.subr.bf16.mxu0 %v2087
    %3612 = vmatpush1.bf16.msra.mxu0 %v2086
    %3613 = vmatprep.subr.bf16.mxu0 %v2083
    %3614 = vmatpush1.bf16.msra.mxu0 %v2082
    %3615 = vmatprep.subr.bf16.mxu0 %v2079
    %3616 = vmatpush1.bf16.msra.mxu0 %v2078
    %3617 = vmatprep.subr.bf16.mxu0 %v2075
    %3618 = vmatpush1.bf16.msra.mxu0 %v2074
    %3619 = vmatprep.subr.bf16.mxu0 %v2071
    %3620 = vmatpush1.bf16.msra.mxu0 %v2070
    %3621 = vmatprep.subr.bf16.mxu0 %v2067
    %3622 = vmatpush1.bf16.msra.mxu0 %v2066
    %3623 = vmatprep.subr.bf16.mxu0 %v2127
    %3624 = vmatpush2.bf16.msra.mxu0 %v2126
    %3625 = vmatprep.subr.bf16.mxu0 %v2123
    %3626 = vmatpush2.bf16.msra.mxu0 %v2122
    %3627 = vmatprep.subr.bf16.mxu0 %v2119
    %3628 = vmatpush2.bf16.msra.mxu0 %v2118
    %3629 = vmatprep.subr.bf16.mxu0 %v2115
    %3630 = vmatpush2.bf16.msra.mxu0 %v2114
    %3631 = vmatprep.subr.bf16.mxu0 %v2111
    %3632 = vmatpush2.bf16.msra.mxu0 %v2110
    %3633 = vmatprep.subr.bf16.mxu0 %v2107
    %3634 = vmatpush2.bf16.msra.mxu0 %v2106
    %3635 = vmatprep.subr.bf16.mxu0 %v2103
    %3636 = vmatpush2.bf16.msra.mxu0 %v2102
    %3637 = vmatprep.subr.bf16.mxu0 %v2099
    %3638 = vmatpush2.bf16.msra.mxu0 %v2098
    %3639 = vmatprep.mubr.bf16.mxu0 %v3565
    %3640 = vmatmul.mubr.bf16.gmra.mxu0 %v3458
    %v3641 = vpop.f32.mrf.mxu0
    %v3642 = vadd.f32 %v1863, %v3641
    %v3643 = vpop.f32.mrf.mxu0
    %v3644 = vadd.f32 %v1867, %v3643
    %v3645 = vpop.f32.mrf.mxu0
    %v3646 = vpop.f32.mrf.mxu0
    %3647 = vdwg.mxu0
    %v3648 = vxor.u32 %v3601, 2147483648
    %v3649 = vmul.f32 %v3648, 1.442695
    %v3650 = vpow.pop %v3649
    %v3651 = vadd.f32 %v3650, 1.0
    %v3652 = vrcp.pop %v3651
    %v3653 = vmul.f32 1.0, %v3652
    %v3654 = vxor.u32 %v3603, 2147483648
    %v3655 = vmul.f32 %v3654, 1.442695
    %v3656 = vpow.pop %v3655
    %v3657 = vadd.f32 %v3656, 1.0
    %v3658 = vrcp.pop %v3657
    %v3659 = vmul.f32 1.0, %v3658
    %v3660 = vtanh.pop %v3642
    %v3661 = vxor.u32 %v3644, 2147483648
    %v3662 = vmul.f32 %v3661, 1.442695
    %v3663 = vpow.pop %v3662
    %v3664 = vadd.f32 %v3663, 1.0
    %v3665 = vrcp.pop %v3664
    %v3666 = vmul.f32 1.0, %v3665
    %v3667 = vmul.f32 %v3659, %v3211
    %v3668 = vmul.f32 %v3653, %v3660
    %v3669 = vadd.f32 %v3667, %v3668
    %v3670 = vtanh.pop %v3669
    %v3671 = vmul.f32 %v3666, %v3670
    %v3674 = vunpack.c.l.s4 1966171168
    %v3675 = vunpack.c.0.s8 %v3674
    %v3676 = vlaneseq
    %v3677 = vshrl.u32 %v3676, 7
    %v3678 = vsub.s32 %v3675, %v3677
    %v3679 = vrot.slane %v3671, %v3678
    %v3680 = vcombine.high %v3679, %v3679
    %v3682 = vunpack.c.l.s4 1966171168
    %v3683 = vunpack.c.0.s8 %v3682
    %v3684 = vlaneseq
    %v3685 = vshrl.u32 %v3684, 7
    %v3686 = vsub.s32 %v3683, %v3685
    %v3687 = vrot.slane %v3679, %v3686
    %v3689 = vunpack.c.l.s4 1966171168
    %v3690 = vunpack.c.0.s8 %v3689
    %v3691 = vlaneseq
    %v3692 = vshrl.u32 %v3691, 7
    %v3693 = vsub.s32 %v3690, %v3692
    %v3694 = vrot.slane %v3680, %v3693
    %3697 = vst [vmem:[#allocation11 + $0x3] sm:$0x1] %v3687
    %3698 = vst [vmem:[#allocation11 + $0xb] sm:$0x1] %v3694
    %s3699 = scalar_lea.vmem [#allocation2], 6
    %v3700 = vld [vmem:[%s3699] ss:$8 sm:$0xf]
    %s3701 = scalar_lea.vmem [#allocation2], 38
    %v3702 = vld [vmem:[%s3701] ss:$8 sm:$0xf]
    %v3703 = vpack.c.bf16 %v3437, %v3437
    %v3704 = vpack.c.bf16 %v3438, %v3438
    %v3707 = vunpack.c.l.b16 %v3703
    %v3708 = vunpack.c.l.b16 %v3704
    %v3709 = vrot.slane %v3708, 7
    %v3710 = vsel %vm871, %v3709, %v3707
    %v3711 = vpack.c.b16 %v3710, %v3710
    %3713 = vmatprep.subr.bf16.mxu0 %v616
    %3714 = vmatpush1.bf16.msra.mxu0 %v615
    %3715 = vmatprep.subr.bf16.mxu0 %v612
    %3716 = vmatpush1.bf16.msra.mxu0 %v611
    %3717 = vmatprep.subr.bf16.mxu0 %v608
    %3718 = vmatpush1.bf16.msra.mxu0 %v607
    %3719 = vmatprep.subr.bf16.mxu0 %v604
    %3720 = vmatpush1.bf16.msra.mxu0 %v603
    %3721 = vmatprep.subr.bf16.mxu0 %v600
    %3722 = vmatpush1.bf16.msra.mxu0 %v599
    %3723 = vmatprep.subr.bf16.mxu0 %v596
    %3724 = vmatpush1.bf16.msra.mxu0 %v595
    %3725 = vmatprep.subr.bf16.mxu0 %v592
    %3726 = vmatpush1.bf16.msra.mxu0 %v591
    %3727 = vmatprep.subr.bf16.mxu0 %v588
    %3728 = vmatpush1.bf16.msra.mxu0 %v587
    %3729 = vmatprep.subr.bf16.mxu0 0
    %3730 = vmatpush2.bf16.msra.mxu0 0
    %3731 = vmatprep.subr.bf16.mxu0 0
    %3732 = vmatpush2.bf16.msra.mxu0 0
    %3733 = vmatprep.subr.bf16.mxu0 0
    %3734 = vmatpush2.bf16.msra.mxu0 0
    %3735 = vmatprep.subr.bf16.mxu0 0
    %3736 = vmatpush2.bf16.msra.mxu0 0
    %3737 = vmatprep.subr.bf16.mxu0 0
    %3738 = vmatpush2.bf16.msra.mxu0 0
    %3739 = vmatprep.subr.bf16.mxu0 0
    %3740 = vmatpush2.bf16.msra.mxu0 0
    %3741 = vmatprep.subr.bf16.mxu0 0
    %3742 = vmatpush2.bf16.msra.mxu0 0
    %3743 = vmatprep.subr.bf16.mxu0 0
    %3744 = vmatpush2.bf16.msra.mxu0 0
    %3745 = vmatprep.mubr.bf16.mxu0 0
    %3746 = vmatmul.mubr.bf16.gmra.mxu0 %v3711
    %v3747 = vpop.f32.mrf.mxu0
    %v3748 = vadd.f32 0.0, %v3747
    %v3749 = vpop.f32.mrf.mxu0
    %v3750 = vadd.f32 0.0, %v3749
    %v3751 = vpop.f32.mrf.mxu0
    %v3752 = vpop.f32.mrf.mxu0
    %3753 = vdwg.mxu0
    %3754 = vmatprep.subr.bf16.mxu0 %v618
    %3755 = vmatpush1.bf16.msra.mxu0 %v617
    %3756 = vmatprep.subr.bf16.mxu0 %v614
    %3757 = vmatpush1.bf16.msra.mxu0 %v613
    %3758 = vmatprep.subr.bf16.mxu0 %v610
    %3759 = vmatpush1.bf16.msra.mxu0 %v609
    %3760 = vmatprep.subr.bf16.mxu0 %v606
    %3761 = vmatpush1.bf16.msra.mxu0 %v605
    %3762 = vmatprep.subr.bf16.mxu0 %v602
    %3763 = vmatpush1.bf16.msra.mxu0 %v601
    %3764 = vmatprep.subr.bf16.mxu0 %v598
    %3765 = vmatpush1.bf16.msra.mxu0 %v597
    %3766 = vmatprep.subr.bf16.mxu0 %v594
    %3767 = vmatpush1.bf16.msra.mxu0 %v593
    %3768 = vmatprep.subr.bf16.mxu0 %v590
    %3769 = vmatpush1.bf16.msra.mxu0 %v589
    %3770 = vmatprep.subr.bf16.mxu0 0
    %3771 = vmatpush2.bf16.msra.mxu0 0
    %3772 = vmatprep.subr.bf16.mxu0 0
    %3773 = vmatpush2.bf16.msra.mxu0 0
    %3774 = vmatprep.subr.bf16.mxu0 0
    %3775 = vmatpush2.bf16.msra.mxu0 0
    %3776 = vmatprep.subr.bf16.mxu0 0
    %3777 = vmatpush2.bf16.msra.mxu0 0
    %3778 = vmatprep.subr.bf16.mxu0 0
    %3779 = vmatpush2.bf16.msra.mxu0 0
    %3780 = vmatprep.subr.bf16.mxu0 0
    %3781 = vmatpush2.bf16.msra.mxu0 0
    %3782 = vmatprep.subr.bf16.mxu0 0
    %3783 = vmatpush2.bf16.msra.mxu0 0
    %3784 = vmatprep.subr.bf16.mxu0 0
    %3785 = vmatpush2.bf16.msra.mxu0 0
    %3786 = vmatprep.mubr.bf16.mxu0 0
    %3787 = vmatmul.mubr.bf16.gmra.mxu0 %v3711
    %v3788 = vpop.f32.mrf.mxu0
    %v3789 = vadd.f32 0.0, %v3788
    %v3790 = vpop.f32.mrf.mxu0
    %v3791 = vadd.f32 0.0, %v3790
    %v3792 = vpop.f32.mrf.mxu0
    %v3793 = vpop.f32.mrf.mxu0
    %3794 = vdwg.mxu0
    %v3799 = vcombine.low %v3748, %v3750
    %v3800 = vcombine.low %v3789, %v3791
    %v3802 = vunpack.c.l.s4 1966171168
    %v3803 = vunpack.c.0.s8 %v3802
    %v3804 = vlaneseq
    %v3805 = vshrl.u32 %v3804, 7
    %v3806 = vsub.s32 %v3803, %v3805
    %v3807 = vrot.slane %v3799, %v3806
    %v3809 = vunpack.c.l.s4 1966171168
    %v3810 = vunpack.c.0.s8 %v3809
    %v3811 = vlaneseq
    %v3812 = vshrl.u32 %v3811, 7
    %v3813 = vsub.s32 %v3810, %v3812
    %v3814 = vrot.slane %v3800, %v3813
    %v3815 = vcombine.low %v3807, %v3814
    %v3816 = vcombine.high %v3807, %v3814
    %v3818 = vunpack.c.l.s4 1966171168
    %v3819 = vunpack.c.0.s8 %v3818
    %v3820 = vlaneseq
    %v3821 = vshrl.u32 %v3820, 7
    %v3822 = vsub.s32 %v3819, %v3821
    %v3823 = vrot.slane %v3815, %v3822
    %v3825 = vunpack.c.l.s4 1966171168
    %v3826 = vunpack.c.0.s8 %v3825
    %v3827 = vlaneseq
    %v3828 = vshrl.u32 %v3827, 7
    %v3829 = vsub.s32 %v3826, %v3828
    %v3830 = vrot.slane %v3816, %v3829
    %v3833 = vadd.f32 %v3700, %v3823
    %v3834 = vadd.f32 %v3702, %v3830
    %v3835 = vxor.u32 %v3833, 2147483648
    %v3836 = vxor.u32 %v3834, 2147483648
    %v3837 = vmul.f32 %v3835, 1.442695
    %v3838 = vpow.pop %v3837
    %v3839 = vmul.f32 %v3836, 1.442695
    %v3840 = vpow.pop %v3839
    %v3841 = vadd.f32 %v3838, 1.0
    %v3842 = vadd.f32 %v3840, 1.0
    %v3843 = vrcp.pop %v3841
    %v3844 = vmul.f32 1.0, %v3843
    %v3845 = vrcp.pop %v3842
    %v3846 = vmul.f32 1.0, %v3845
    %v3849 = vrot.slane %v3833, 1
    %v3850 = vrot.slane %v3834, 1
    %v3853 = vxor.u32 %v3849, 2147483648
    %v3854 = vxor.u32 %v3850, 2147483648
    %v3855 = vmul.f32 %v3853, 1.442695
    %v3856 = vpow.pop %v3855
    %v3857 = vmul.f32 %v3854, 1.442695
    %v3858 = vpow.pop %v3857
    %v3859 = vadd.f32 %v3856, 1.0
    %v3860 = vadd.f32 %v3858, 1.0
    %v3861 = vrcp.pop %v3859
    %v3862 = vmul.f32 1.0, %v3861
    %v3863 = vrcp.pop %v3860
    %v3864 = vmul.f32 1.0, %v3863
    %v3865 = vrot.slane %v3833, 2
    %v3866 = vrot.slane %v3834, 2
    %v3869 = vtanh.pop %v3865
    %v3870 = vtanh.pop %v3866
    %v3871 = vrot.slane %v3833, 3
    %v3872 = vrot.slane %v3834, 3
    %v3875 = vxor.u32 %v3871, 2147483648
    %v3876 = vxor.u32 %v3872, 2147483648
    %v3877 = vmul.f32 %v3875, 1.442695
    %v3878 = vpow.pop %v3877
    %v3879 = vmul.f32 %v3876, 1.442695
    %v3880 = vpow.pop %v3879
    %v3881 = vadd.f32 %v3878, 1.0
    %v3882 = vadd.f32 %v3880, 1.0
    %v3883 = vrcp.pop %v3881
    %v3884 = vmul.f32 1.0, %v3883
    %v3885 = vrcp.pop %v3882
    %v3886 = vmul.f32 1.0, %v3885
    %v3887 = vmul.f32 %v3862, %v3433
    %v3888 = vmul.f32 %v3864, %v3434
    %v3889 = vmul.f32 %v3844, %v3869
    %v3890 = vmul.f32 %v3846, %v3870
    %v3891 = vadd.f32 %v3887, %v3889
    %v3892 = vadd.f32 %v3888, %v3890
    %v3893 = vtanh.pop %v3891
    %v3894 = vtanh.pop %v3892
    %v3895 = vmul.f32 %v3884, %v3893
    %v3896 = vmul.f32 %v3886, %v3894
    %v3899 = vcombine.low %v3437, %v3438
    %v3901 = vunpack.c.l.s4 1966171168
    %v3902 = vunpack.c.0.s8 %v3901
    %v3903 = vlaneseq
    %v3904 = vshrl.u32 %v3903, 7
    %v3905 = vsub.s32 %v3902, %v3904
    %v3906 = vrot.slane %v3899, %v3905
    %v3908 = vunpack.c.l.s4 1966171168
    %v3909 = vunpack.c.0.s8 %v3908
    %v3910 = vlaneseq
    %v3911 = vshrl.u32 %v3910, 7
    %v3912 = vsub.s32 %v3909, %v3911
    %v3913 = vrot.slane %v3906, %v3912
    %v3915 = vpack.c.bf16 %v3913, %v3913
    %v3916 = vpack.c.bf16 %v3564, %v3564
    %3917 = vmatprep.subr.bf16.mxu0 %v1321
    %3918 = vmatpush1.bf16.msra.mxu0 %v1320
    %3919 = vmatprep.subr.bf16.mxu0 %v1317
    %3920 = vmatpush1.bf16.msra.mxu0 %v1316
    %3921 = vmatprep.subr.bf16.mxu0 %v1313
    %3922 = vmatpush1.bf16.msra.mxu0 %v1312
    %3923 = vmatprep.subr.bf16.mxu0 %v1309
    %3924 = vmatpush1.bf16.msra.mxu0 %v1308
    %3925 = vmatprep.subr.bf16.mxu0 %v1305
    %3926 = vmatpush1.bf16.msra.mxu0 %v1304
    %3927 = vmatprep.subr.bf16.mxu0 %v1301
    %3928 = vmatpush1.bf16.msra.mxu0 %v1300
    %3929 = vmatprep.subr.bf16.mxu0 %v1297
    %3930 = vmatpush1.bf16.msra.mxu0 %v1296
    %3931 = vmatprep.subr.bf16.mxu0 %v1293
    %3932 = vmatpush1.bf16.msra.mxu0 %v1292
    %3933 = vmatprep.subr.bf16.mxu0 %v1353
    %3934 = vmatpush2.bf16.msra.mxu0 %v1352
    %3935 = vmatprep.subr.bf16.mxu0 %v1349
    %3936 = vmatpush2.bf16.msra.mxu0 %v1348
    %3937 = vmatprep.subr.bf16.mxu0 %v1345
    %3938 = vmatpush2.bf16.msra.mxu0 %v1344
    %3939 = vmatprep.subr.bf16.mxu0 %v1341
    %3940 = vmatpush2.bf16.msra.mxu0 %v1340
    %3941 = vmatprep.subr.bf16.mxu0 %v1337
    %3942 = vmatpush2.bf16.msra.mxu0 %v1336
    %3943 = vmatprep.subr.bf16.mxu0 %v1333
    %3944 = vmatpush2.bf16.msra.mxu0 %v1332
    %3945 = vmatprep.subr.bf16.mxu0 %v1329
    %3946 = vmatpush2.bf16.msra.mxu0 %v1328
    %3947 = vmatprep.subr.bf16.mxu0 %v1325
    %3948 = vmatpush2.bf16.msra.mxu0 %v1324
    %3949 = vmatprep.mubr.bf16.mxu0 %v3916
    %3950 = vmatmul.mubr.bf16.gmra.mxu0 %v3915
    %v3951 = vpop.f32.mrf.mxu0
    %v3952 = vadd.f32 %v1083, %v3951
    %v3953 = vpop.f32.mrf.mxu0
    %v3954 = vadd.f32 %v1087, %v3953
    %v3955 = vpop.f32.mrf.mxu0
    %v3956 = vpop.f32.mrf.mxu0
    %3957 = vdwg.mxu0
    %3958 = vmatprep.subr.bf16.mxu0 %v1323
    %3959 = vmatpush1.bf16.msra.mxu0 %v1322
    %3960 = vmatprep.subr.bf16.mxu0 %v1319
    %3961 = vmatpush1.bf16.msra.mxu0 %v1318
    %3962 = vmatprep.subr.bf16.mxu0 %v1315
    %3963 = vmatpush1.bf16.msra.mxu0 %v1314
    %3964 = vmatprep.subr.bf16.mxu0 %v1311
    %3965 = vmatpush1.bf16.msra.mxu0 %v1310
    %3966 = vmatprep.subr.bf16.mxu0 %v1307
    %3967 = vmatpush1.bf16.msra.mxu0 %v1306
    %3968 = vmatprep.subr.bf16.mxu0 %v1303
    %3969 = vmatpush1.bf16.msra.mxu0 %v1302
    %3970 = vmatprep.subr.bf16.mxu0 %v1299
    %3971 = vmatpush1.bf16.msra.mxu0 %v1298
    %3972 = vmatprep.subr.bf16.mxu0 %v1295
    %3973 = vmatpush1.bf16.msra.mxu0 %v1294
    %3974 = vmatprep.subr.bf16.mxu0 %v1355
    %3975 = vmatpush2.bf16.msra.mxu0 %v1354
    %3976 = vmatprep.subr.bf16.mxu0 %v1351
    %3977 = vmatpush2.bf16.msra.mxu0 %v1350
    %3978 = vmatprep.subr.bf16.mxu0 %v1347
    %3979 = vmatpush2.bf16.msra.mxu0 %v1346
    %3980 = vmatprep.subr.bf16.mxu0 %v1343
    %3981 = vmatpush2.bf16.msra.mxu0 %v1342
    %3982 = vmatprep.subr.bf16.mxu0 %v1339
    %3983 = vmatpush2.bf16.msra.mxu0 %v1338
    %3984 = vmatprep.subr.bf16.mxu0 %v1335
    %3985 = vmatpush2.bf16.msra.mxu0 %v1334
    %3986 = vmatprep.subr.bf16.mxu0 %v1331
    %3987 = vmatpush2.bf16.msra.mxu0 %v1330
    %3988 = vmatprep.subr.bf16.mxu0 %v1327
    %3989 = vmatpush2.bf16.msra.mxu0 %v1326
    %3990 = vmatprep.mubr.bf16.mxu0 %v3916
    %3991 = vmatmul.mubr.bf16.gmra.mxu0 %v3915
    %v3992 = vpop.f32.mrf.mxu0
    %v3993 = vadd.f32 %v1091, %v3992
    %v3994 = vpop.f32.mrf.mxu0
    %v3995 = vadd.f32 %v1095, %v3994
    %v3996 = vpop.f32.mrf.mxu0
    %v3997 = vpop.f32.mrf.mxu0
    %3998 = vdwg.mxu0
    %v3999 = vxor.u32 %v3952, 2147483648
    %v4000 = vmul.f32 %v3999, 1.442695
    %v4001 = vpow.pop %v4000
    %v4002 = vadd.f32 %v4001, 1.0
    %v4003 = vrcp.pop %v4002
    %v4004 = vmul.f32 1.0, %v4003
    %v4005 = vxor.u32 %v3954, 2147483648
    %v4006 = vmul.f32 %v4005, 1.442695
    %v4007 = vpow.pop %v4006
    %v4008 = vadd.f32 %v4007, 1.0
    %v4009 = vrcp.pop %v4008
    %v4010 = vmul.f32 1.0, %v4009
    %v4011 = vtanh.pop %v3993
    %v4012 = vxor.u32 %v3995, 2147483648
    %v4013 = vmul.f32 %v4012, 1.442695
    %v4014 = vpow.pop %v4013
    %v4015 = vadd.f32 %v4014, 1.0
    %v4016 = vrcp.pop %v4015
    %v4017 = vmul.f32 1.0, %v4016
    %v4018 = vmul.f32 %v4010, %v3562
    %v4019 = vmul.f32 %v4004, %v4011
    %v4020 = vadd.f32 %v4018, %v4019
    %v4021 = vtanh.pop %v4020
    %v4022 = vmul.f32 %v4017, %v4021
    %v4023 = vpack.c.bf16 %v3671, %v3671
    %4024 = vmatprep.subr.bf16.mxu0 %v2093
    %4025 = vmatpush1.bf16.msra.mxu0 %v2092
    %4026 = vmatprep.subr.bf16.mxu0 %v2089
    %4027 = vmatpush1.bf16.msra.mxu0 %v2088
    %4028 = vmatprep.subr.bf16.mxu0 %v2085
    %4029 = vmatpush1.bf16.msra.mxu0 %v2084
    %4030 = vmatprep.subr.bf16.mxu0 %v2081
    %4031 = vmatpush1.bf16.msra.mxu0 %v2080
    %4032 = vmatprep.subr.bf16.mxu0 %v2077
    %4033 = vmatpush1.bf16.msra.mxu0 %v2076
    %4034 = vmatprep.subr.bf16.mxu0 %v2073
    %4035 = vmatpush1.bf16.msra.mxu0 %v2072
    %4036 = vmatprep.subr.bf16.mxu0 %v2069
    %4037 = vmatpush1.bf16.msra.mxu0 %v2068
    %4038 = vmatprep.subr.bf16.mxu0 %v2065
    %4039 = vmatpush1.bf16.msra.mxu0 %v2064
    %4040 = vmatprep.subr.bf16.mxu0 %v2125
    %4041 = vmatpush2.bf16.msra.mxu0 %v2124
    %4042 = vmatprep.subr.bf16.mxu0 %v2121
    %4043 = vmatpush2.bf16.msra.mxu0 %v2120
    %4044 = vmatprep.subr.bf16.mxu0 %v2117
    %4045 = vmatpush2.bf16.msra.mxu0 %v2116
    %4046 = vmatprep.subr.bf16.mxu0 %v2113
    %4047 = vmatpush2.bf16.msra.mxu0 %v2112
    %4048 = vmatprep.subr.bf16.mxu0 %v2109
    %4049 = vmatpush2.bf16.msra.mxu0 %v2108
    %4050 = vmatprep.subr.bf16.mxu0 %v2105
    %4051 = vmatpush2.bf16.msra.mxu0 %v2104
    %4052 = vmatprep.subr.bf16.mxu0 %v2101
    %4053 = vmatpush2.bf16.msra.mxu0 %v2100
    %4054 = vmatprep.subr.bf16.mxu0 %v2097
    %4055 = vmatpush2.bf16.msra.mxu0 %v2096
    %4056 = vmatprep.mubr.bf16.mxu0 %v4023
    %4057 = vmatmul.mubr.bf16.gmra.mxu0 %v3916
    %v4058 = vpop.f32.mrf.mxu0
    %v4059 = vadd.f32 %v1855, %v4058
    %v4060 = vpop.f32.mrf.mxu0
    %v4061 = vadd.f32 %v1859, %v4060
    %v4062 = vpop.f32.mrf.mxu0
    %v4063 = vpop.f32.mrf.mxu0
    %4064 = vdwg.mxu0
    %4065 = vmatprep.subr.bf16.mxu0 %v2095
    %4066 = vmatpush1.bf16.msra.mxu0 %v2094
    %4067 = vmatprep.subr.bf16.mxu0 %v2091
    %4068 = vmatpush1.bf16.msra.mxu0 %v2090
    %4069 = vmatprep.subr.bf16.mxu0 %v2087
    %4070 = vmatpush1.bf16.msra.mxu0 %v2086
    %4071 = vmatprep.subr.bf16.mxu0 %v2083
    %4072 = vmatpush1.bf16.msra.mxu0 %v2082
    %4073 = vmatprep.subr.bf16.mxu0 %v2079
    %4074 = vmatpush1.bf16.msra.mxu0 %v2078
    %4075 = vmatprep.subr.bf16.mxu0 %v2075
    %4076 = vmatpush1.bf16.msra.mxu0 %v2074
    %4077 = vmatprep.subr.bf16.mxu0 %v2071
    %4078 = vmatpush1.bf16.msra.mxu0 %v2070
    %4079 = vmatprep.subr.bf16.mxu0 %v2067
    %4080 = vmatpush1.bf16.msra.mxu0 %v2066
    %4081 = vmatprep.subr.bf16.mxu0 %v2127
    %4082 = vmatpush2.bf16.msra.mxu0 %v2126
    %4083 = vmatprep.subr.bf16.mxu0 %v2123
    %4084 = vmatpush2.bf16.msra.mxu0 %v2122
    %4085 = vmatprep.subr.bf16.mxu0 %v2119
    %4086 = vmatpush2.bf16.msra.mxu0 %v2118
    %4087 = vmatprep.subr.bf16.mxu0 %v2115
    %4088 = vmatpush2.bf16.msra.mxu0 %v2114
    %4089 = vmatprep.subr.bf16.mxu0 %v2111
    %4090 = vmatpush2.bf16.msra.mxu0 %v2110
    %4091 = vmatprep.subr.bf16.mxu0 %v2107
    %4092 = vmatpush2.bf16.msra.mxu0 %v2106
    %4093 = vmatprep.subr.bf16.mxu0 %v2103
    %4094 = vmatpush2.bf16.msra.mxu0 %v2102
    %4095 = vmatprep.subr.bf16.mxu0 %v2099
    %4096 = vmatpush2.bf16.msra.mxu0 %v2098
    %4097 = vmatprep.mubr.bf16.mxu0 %v4023
    %4098 = vmatmul.mubr.bf16.gmra.mxu0 %v3916
    %v4099 = vpop.f32.mrf.mxu0
    %v4100 = vadd.f32 %v1863, %v4099
    %v4101 = vpop.f32.mrf.mxu0
    %v4102 = vadd.f32 %v1867, %v4101
    %v4103 = vpop.f32.mrf.mxu0
    %v4104 = vpop.f32.mrf.mxu0
    %4105 = vdwg.mxu0
    %v4106 = vxor.u32 %v4059, 2147483648
    %v4107 = vmul.f32 %v4106, 1.442695
    %v4108 = vpow.pop %v4107
    %v4109 = vadd.f32 %v4108, 1.0
    %v4110 = vrcp.pop %v4109
    %v4111 = vmul.f32 1.0, %v4110
    %v4112 = vxor.u32 %v4061, 2147483648
    %v4113 = vmul.f32 %v4112, 1.442695
    %v4114 = vpow.pop %v4113
    %v4115 = vadd.f32 %v4114, 1.0
    %v4116 = vrcp.pop %v4115
    %v4117 = vmul.f32 1.0, %v4116
    %v4118 = vtanh.pop %v4100
    %v4119 = vxor.u32 %v4102, 2147483648
    %v4120 = vmul.f32 %v4119, 1.442695
    %v4121 = vpow.pop %v4120
    %v4122 = vadd.f32 %v4121, 1.0
    %v4123 = vrcp.pop %v4122
    %v4124 = vmul.f32 1.0, %v4123
    %v4125 = vmul.f32 %v4117, %v3669
    %v4126 = vmul.f32 %v4111, %v4118
    %v4127 = vadd.f32 %v4125, %v4126
    %v4128 = vtanh.pop %v4127
    %v4129 = vmul.f32 %v4124, %v4128
    %v4132 = vunpack.c.l.s4 1966171168
    %v4133 = vunpack.c.0.s8 %v4132
    %v4134 = vlaneseq
    %v4135 = vshrl.u32 %v4134, 7
    %v4136 = vsub.s32 %v4133, %v4135
    %v4137 = vrot.slane %v4129, %v4136
    %v4138 = vcombine.high %v4137, %v4137
    %v4140 = vunpack.c.l.s4 1966171168
    %v4141 = vunpack.c.0.s8 %v4140
    %v4142 = vlaneseq
    %v4143 = vshrl.u32 %v4142, 7
    %v4144 = vsub.s32 %v4141, %v4143
    %v4145 = vrot.slane %v4137, %v4144
    %v4147 = vunpack.c.l.s4 1966171168
    %v4148 = vunpack.c.0.s8 %v4147
    %v4149 = vlaneseq
    %v4150 = vshrl.u32 %v4149, 7
    %v4151 = vsub.s32 %v4148, %v4150
    %v4152 = vrot.slane %v4138, %v4151
    %4155 = vst [vmem:[#allocation11 + $0x4] sm:$0x1] %v4145
    %4156 = vst [vmem:[#allocation11 + $0xc] sm:$0x1] %v4152
    %s4157 = scalar_lea.vmem [#allocation2], 7
    %v4158 = vld [vmem:[%s4157] ss:$8 sm:$0xf]
    %s4159 = scalar_lea.vmem [#allocation2], 39
    %v4160 = vld [vmem:[%s4159] ss:$8 sm:$0xf]
    %v4161 = vpack.c.bf16 %v3895, %v3895
    %v4162 = vpack.c.bf16 %v3896, %v3896
    %v4165 = vunpack.c.l.b16 %v4161
    %v4166 = vunpack.c.l.b16 %v4162
    %v4167 = vrot.slane %v4166, 7
    %v4168 = vsel %vm871, %v4167, %v4165
    %v4169 = vpack.c.b16 %v4168, %v4168
    %4171 = vmatprep.subr.bf16.mxu0 %v616
    %4172 = vmatpush1.bf16.msra.mxu0 %v615
    %4173 = vmatprep.subr.bf16.mxu0 %v612
    %4174 = vmatpush1.bf16.msra.mxu0 %v611
    %4175 = vmatprep.subr.bf16.mxu0 %v608
    %4176 = vmatpush1.bf16.msra.mxu0 %v607
    %4177 = vmatprep.subr.bf16.mxu0 %v604
    %4178 = vmatpush1.bf16.msra.mxu0 %v603
    %4179 = vmatprep.subr.bf16.mxu0 %v600
    %4180 = vmatpush1.bf16.msra.mxu0 %v599
    %4181 = vmatprep.subr.bf16.mxu0 %v596
    %4182 = vmatpush1.bf16.msra.mxu0 %v595
    %4183 = vmatprep.subr.bf16.mxu0 %v592
    %4184 = vmatpush1.bf16.msra.mxu0 %v591
    %4185 = vmatprep.subr.bf16.mxu0 %v588
    %4186 = vmatpush1.bf16.msra.mxu0 %v587
    %4187 = vmatprep.subr.bf16.mxu0 0
    %4188 = vmatpush2.bf16.msra.mxu0 0
    %4189 = vmatprep.subr.bf16.mxu0 0
    %4190 = vmatpush2.bf16.msra.mxu0 0
    %4191 = vmatprep.subr.bf16.mxu0 0
    %4192 = vmatpush2.bf16.msra.mxu0 0
    %4193 = vmatprep.subr.bf16.mxu0 0
    %4194 = vmatpush2.bf16.msra.mxu0 0
    %4195 = vmatprep.subr.bf16.mxu0 0
    %4196 = vmatpush2.bf16.msra.mxu0 0
    %4197 = vmatprep.subr.bf16.mxu0 0
    %4198 = vmatpush2.bf16.msra.mxu0 0
    %4199 = vmatprep.subr.bf16.mxu0 0
    %4200 = vmatpush2.bf16.msra.mxu0 0
    %4201 = vmatprep.subr.bf16.mxu0 0
    %4202 = vmatpush2.bf16.msra.mxu0 0
    %4203 = vmatprep.mubr.bf16.mxu0 0
    %4204 = vmatmul.mubr.bf16.gmra.mxu0 %v4169
    %v4205 = vpop.f32.mrf.mxu0
    %v4206 = vadd.f32 0.0, %v4205
    %v4207 = vpop.f32.mrf.mxu0
    %v4208 = vadd.f32 0.0, %v4207
    %v4209 = vpop.f32.mrf.mxu0
    %v4210 = vpop.f32.mrf.mxu0
    %4211 = vdwg.mxu0
    %4212 = vmatprep.subr.bf16.mxu0 %v618
    %4213 = vmatpush1.bf16.msra.mxu0 %v617
    %4214 = vmatprep.subr.bf16.mxu0 %v614
    %4215 = vmatpush1.bf16.msra.mxu0 %v613
    %4216 = vmatprep.subr.bf16.mxu0 %v610
    %4217 = vmatpush1.bf16.msra.mxu0 %v609
    %4218 = vmatprep.subr.bf16.mxu0 %v606
    %4219 = vmatpush1.bf16.msra.mxu0 %v605
    %4220 = vmatprep.subr.bf16.mxu0 %v602
    %4221 = vmatpush1.bf16.msra.mxu0 %v601
    %4222 = vmatprep.subr.bf16.mxu0 %v598
    %4223 = vmatpush1.bf16.msra.mxu0 %v597
    %4224 = vmatprep.subr.bf16.mxu0 %v594
    %4225 = vmatpush1.bf16.msra.mxu0 %v593
    %4226 = vmatprep.subr.bf16.mxu0 %v590
    %4227 = vmatpush1.bf16.msra.mxu0 %v589
    %4228 = vmatprep.subr.bf16.mxu0 0
    %4229 = vmatpush2.bf16.msra.mxu0 0
    %4230 = vmatprep.subr.bf16.mxu0 0
    %4231 = vmatpush2.bf16.msra.mxu0 0
    %4232 = vmatprep.subr.bf16.mxu0 0
    %4233 = vmatpush2.bf16.msra.mxu0 0
    %4234 = vmatprep.subr.bf16.mxu0 0
    %4235 = vmatpush2.bf16.msra.mxu0 0
    %4236 = vmatprep.subr.bf16.mxu0 0
    %4237 = vmatpush2.bf16.msra.mxu0 0
    %4238 = vmatprep.subr.bf16.mxu0 0
    %4239 = vmatpush2.bf16.msra.mxu0 0
    %4240 = vmatprep.subr.bf16.mxu0 0
    %4241 = vmatpush2.bf16.msra.mxu0 0
    %4242 = vmatprep.subr.bf16.mxu0 0
    %4243 = vmatpush2.bf16.msra.mxu0 0
    %4244 = vmatprep.mubr.bf16.mxu0 0
    %4245 = vmatmul.mubr.bf16.gmra.mxu0 %v4169
    %v4246 = vpop.f32.mrf.mxu0
    %v4247 = vadd.f32 0.0, %v4246
    %v4248 = vpop.f32.mrf.mxu0
    %v4249 = vadd.f32 0.0, %v4248
    %v4250 = vpop.f32.mrf.mxu0
    %v4251 = vpop.f32.mrf.mxu0
    %4252 = vdwg.mxu0
    %v4257 = vcombine.low %v4206, %v4208
    %v4258 = vcombine.low %v4247, %v4249
    %v4260 = vunpack.c.l.s4 1966171168
    %v4261 = vunpack.c.0.s8 %v4260
    %v4262 = vlaneseq
    %v4263 = vshrl.u32 %v4262, 7
    %v4264 = vsub.s32 %v4261, %v4263
    %v4265 = vrot.slane %v4257, %v4264
    %v4267 = vunpack.c.l.s4 1966171168
    %v4268 = vunpack.c.0.s8 %v4267
    %v4269 = vlaneseq
    %v4270 = vshrl.u32 %v4269, 7
    %v4271 = vsub.s32 %v4268, %v4270
    %v4272 = vrot.slane %v4258, %v4271
    %v4273 = vcombine.low %v4265, %v4272
    %v4274 = vcombine.high %v4265, %v4272
    %v4276 = vunpack.c.l.s4 1966171168
    %v4277 = vunpack.c.0.s8 %v4276
    %v4278 = vlaneseq
    %v4279 = vshrl.u32 %v4278, 7
    %v4280 = vsub.s32 %v4277, %v4279
    %v4281 = vrot.slane %v4273, %v4280
    %v4283 = vunpack.c.l.s4 1966171168
    %v4284 = vunpack.c.0.s8 %v4283
    %v4285 = vlaneseq
    %v4286 = vshrl.u32 %v4285, 7
    %v4287 = vsub.s32 %v4284, %v4286
    %v4288 = vrot.slane %v4274, %v4287
    %v4291 = vadd.f32 %v4158, %v4281
    %v4292 = vadd.f32 %v4160, %v4288
    %v4293 = vxor.u32 %v4291, 2147483648
    %v4294 = vxor.u32 %v4292, 2147483648
    %v4295 = vmul.f32 %v4293, 1.442695
    %v4296 = vpow.pop %v4295
    %v4297 = vmul.f32 %v4294, 1.442695
    %v4298 = vpow.pop %v4297
    %v4299 = vadd.f32 %v4296, 1.0
    %v4300 = vadd.f32 %v4298, 1.0
    %v4301 = vrcp.pop %v4299
    %v4302 = vmul.f32 1.0, %v4301
    %v4303 = vrcp.pop %v4300
    %v4304 = vmul.f32 1.0, %v4303
    %v4307 = vrot.slane %v4291, 1
    %v4308 = vrot.slane %v4292, 1
    %v4311 = vxor.u32 %v4307, 2147483648
    %v4312 = vxor.u32 %v4308, 2147483648
    %v4313 = vmul.f32 %v4311, 1.442695
    %v4314 = vpow.pop %v4313
    %v4315 = vmul.f32 %v4312, 1.442695
    %v4316 = vpow.pop %v4315
    %v4317 = vadd.f32 %v4314, 1.0
    %v4318 = vadd.f32 %v4316, 1.0
    %v4319 = vrcp.pop %v4317
    %v4320 = vmul.f32 1.0, %v4319
    %v4321 = vrcp.pop %v4318
    %v4322 = vmul.f32 1.0, %v4321
    %v4323 = vrot.slane %v4291, 2
    %v4324 = vrot.slane %v4292, 2
    %v4327 = vtanh.pop %v4323
    %v4328 = vtanh.pop %v4324
    %v4329 = vrot.slane %v4291, 3
    %v4330 = vrot.slane %v4292, 3
    %v4333 = vxor.u32 %v4329, 2147483648
    %v4334 = vxor.u32 %v4330, 2147483648
    %v4335 = vmul.f32 %v4333, 1.442695
    %v4336 = vpow.pop %v4335
    %v4337 = vmul.f32 %v4334, 1.442695
    %v4338 = vpow.pop %v4337
    %v4339 = vadd.f32 %v4336, 1.0
    %v4340 = vadd.f32 %v4338, 1.0
    %v4341 = vrcp.pop %v4339
    %v4342 = vmul.f32 1.0, %v4341
    %v4343 = vrcp.pop %v4340
    %v4344 = vmul.f32 1.0, %v4343
    %v4345 = vmul.f32 %v4320, %v3891
    %v4346 = vmul.f32 %v4322, %v3892
    %v4347 = vmul.f32 %v4302, %v4327
    %v4348 = vmul.f32 %v4304, %v4328
    %v4349 = vadd.f32 %v4345, %v4347
    %v4350 = vadd.f32 %v4346, %v4348
    %v4351 = vtanh.pop %v4349
    %v4352 = vtanh.pop %v4350
    %v4353 = vmul.f32 %v4342, %v4351
    %v4354 = vmul.f32 %v4344, %v4352
    %v4357 = vcombine.low %v3895, %v3896
    %v4359 = vunpack.c.l.s4 1966171168
    %v4360 = vunpack.c.0.s8 %v4359
    %v4361 = vlaneseq
    %v4362 = vshrl.u32 %v4361, 7
    %v4363 = vsub.s32 %v4360, %v4362
    %v4364 = vrot.slane %v4357, %v4363
    %v4366 = vunpack.c.l.s4 1966171168
    %v4367 = vunpack.c.0.s8 %v4366
    %v4368 = vlaneseq
    %v4369 = vshrl.u32 %v4368, 7
    %v4370 = vsub.s32 %v4367, %v4369
    %v4371 = vrot.slane %v4364, %v4370
    %v4373 = vpack.c.bf16 %v4371, %v4371
    %v4374 = vpack.c.bf16 %v4022, %v4022
    %4375 = vmatprep.subr.bf16.mxu0 %v1321
    %4376 = vmatpush1.bf16.msra.mxu0 %v1320
    %4377 = vmatprep.subr.bf16.mxu0 %v1317
    %4378 = vmatpush1.bf16.msra.mxu0 %v1316
    %4379 = vmatprep.subr.bf16.mxu0 %v1313
    %4380 = vmatpush1.bf16.msra.mxu0 %v1312
    %4381 = vmatprep.subr.bf16.mxu0 %v1309
    %4382 = vmatpush1.bf16.msra.mxu0 %v1308
    %4383 = vmatprep.subr.bf16.mxu0 %v1305
    %4384 = vmatpush1.bf16.msra.mxu0 %v1304
    %4385 = vmatprep.subr.bf16.mxu0 %v1301
    %4386 = vmatpush1.bf16.msra.mxu0 %v1300
    %4387 = vmatprep.subr.bf16.mxu0 %v1297
    %4388 = vmatpush1.bf16.msra.mxu0 %v1296
    %4389 = vmatprep.subr.bf16.mxu0 %v1293
    %4390 = vmatpush1.bf16.msra.mxu0 %v1292
    %4391 = vmatprep.subr.bf16.mxu0 %v1353
    %4392 = vmatpush2.bf16.msra.mxu0 %v1352
    %4393 = vmatprep.subr.bf16.mxu0 %v1349
    %4394 = vmatpush2.bf16.msra.mxu0 %v1348
    %4395 = vmatprep.subr.bf16.mxu0 %v1345
    %4396 = vmatpush2.bf16.msra.mxu0 %v1344
    %4397 = vmatprep.subr.bf16.mxu0 %v1341
    %4398 = vmatpush2.bf16.msra.mxu0 %v1340
    %4399 = vmatprep.subr.bf16.mxu0 %v1337
    %4400 = vmatpush2.bf16.msra.mxu0 %v1336
    %4401 = vmatprep.subr.bf16.mxu0 %v1333
    %4402 = vmatpush2.bf16.msra.mxu0 %v1332
    %4403 = vmatprep.subr.bf16.mxu0 %v1329
    %4404 = vmatpush2.bf16.msra.mxu0 %v1328
    %4405 = vmatprep.subr.bf16.mxu0 %v1325
    %4406 = vmatpush2.bf16.msra.mxu0 %v1324
    %4407 = vmatprep.mubr.bf16.mxu0 %v4374
    %4408 = vmatmul.mubr.bf16.gmra.mxu0 %v4373
    %v4409 = vpop.f32.mrf.mxu0
    %v4410 = vadd.f32 %v1083, %v4409
    %v4411 = vpop.f32.mrf.mxu0
    %v4412 = vadd.f32 %v1087, %v4411
    %v4413 = vpop.f32.mrf.mxu0
    %v4414 = vpop.f32.mrf.mxu0
    %4415 = vdwg.mxu0
    %4416 = vmatprep.subr.bf16.mxu0 %v1323
    %4417 = vmatpush1.bf16.msra.mxu0 %v1322
    %4418 = vmatprep.subr.bf16.mxu0 %v1319
    %4419 = vmatpush1.bf16.msra.mxu0 %v1318
    %4420 = vmatprep.subr.bf16.mxu0 %v1315
    %4421 = vmatpush1.bf16.msra.mxu0 %v1314
    %4422 = vmatprep.subr.bf16.mxu0 %v1311
    %4423 = vmatpush1.bf16.msra.mxu0 %v1310
    %4424 = vmatprep.subr.bf16.mxu0 %v1307
    %4425 = vmatpush1.bf16.msra.mxu0 %v1306
    %4426 = vmatprep.subr.bf16.mxu0 %v1303
    %4427 = vmatpush1.bf16.msra.mxu0 %v1302
    %4428 = vmatprep.subr.bf16.mxu0 %v1299
    %4429 = vmatpush1.bf16.msra.mxu0 %v1298
    %4430 = vmatprep.subr.bf16.mxu0 %v1295
    %4431 = vmatpush1.bf16.msra.mxu0 %v1294
    %4432 = vmatprep.subr.bf16.mxu0 %v1355
    %4433 = vmatpush2.bf16.msra.mxu0 %v1354
    %4434 = vmatprep.subr.bf16.mxu0 %v1351
    %4435 = vmatpush2.bf16.msra.mxu0 %v1350
    %4436 = vmatprep.subr.bf16.mxu0 %v1347
    %4437 = vmatpush2.bf16.msra.mxu0 %v1346
    %4438 = vmatprep.subr.bf16.mxu0 %v1343
    %4439 = vmatpush2.bf16.msra.mxu0 %v1342
    %4440 = vmatprep.subr.bf16.mxu0 %v1339
    %4441 = vmatpush2.bf16.msra.mxu0 %v1338
    %4442 = vmatprep.subr.bf16.mxu0 %v1335
    %4443 = vmatpush2.bf16.msra.mxu0 %v1334
    %4444 = vmatprep.subr.bf16.mxu0 %v1331
    %4445 = vmatpush2.bf16.msra.mxu0 %v1330
    %4446 = vmatprep.subr.bf16.mxu0 %v1327
    %4447 = vmatpush2.bf16.msra.mxu0 %v1326
    %4448 = vmatprep.mubr.bf16.mxu0 %v4374
    %4449 = vmatmul.mubr.bf16.gmra.mxu0 %v4373
    %v4450 = vpop.f32.mrf.mxu0
    %v4451 = vadd.f32 %v1091, %v4450
    %v4452 = vpop.f32.mrf.mxu0
    %v4453 = vadd.f32 %v1095, %v4452
    %v4454 = vpop.f32.mrf.mxu0
    %v4455 = vpop.f32.mrf.mxu0
    %4456 = vdwg.mxu0
    %v4457 = vxor.u32 %v4410, 2147483648
    %v4458 = vmul.f32 %v4457, 1.442695
    %v4459 = vpow.pop %v4458
    %v4460 = vadd.f32 %v4459, 1.0
    %v4461 = vrcp.pop %v4460
    %v4462 = vmul.f32 1.0, %v4461
    %v4463 = vxor.u32 %v4412, 2147483648
    %v4464 = vmul.f32 %v4463, 1.442695
    %v4465 = vpow.pop %v4464
    %v4466 = vadd.f32 %v4465, 1.0
    %v4467 = vrcp.pop %v4466
    %v4468 = vmul.f32 1.0, %v4467
    %v4469 = vtanh.pop %v4451
    %v4470 = vxor.u32 %v4453, 2147483648
    %v4471 = vmul.f32 %v4470, 1.442695
    %v4472 = vpow.pop %v4471
    %v4473 = vadd.f32 %v4472, 1.0
    %v4474 = vrcp.pop %v4473
    %v4475 = vmul.f32 1.0, %v4474
    %v4476 = vmul.f32 %v4468, %v4020
    %v4477 = vmul.f32 %v4462, %v4469
    %v4478 = vadd.f32 %v4476, %v4477
    %v4479 = vtanh.pop %v4478
    %v4480 = vmul.f32 %v4475, %v4479
    %v4481 = vpack.c.bf16 %v4129, %v4129
    %4482 = vmatprep.subr.bf16.mxu0 %v2093
    %4483 = vmatpush1.bf16.msra.mxu0 %v2092
    %4484 = vmatprep.subr.bf16.mxu0 %v2089
    %4485 = vmatpush1.bf16.msra.mxu0 %v2088
    %4486 = vmatprep.subr.bf16.mxu0 %v2085
    %4487 = vmatpush1.bf16.msra.mxu0 %v2084
    %4488 = vmatprep.subr.bf16.mxu0 %v2081
    %4489 = vmatpush1.bf16.msra.mxu0 %v2080
    %4490 = vmatprep.subr.bf16.mxu0 %v2077
    %4491 = vmatpush1.bf16.msra.mxu0 %v2076
    %4492 = vmatprep.subr.bf16.mxu0 %v2073
    %4493 = vmatpush1.bf16.msra.mxu0 %v2072
    %4494 = vmatprep.subr.bf16.mxu0 %v2069
    %4495 = vmatpush1.bf16.msra.mxu0 %v2068
    %4496 = vmatprep.subr.bf16.mxu0 %v2065
    %4497 = vmatpush1.bf16.msra.mxu0 %v2064
    %4498 = vmatprep.subr.bf16.mxu0 %v2125
    %4499 = vmatpush2.bf16.msra.mxu0 %v2124
    %4500 = vmatprep.subr.bf16.mxu0 %v2121
    %4501 = vmatpush2.bf16.msra.mxu0 %v2120
    %4502 = vmatprep.subr.bf16.mxu0 %v2117
    %4503 = vmatpush2.bf16.msra.mxu0 %v2116
    %4504 = vmatprep.subr.bf16.mxu0 %v2113
    %4505 = vmatpush2.bf16.msra.mxu0 %v2112
    %4506 = vmatprep.subr.bf16.mxu0 %v2109
    %4507 = vmatpush2.bf16.msra.mxu0 %v2108
    %4508 = vmatprep.subr.bf16.mxu0 %v2105
    %4509 = vmatpush2.bf16.msra.mxu0 %v2104
    %4510 = vmatprep.subr.bf16.mxu0 %v2101
    %4511 = vmatpush2.bf16.msra.mxu0 %v2100
    %4512 = vmatprep.subr.bf16.mxu0 %v2097
    %4513 = vmatpush2.bf16.msra.mxu0 %v2096
    %4514 = vmatprep.mubr.bf16.mxu0 %v4481
    %4515 = vmatmul.mubr.bf16.gmra.mxu0 %v4374
    %v4516 = vpop.f32.mrf.mxu0
    %v4517 = vadd.f32 %v1855, %v4516
    %v4518 = vpop.f32.mrf.mxu0
    %v4519 = vadd.f32 %v1859, %v4518
    %v4520 = vpop.f32.mrf.mxu0
    %v4521 = vpop.f32.mrf.mxu0
    %4522 = vdwg.mxu0
    %4523 = vmatprep.subr.bf16.mxu0 %v2095
    %4524 = vmatpush1.bf16.msra.mxu0 %v2094
    %4525 = vmatprep.subr.bf16.mxu0 %v2091
    %4526 = vmatpush1.bf16.msra.mxu0 %v2090
    %4527 = vmatprep.subr.bf16.mxu0 %v2087
    %4528 = vmatpush1.bf16.msra.mxu0 %v2086
    %4529 = vmatprep.subr.bf16.mxu0 %v2083
    %4530 = vmatpush1.bf16.msra.mxu0 %v2082
    %4531 = vmatprep.subr.bf16.mxu0 %v2079
    %4532 = vmatpush1.bf16.msra.mxu0 %v2078
    %4533 = vmatprep.subr.bf16.mxu0 %v2075
    %4534 = vmatpush1.bf16.msra.mxu0 %v2074
    %4535 = vmatprep.subr.bf16.mxu0 %v2071
    %4536 = vmatpush1.bf16.msra.mxu0 %v2070
    %4537 = vmatprep.subr.bf16.mxu0 %v2067
    %4538 = vmatpush1.bf16.msra.mxu0 %v2066
    %4539 = vmatprep.subr.bf16.mxu0 %v2127
    %4540 = vmatpush2.bf16.msra.mxu0 %v2126
    %4541 = vmatprep.subr.bf16.mxu0 %v2123
    %4542 = vmatpush2.bf16.msra.mxu0 %v2122
    %4543 = vmatprep.subr.bf16.mxu0 %v2119
    %4544 = vmatpush2.bf16.msra.mxu0 %v2118
    %4545 = vmatprep.subr.bf16.mxu0 %v2115
    %4546 = vmatpush2.bf16.msra.mxu0 %v2114
    %4547 = vmatprep.subr.bf16.mxu0 %v2111
    %4548 = vmatpush2.bf16.msra.mxu0 %v2110
    %4549 = vmatprep.subr.bf16.mxu0 %v2107
    %4550 = vmatpush2.bf16.msra.mxu0 %v2106
    %4551 = vmatprep.subr.bf16.mxu0 %v2103
    %4552 = vmatpush2.bf16.msra.mxu0 %v2102
    %4553 = vmatprep.subr.bf16.mxu0 %v2099
    %4554 = vmatpush2.bf16.msra.mxu0 %v2098
    %4555 = vmatprep.mubr.bf16.mxu0 %v4481
    %4556 = vmatmul.mubr.bf16.gmra.mxu0 %v4374
    %v4557 = vpop.f32.mrf.mxu0
    %v4558 = vadd.f32 %v1863, %v4557
    %v4559 = vpop.f32.mrf.mxu0
    %v4560 = vadd.f32 %v1867, %v4559
    %v4561 = vpop.f32.mrf.mxu0
    %v4562 = vpop.f32.mrf.mxu0
    %4563 = vdwg.mxu0
    %v4564 = vxor.u32 %v4517, 2147483648
    %v4565 = vmul.f32 %v4564, 1.442695
    %v4566 = vpow.pop %v4565
    %v4567 = vadd.f32 %v4566, 1.0
    %v4568 = vrcp.pop %v4567
    %v4569 = vmul.f32 1.0, %v4568
    %v4570 = vxor.u32 %v4519, 2147483648
    %v4571 = vmul.f32 %v4570, 1.442695
    %v4572 = vpow.pop %v4571
    %v4573 = vadd.f32 %v4572, 1.0
    %v4574 = vrcp.pop %v4573
    %v4575 = vmul.f32 1.0, %v4574
    %v4576 = vtanh.pop %v4558
    %v4577 = vxor.u32 %v4560, 2147483648
    %v4578 = vmul.f32 %v4577, 1.442695
    %v4579 = vpow.pop %v4578
    %v4580 = vadd.f32 %v4579, 1.0
    %v4581 = vrcp.pop %v4580
    %v4582 = vmul.f32 1.0, %v4581
    %v4583 = vmul.f32 %v4575, %v4127
    %v4584 = vmul.f32 %v4569, %v4576
    %v4585 = vadd.f32 %v4583, %v4584
    %v4586 = vtanh.pop %v4585
    %v4587 = vmul.f32 %v4582, %v4586
    %v4590 = vunpack.c.l.s4 1966171168
    %v4591 = vunpack.c.0.s8 %v4590
    %v4592 = vlaneseq
    %v4593 = vshrl.u32 %v4592, 7
    %v4594 = vsub.s32 %v4591, %v4593
    %v4595 = vrot.slane %v4587, %v4594
    %v4596 = vcombine.high %v4595, %v4595
    %v4598 = vunpack.c.l.s4 1966171168
    %v4599 = vunpack.c.0.s8 %v4598
    %v4600 = vlaneseq
    %v4601 = vshrl.u32 %v4600, 7
    %v4602 = vsub.s32 %v4599, %v4601
    %v4603 = vrot.slane %v4595, %v4602
    %v4605 = vunpack.c.l.s4 1966171168
    %v4606 = vunpack.c.0.s8 %v4605
    %v4607 = vlaneseq
    %v4608 = vshrl.u32 %v4607, 7
    %v4609 = vsub.s32 %v4606, %v4608
    %v4610 = vrot.slane %v4596, %v4609
    %4613 = vst [vmem:[#allocation11 + $0x5] sm:$0x1] %v4603
    %4614 = vst [vmem:[#allocation11 + $0xd] sm:$0x1] %v4610
    %v4617 = vcombine.low %v4353, %v4354
    %v4619 = vunpack.c.l.s4 1966171168
    %v4620 = vunpack.c.0.s8 %v4619
    %v4621 = vlaneseq
    %v4622 = vshrl.u32 %v4621, 7
    %v4623 = vsub.s32 %v4620, %v4622
    %v4624 = vrot.slane %v4617, %v4623
    %v4626 = vunpack.c.l.s4 1966171168
    %v4627 = vunpack.c.0.s8 %v4626
    %v4628 = vlaneseq
    %v4629 = vshrl.u32 %v4628, 7
    %v4630 = vsub.s32 %v4627, %v4629
    %v4631 = vrot.slane %v4624, %v4630
    %v4633 = vpack.c.bf16 %v4631, %v4631
    %v4634 = vpack.c.bf16 %v4480, %v4480
    %4635 = vmatprep.subr.bf16.mxu0 %v1321
    %4636 = vmatpush1.bf16.msra.mxu0 %v1320
    %4637 = vmatprep.subr.bf16.mxu0 %v1317
    %4638 = vmatpush1.bf16.msra.mxu0 %v1316
    %4639 = vmatprep.subr.bf16.mxu0 %v1313
    %4640 = vmatpush1.bf16.msra.mxu0 %v1312
    %4641 = vmatprep.subr.bf16.mxu0 %v1309
    %4642 = vmatpush1.bf16.msra.mxu0 %v1308
    %4643 = vmatprep.subr.bf16.mxu0 %v1305
    %4644 = vmatpush1.bf16.msra.mxu0 %v1304
    %4645 = vmatprep.subr.bf16.mxu0 %v1301
    %4646 = vmatpush1.bf16.msra.mxu0 %v1300
    %4647 = vmatprep.subr.bf16.mxu0 %v1297
    %4648 = vmatpush1.bf16.msra.mxu0 %v1296
    %4649 = vmatprep.subr.bf16.mxu0 %v1293
    %4650 = vmatpush1.bf16.msra.mxu0 %v1292
    %4651 = vmatprep.subr.bf16.mxu0 %v1353
    %4652 = vmatpush2.bf16.msra.mxu0 %v1352
    %4653 = vmatprep.subr.bf16.mxu0 %v1349
    %4654 = vmatpush2.bf16.msra.mxu0 %v1348
    %4655 = vmatprep.subr.bf16.mxu0 %v1345
    %4656 = vmatpush2.bf16.msra.mxu0 %v1344
    %4657 = vmatprep.subr.bf16.mxu0 %v1341
    %4658 = vmatpush2.bf16.msra.mxu0 %v1340
    %4659 = vmatprep.subr.bf16.mxu0 %v1337
    %4660 = vmatpush2.bf16.msra.mxu0 %v1336
    %4661 = vmatprep.subr.bf16.mxu0 %v1333
    %4662 = vmatpush2.bf16.msra.mxu0 %v1332
    %4663 = vmatprep.subr.bf16.mxu0 %v1329
    %4664 = vmatpush2.bf16.msra.mxu0 %v1328
    %4665 = vmatprep.subr.bf16.mxu0 %v1325
    %4666 = vmatpush2.bf16.msra.mxu0 %v1324
    %4667 = vmatprep.mubr.bf16.mxu0 %v4634
    %4668 = vmatmul.mubr.bf16.gmra.mxu0 %v4633
    %v4669 = vpop.f32.mrf.mxu0
    %v4670 = vadd.f32 %v1083, %v4669
    %v4671 = vpop.f32.mrf.mxu0
    %v4672 = vadd.f32 %v1087, %v4671
    %v4673 = vpop.f32.mrf.mxu0
    %v4674 = vpop.f32.mrf.mxu0
    %4675 = vdwg.mxu0
    %4676 = vmatprep.subr.bf16.mxu0 %v1323
    %4677 = vmatpush1.bf16.msra.mxu0 %v1322
    %4678 = vmatprep.subr.bf16.mxu0 %v1319
    %4679 = vmatpush1.bf16.msra.mxu0 %v1318
    %4680 = vmatprep.subr.bf16.mxu0 %v1315
    %4681 = vmatpush1.bf16.msra.mxu0 %v1314
    %4682 = vmatprep.subr.bf16.mxu0 %v1311
    %4683 = vmatpush1.bf16.msra.mxu0 %v1310
    %4684 = vmatprep.subr.bf16.mxu0 %v1307
    %4685 = vmatpush1.bf16.msra.mxu0 %v1306
    %4686 = vmatprep.subr.bf16.mxu0 %v1303
    %4687 = vmatpush1.bf16.msra.mxu0 %v1302
    %4688 = vmatprep.subr.bf16.mxu0 %v1299
    %4689 = vmatpush1.bf16.msra.mxu0 %v1298
    %4690 = vmatprep.subr.bf16.mxu0 %v1295
    %4691 = vmatpush1.bf16.msra.mxu0 %v1294
    %4692 = vmatprep.subr.bf16.mxu0 %v1355
    %4693 = vmatpush2.bf16.msra.mxu0 %v1354
    %4694 = vmatprep.subr.bf16.mxu0 %v1351
    %4695 = vmatpush2.bf16.msra.mxu0 %v1350
    %4696 = vmatprep.subr.bf16.mxu0 %v1347
    %4697 = vmatpush2.bf16.msra.mxu0 %v1346
    %4698 = vmatprep.subr.bf16.mxu0 %v1343
    %4699 = vmatpush2.bf16.msra.mxu0 %v1342
    %4700 = vmatprep.subr.bf16.mxu0 %v1339
    %4701 = vmatpush2.bf16.msra.mxu0 %v1338
    %4702 = vmatprep.subr.bf16.mxu0 %v1335
    %4703 = vmatpush2.bf16.msra.mxu0 %v1334
    %4704 = vmatprep.subr.bf16.mxu0 %v1331
    %4705 = vmatpush2.bf16.msra.mxu0 %v1330
    %4706 = vmatprep.subr.bf16.mxu0 %v1327
    %4707 = vmatpush2.bf16.msra.mxu0 %v1326
    %4708 = vmatprep.mubr.bf16.mxu0 %v4634
    %4709 = vmatmul.mubr.bf16.gmra.mxu0 %v4633
    %v4710 = vpop.f32.mrf.mxu0
    %v4711 = vadd.f32 %v1091, %v4710
    %v4712 = vpop.f32.mrf.mxu0
    %v4713 = vadd.f32 %v1095, %v4712
    %v4714 = vpop.f32.mrf.mxu0
    %v4715 = vpop.f32.mrf.mxu0
    %4716 = vdwg.mxu0
    %v4717 = vxor.u32 %v4670, 2147483648
    %v4718 = vmul.f32 %v4717, 1.442695
    %v4719 = vpow.pop %v4718
    %v4720 = vadd.f32 %v4719, 1.0
    %v4721 = vrcp.pop %v4720
    %v4722 = vmul.f32 1.0, %v4721
    %v4723 = vxor.u32 %v4672, 2147483648
    %v4724 = vmul.f32 %v4723, 1.442695
    %v4725 = vpow.pop %v4724
    %v4726 = vadd.f32 %v4725, 1.0
    %v4727 = vrcp.pop %v4726
    %v4728 = vmul.f32 1.0, %v4727
    %v4729 = vtanh.pop %v4711
    %v4730 = vxor.u32 %v4713, 2147483648
    %v4731 = vmul.f32 %v4730, 1.442695
    %v4732 = vpow.pop %v4731
    %v4733 = vadd.f32 %v4732, 1.0
    %v4734 = vrcp.pop %v4733
    %v4735 = vmul.f32 1.0, %v4734
    %v4736 = vmul.f32 %v4728, %v4478
    %v4737 = vmul.f32 %v4722, %v4729
    %v4738 = vadd.f32 %v4736, %v4737
    %v4739 = vtanh.pop %v4738
    %v4740 = vmul.f32 %v4735, %v4739
    %v4741 = vpack.c.bf16 %v4587, %v4587
    %4742 = vmatprep.subr.bf16.mxu0 %v2093
    %4743 = vmatpush1.bf16.msra.mxu0 %v2092
    %4744 = vmatprep.subr.bf16.mxu0 %v2089
    %4745 = vmatpush1.bf16.msra.mxu0 %v2088
    %4746 = vmatprep.subr.bf16.mxu0 %v2085
    %4747 = vmatpush1.bf16.msra.mxu0 %v2084
    %4748 = vmatprep.subr.bf16.mxu0 %v2081
    %4749 = vmatpush1.bf16.msra.mxu0 %v2080
    %4750 = vmatprep.subr.bf16.mxu0 %v2077
    %4751 = vmatpush1.bf16.msra.mxu0 %v2076
    %4752 = vmatprep.subr.bf16.mxu0 %v2073
    %4753 = vmatpush1.bf16.msra.mxu0 %v2072
    %4754 = vmatprep.subr.bf16.mxu0 %v2069
    %4755 = vmatpush1.bf16.msra.mxu0 %v2068
    %4756 = vmatprep.subr.bf16.mxu0 %v2065
    %4757 = vmatpush1.bf16.msra.mxu0 %v2064
    %4758 = vmatprep.subr.bf16.mxu0 %v2125
    %4759 = vmatpush2.bf16.msra.mxu0 %v2124
    %4760 = vmatprep.subr.bf16.mxu0 %v2121
    %4761 = vmatpush2.bf16.msra.mxu0 %v2120
    %4762 = vmatprep.subr.bf16.mxu0 %v2117
    %4763 = vmatpush2.bf16.msra.mxu0 %v2116
    %4764 = vmatprep.subr.bf16.mxu0 %v2113
    %4765 = vmatpush2.bf16.msra.mxu0 %v2112
    %4766 = vmatprep.subr.bf16.mxu0 %v2109
    %4767 = vmatpush2.bf16.msra.mxu0 %v2108
    %4768 = vmatprep.subr.bf16.mxu0 %v2105
    %4769 = vmatpush2.bf16.msra.mxu0 %v2104
    %4770 = vmatprep.subr.bf16.mxu0 %v2101
    %4771 = vmatpush2.bf16.msra.mxu0 %v2100
    %4772 = vmatprep.subr.bf16.mxu0 %v2097
    %4773 = vmatpush2.bf16.msra.mxu0 %v2096
    %4774 = vmatprep.mubr.bf16.mxu0 %v4741
    %4775 = vmatmul.mubr.bf16.gmra.mxu0 %v4634
    %v4776 = vpop.f32.mrf.mxu0
    %v4777 = vadd.f32 %v1855, %v4776
    %v4778 = vpop.f32.mrf.mxu0
    %v4779 = vadd.f32 %v1859, %v4778
    %v4780 = vpop.f32.mrf.mxu0
    %v4781 = vpop.f32.mrf.mxu0
    %4782 = vdwg.mxu0
    %4783 = vmatprep.subr.bf16.mxu0 %v2095
    %4784 = vmatpush1.bf16.msra.mxu0 %v2094
    %4785 = vmatprep.subr.bf16.mxu0 %v2091
    %4786 = vmatpush1.bf16.msra.mxu0 %v2090
    %4787 = vmatprep.subr.bf16.mxu0 %v2087
    %4788 = vmatpush1.bf16.msra.mxu0 %v2086
    %4789 = vmatprep.subr.bf16.mxu0 %v2083
    %4790 = vmatpush1.bf16.msra.mxu0 %v2082
    %4791 = vmatprep.subr.bf16.mxu0 %v2079
    %4792 = vmatpush1.bf16.msra.mxu0 %v2078
    %4793 = vmatprep.subr.bf16.mxu0 %v2075
    %4794 = vmatpush1.bf16.msra.mxu0 %v2074
    %4795 = vmatprep.subr.bf16.mxu0 %v2071
    %4796 = vmatpush1.bf16.msra.mxu0 %v2070
    %4797 = vmatprep.subr.bf16.mxu0 %v2067
    %4798 = vmatpush1.bf16.msra.mxu0 %v2066
    %4799 = vmatprep.subr.bf16.mxu0 %v2127
    %4800 = vmatpush2.bf16.msra.mxu0 %v2126
    %4801 = vmatprep.subr.bf16.mxu0 %v2123
    %4802 = vmatpush2.bf16.msra.mxu0 %v2122
    %4803 = vmatprep.subr.bf16.mxu0 %v2119
    %4804 = vmatpush2.bf16.msra.mxu0 %v2118
    %4805 = vmatprep.subr.bf16.mxu0 %v2115
    %4806 = vmatpush2.bf16.msra.mxu0 %v2114
    %4807 = vmatprep.subr.bf16.mxu0 %v2111
    %4808 = vmatpush2.bf16.msra.mxu0 %v2110
    %4809 = vmatprep.subr.bf16.mxu0 %v2107
    %4810 = vmatpush2.bf16.msra.mxu0 %v2106
    %4811 = vmatprep.subr.bf16.mxu0 %v2103
    %4812 = vmatpush2.bf16.msra.mxu0 %v2102
    %4813 = vmatprep.subr.bf16.mxu0 %v2099
    %4814 = vmatpush2.bf16.msra.mxu0 %v2098
    %4815 = vmatprep.mubr.bf16.mxu0 %v4741
    %4816 = vmatmul.mubr.bf16.gmra.mxu0 %v4634
    %v4817 = vpop.f32.mrf.mxu0
    %v4818 = vadd.f32 %v1863, %v4817
    %v4819 = vpop.f32.mrf.mxu0
    %v4820 = vadd.f32 %v1867, %v4819
    %v4821 = vpop.f32.mrf.mxu0
    %v4822 = vpop.f32.mrf.mxu0
    %4823 = vdwg.mxu0
    %v4824 = vxor.u32 %v4777, 2147483648
    %v4825 = vmul.f32 %v4824, 1.442695
    %v4826 = vpow.pop %v4825
    %v4827 = vadd.f32 %v4826, 1.0
    %v4828 = vrcp.pop %v4827
    %v4829 = vmul.f32 1.0, %v4828
    %v4830 = vxor.u32 %v4779, 2147483648
    %v4831 = vmul.f32 %v4830, 1.442695
    %v4832 = vpow.pop %v4831
    %v4833 = vadd.f32 %v4832, 1.0
    %v4834 = vrcp.pop %v4833
    %v4835 = vmul.f32 1.0, %v4834
    %v4836 = vtanh.pop %v4818
    %v4837 = vxor.u32 %v4820, 2147483648
    %v4838 = vmul.f32 %v4837, 1.442695
    %v4839 = vpow.pop %v4838
    %v4840 = vadd.f32 %v4839, 1.0
    %v4841 = vrcp.pop %v4840
    %v4842 = vmul.f32 1.0, %v4841
    %v4843 = vmul.f32 %v4835, %v4585
    %v4844 = vmul.f32 %v4829, %v4836
    %v4845 = vadd.f32 %v4843, %v4844
    %v4846 = vtanh.pop %v4845
    %v4847 = vmul.f32 %v4842, %v4846
    %v4850 = vunpack.c.l.s4 1966171168
    %v4851 = vunpack.c.0.s8 %v4850
    %v4852 = vlaneseq
    %v4853 = vshrl.u32 %v4852, 7
    %v4854 = vsub.s32 %v4851, %v4853
    %v4855 = vrot.slane %v4847, %v4854
    %v4856 = vcombine.high %v4855, %v4855
    %v4858 = vunpack.c.l.s4 1966171168
    %v4859 = vunpack.c.0.s8 %v4858
    %v4860 = vlaneseq
    %v4861 = vshrl.u32 %v4860, 7
    %v4862 = vsub.s32 %v4859, %v4861
    %v4863 = vrot.slane %v4855, %v4862
    %v4865 = vunpack.c.l.s4 1966171168
    %v4866 = vunpack.c.0.s8 %v4865
    %v4867 = vlaneseq
    %v4868 = vshrl.u32 %v4867, 7
    %v4869 = vsub.s32 %v4866, %v4868
    %v4870 = vrot.slane %v4856, %v4869
    %4873 = vst [vmem:[#allocation11 + $0x6] sm:$0x1] %v4863
    %4874 = vst [vmem:[#allocation11 + $0xe] sm:$0x1] %v4870
    %v4875 = vpack.c.bf16 %v4740, %v4740
    %v4876 = vpack.c.bf16 %v4847, %v4847
    %4877 = vmatprep.subr.bf16.mxu0 %v2093
    %4878 = vmatpush1.bf16.msra.mxu0 %v2092
    %4879 = vmatprep.subr.bf16.mxu0 %v2089
    %4880 = vmatpush1.bf16.msra.mxu0 %v2088
    %4881 = vmatprep.subr.bf16.mxu0 %v2085
    %4882 = vmatpush1.bf16.msra.mxu0 %v2084
    %4883 = vmatprep.subr.bf16.mxu0 %v2081
    %4884 = vmatpush1.bf16.msra.mxu0 %v2080
    %4885 = vmatprep.subr.bf16.mxu0 %v2077
    %4886 = vmatpush1.bf16.msra.mxu0 %v2076
    %4887 = vmatprep.subr.bf16.mxu0 %v2073
    %4888 = vmatpush1.bf16.msra.mxu0 %v2072
    %4889 = vmatprep.subr.bf16.mxu0 %v2069
    %4890 = vmatpush1.bf16.msra.mxu0 %v2068
    %4891 = vmatprep.subr.bf16.mxu0 %v2065
    %4892 = vmatpush1.bf16.msra.mxu0 %v2064
    %4893 = vmatprep.subr.bf16.mxu0 %v2125
    %4894 = vmatpush2.bf16.msra.mxu0 %v2124
    %4895 = vmatprep.subr.bf16.mxu0 %v2121
    %4896 = vmatpush2.bf16.msra.mxu0 %v2120
    %4897 = vmatprep.subr.bf16.mxu0 %v2117
    %4898 = vmatpush2.bf16.msra.mxu0 %v2116
    %4899 = vmatprep.subr.bf16.mxu0 %v2113
    %4900 = vmatpush2.bf16.msra.mxu0 %v2112
    %4901 = vmatprep.subr.bf16.mxu0 %v2109
    %4902 = vmatpush2.bf16.msra.mxu0 %v2108
    %4903 = vmatprep.subr.bf16.mxu0 %v2105
    %4904 = vmatpush2.bf16.msra.mxu0 %v2104
    %4905 = vmatprep.subr.bf16.mxu0 %v2101
    %4906 = vmatpush2.bf16.msra.mxu0 %v2100
    %4907 = vmatprep.subr.bf16.mxu0 %v2097
    %4908 = vmatpush2.bf16.msra.mxu0 %v2096
    %4909 = vmatprep.mubr.bf16.mxu0 %v4876
    %4910 = vmatmul.mubr.bf16.gmra.mxu0 %v4875
    %v4911 = vpop.f32.mrf.mxu0
    %v4912 = vadd.f32 %v1855, %v4911
    %v4913 = vpop.f32.mrf.mxu0
    %v4914 = vadd.f32 %v1859, %v4913
    %v4915 = vpop.f32.mrf.mxu0
    %v4916 = vpop.f32.mrf.mxu0
    %4917 = vdwg.mxu0
    %4918 = vmatprep.subr.bf16.mxu0 %v2095
    %4919 = vmatpush1.bf16.msra.mxu0 %v2094
    %4920 = vmatprep.subr.bf16.mxu0 %v2091
    %4921 = vmatpush1.bf16.msra.mxu0 %v2090
    %4922 = vmatprep.subr.bf16.mxu0 %v2087
    %4923 = vmatpush1.bf16.msra.mxu0 %v2086
    %4924 = vmatprep.subr.bf16.mxu0 %v2083
    %4925 = vmatpush1.bf16.msra.mxu0 %v2082
    %4926 = vmatprep.subr.bf16.mxu0 %v2079
    %4927 = vmatpush1.bf16.msra.mxu0 %v2078
    %4928 = vmatprep.subr.bf16.mxu0 %v2075
    %4929 = vmatpush1.bf16.msra.mxu0 %v2074
    %4930 = vmatprep.subr.bf16.mxu0 %v2071
    %4931 = vmatpush1.bf16.msra.mxu0 %v2070
    %4932 = vmatprep.subr.bf16.mxu0 %v2067
    %4933 = vmatpush1.bf16.msra.mxu0 %v2066
    %4934 = vmatprep.subr.bf16.mxu0 %v2127
    %4935 = vmatpush2.bf16.msra.mxu0 %v2126
    %4936 = vmatprep.subr.bf16.mxu0 %v2123
    %4937 = vmatpush2.bf16.msra.mxu0 %v2122
    %4938 = vmatprep.subr.bf16.mxu0 %v2119
    %4939 = vmatpush2.bf16.msra.mxu0 %v2118
    %4940 = vmatprep.subr.bf16.mxu0 %v2115
    %4941 = vmatpush2.bf16.msra.mxu0 %v2114
    %4942 = vmatprep.subr.bf16.mxu0 %v2111
    %4943 = vmatpush2.bf16.msra.mxu0 %v2110
    %4944 = vmatprep.subr.bf16.mxu0 %v2107
    %4945 = vmatpush2.bf16.msra.mxu0 %v2106
    %4946 = vmatprep.subr.bf16.mxu0 %v2103
    %4947 = vmatpush2.bf16.msra.mxu0 %v2102
    %4948 = vmatprep.subr.bf16.mxu0 %v2099
    %4949 = vmatpush2.bf16.msra.mxu0 %v2098
    %4950 = vmatprep.mubr.bf16.mxu0 %v4876
    %4951 = vmatmul.mubr.bf16.gmra.mxu0 %v4875
    %v4952 = vpop.f32.mrf.mxu0
    %v4953 = vadd.f32 %v1863, %v4952
    %v4954 = vpop.f32.mrf.mxu0
    %v4955 = vadd.f32 %v1867, %v4954
    %v4956 = vpop.f32.mrf.mxu0
    %v4957 = vpop.f32.mrf.mxu0
    %4958 = vdwg.mxu0
    %v4959 = vxor.u32 %v4912, 2147483648
    %v4960 = vmul.f32 %v4959, 1.442695
    %v4961 = vpow.pop %v4960
    %v4962 = vadd.f32 %v4961, 1.0
    %v4963 = vrcp.pop %v4962
    %v4964 = vmul.f32 1.0, %v4963
    %v4965 = vxor.u32 %v4914, 2147483648
    %v4966 = vmul.f32 %v4965, 1.442695
    %v4967 = vpow.pop %v4966
    %v4968 = vadd.f32 %v4967, 1.0
    %v4969 = vrcp.pop %v4968
    %v4970 = vmul.f32 1.0, %v4969
    %v4971 = vtanh.pop %v4953
    %v4972 = vxor.u32 %v4955, 2147483648
    %v4973 = vmul.f32 %v4972, 1.442695
    %v4974 = vpow.pop %v4973
    %v4975 = vadd.f32 %v4974, 1.0
    %v4976 = vrcp.pop %v4975
    %v4977 = vmul.f32 1.0, %v4976
    %v4978 = vmul.f32 %v4970, %v4845
    %v4979 = vmul.f32 %v4964, %v4971
    %v4980 = vadd.f32 %v4978, %v4979
    %v4981 = vtanh.pop %v4980
    %v4982 = vmul.f32 %v4977, %v4981
    %v4985 = vunpack.c.l.s4 1966171168
    %v4986 = vunpack.c.0.s8 %v4985
    %v4987 = vlaneseq
    %v4988 = vshrl.u32 %v4987, 7
    %v4989 = vsub.s32 %v4986, %v4988
    %v4990 = vrot.slane %v4982, %v4989
    %v4991 = vcombine.high %v4990, %v4990
    %v4993 = vunpack.c.l.s4 1966171168
    %v4994 = vunpack.c.0.s8 %v4993
    %v4995 = vlaneseq
    %v4996 = vshrl.u32 %v4995, 7
    %v4997 = vsub.s32 %v4994, %v4996
    %v4998 = vrot.slane %v4990, %v4997
    %v5000 = vunpack.c.l.s4 1966171168
    %v5001 = vunpack.c.0.s8 %v5000
    %v5002 = vlaneseq
    %v5003 = vshrl.u32 %v5002, 7
    %v5004 = vsub.s32 %v5001, %v5003
    %v5005 = vrot.slane %v4991, %v5004
    %5008 = vst [vmem:[#allocation11 + $0x7] sm:$0x1] %v4998
    %5009 = vst [vmem:[#allocation11 + $0xf] sm:$0x1] %v5005
    %5010 = vst [vmem:[#allocation12] sm:$0x3] %v4631
    %v5013 = vcombine.low %v4349, %v4350
    %v5015 = vunpack.c.l.s4 1966171168
    %v5016 = vunpack.c.0.s8 %v5015
    %v5017 = vlaneseq
    %v5018 = vshrl.u32 %v5017, 7
    %v5019 = vsub.s32 %v5016, %v5018
    %v5020 = vrot.slane %v5013, %v5019
    %v5022 = vunpack.c.l.s4 1966171168
    %v5023 = vunpack.c.0.s8 %v5022
    %v5024 = vlaneseq
    %v5025 = vshrl.u32 %v5024, 7
    %v5026 = vsub.s32 %v5023, %v5025
    %v5027 = vrot.slane %v5020, %v5026
    %5029 = vst [vmem:[#allocation14] sm:$0x3] %v5027
    %s5030 = scalar_lea.vmem [#allocation12], 2
    %5031 = vst [vmem:[%s5030] sm:$0x3] %v4740
    %s5032 = scalar_lea.vmem [#allocation14], 2
    %5033 = vst [vmem:[%s5032] sm:$0x3] %v4738
    %s5034 = scalar_lea.vmem [#allocation12], 4
    %5035 = vst [vmem:[%s5034] sm:$0x3] %v4982
    %s5036 = scalar_lea.vmem [#allocation14], 4
    %5037 = vst [vmem:[%s5036] sm:$0x3] %v4980
    // Predicated region
    $region58: #{_lambda_.1} parent=1 // pred_check
      _
    $region59: #{_lambda_.1} parent=1 // pred_check_branch
      %5039 = sbr.rel (0) target = $region61
    $region60: #{_lambda_.1} parent=1 // pred_region
      %s5041 = ssub.s32 256, 256
      %5042 = vsyncadd [#allocation5], %s5041
      %s5043 = sshll.u32 [#allocation11], 4
      %s5044 = int_to_ptr.vmem [resolvable:$true] %s5043
      %5049 = dma.vmem_to_hbm [thread:$0]  %s5044, 256, %s10, [#allocation5], 128, 128, 8
    $region61: #{_lambda_.1} parent=1 // pred_fallthru
      _
    // Predicated region
    $region62: #{_lambda_.1} parent=1 // pred_check
      _
    $region63: #{_lambda_.1} parent=1 // pred_check_branch
      %5051 = sbr.rel (0) target = $region65
    $region64: #{_lambda_.1} parent=1 // pred_region
      %s5053 = ssub.s32 96, 96
      %5054 = vsyncadd [#allocation13], %s5053
      %s5055 = sshll.u32 [#allocation12], 4
      %s5056 = int_to_ptr.vmem [resolvable:$true] %s5055
      %5061 = dma.vmem_to_hbm [thread:$0]  %s5056, 96, %s11, [#allocation13], 32, 32, 2
    $region65: #{_lambda_.1} parent=1 // pred_fallthru
      _
    // Predicated region
    $region66: #{_lambda_.1} parent=1 // pred_check
      _
    $region67: #{_lambda_.1} parent=1 // pred_check_branch
      %5063 = sbr.rel (0) target = $region69
    $region68: #{_lambda_.1} parent=1 // pred_region
      %s5065 = ssub.s32 96, 96
      %5066 = vsyncadd [#allocation13], %s5065
      %s5067 = sshll.u32 [#allocation14], 4
      %s5068 = int_to_ptr.vmem [resolvable:$true] %s5067
      %5073 = dma.vmem_to_hbm [thread:$0]  %s5068, 96, %s12, [#allocation13], 32, 32, 2
    $region69: #{_lambda_.1} parent=1 // pred_fallthru
      _
    // Predicated region
    $region70: #{_lambda_.1} parent=1 // pred_check
      _
    $region71: #{_lambda_.1} parent=1 // pred_check_branch
      %5075 = sbr.rel (0) target = $region73
    $region72: #{_lambda_.1} parent=1 // pred_region
      %5076 = dma.done [#allocation5], 256
    $region73: #{_lambda_.1} parent=1 // pred_fallthru
      _
    // Predicated region
    $region74: #{_lambda_.1} parent=1 // pred_check
      _
    $region75: #{_lambda_.1} parent=1 // pred_check_branch
      %5078 = sbr.rel (0) target = $region77
    $region76: #{_lambda_.1} parent=1 // pred_region
      %5079 = dma.done [#allocation13], 96
    $region77: #{_lambda_.1} parent=1 // pred_fallthru
      _
    // Predicated region
    $region78: #{_lambda_.1} parent=1 // pred_check
      _
    $region79: #{_lambda_.1} parent=1 // pred_check_branch
      %5081 = sbr.rel (0) target = $region81
    $region80: #{_lambda_.1} parent=1 // pred_region
      %5082 = dma.done [#allocation13], 96
    $region81: #{_lambda_.1} parent=1 // pred_fallthru
      _
    %5083 = vsyncpa [#allocation4], 1
    %5084 = vsyncpa [#allocation7], 1
    %5085 = vsyncpa [#allocation10], 1
    %5086 = vsyncpa [#allocation5], 1
    %5087 = vsyncpa [#allocation13], 1

</llo_original>
